<compile_context>
chip_gen: v7x
topology: tpu7x:2x2x1
jax: 0.10.0
libtpu: 0.0.40
codegen_flags: <defaults>
</compile_context>

<pallas_src>
import jax
import jax.numpy as jnp
from jax import lax
from jax.experimental import pallas as pl
from jax.experimental.pallas import tpu as pltpu


def gru_path_kernel(ids_ref, len_ref, tbl_ref, whh_ref, bhn_ref, out_ref, gi_ref):
    """Feature-major packed GRU over one tile of sequences.

    ids_ref: (T, tile_n) int32   path ids, time-major, batch on lanes
    len_ref: (1, tile_n) int32   valid lengths per sequence (0 => frozen)
    tbl_ref: (3H, V+1) f32       folded table: (emb @ W_ih^T + b_ih + [b_hr,b_hz,0])^T
    whh_ref: (3H, H)  f32        W_hh (PyTorch layout), gh = W_hh @ h
    bhn_ref: (H, 1)   f32        b_hh of the n-gate (must stay inside r * (...))
    out_ref: (H, tile_n) f32     final hidden state, lane-dense
    gi_ref : (T, 3H, tile_n) f32 VMEM scratch holding the precomputed input proj.
    """
    T, tile_n = ids_ref.shape
    V1 = tbl_ref.shape[1]
    H = out_ref.shape[0]
    H2 = 2 * H

    # Loop-invariant hoists (weights, lengths, iota, b_hn lane-broadcast).
    tbl = tbl_ref[...]                                          # (3H, V1)
    whh = whh_ref[...]                                          # (3H, H)
    lens = len_ref[...]                                         # (1, tile_n)
    bhn = jnp.broadcast_to(bhn_ref[...], (H, tile_n))           # (H, tile_n)
    iota_v = lax.broadcasted_iota(jnp.int32, (V1, tile_n), 0)   # (V1, tile_n)

    # ---- Phase 1: h-independent input projection for every step, off the
    # serial critical path.  Each result is stored straight into VMEM scratch
    # so vreg pressure stays low; the T matmuls are independent and pipeline
    # at MXU cadence.
    for t in range(T):
        ids_row = ids_ref[pl.ds(t, 1), :]                       # (1, tile_n)
        onehot = (ids_row == iota_v).astype(jnp.float32)        # (V1, tile_n)
        gi_ref[t] = jnp.dot(tbl, onehot,
                            preferred_element_type=jnp.float32)  # (3H, tile_n)

    # ---- Phase 2: the recurrence.  Only W_hh @ h sits on the serial chain;
    # gi slices come from scratch with static indices.
    h = jnp.zeros((H, tile_n), jnp.float32)
    for t in range(T):
        gi = gi_ref[t]                                          # (3H, tile_n)
        gh = jnp.dot(whh, h, preferred_element_type=jnp.float32)  # (3H, tile_n)

        # Fused r/z gates: one add + one EUP tanh on the (2H, tile_n) slice.
        # sigmoid(x) == 0.5 * tanh(0.5 * x) + 0.5  (single EUP op, no divide).
        rz = 0.5 * jnp.tanh(0.5 * (gi[:H2] + gh[:H2])) + 0.5    # (2H, tile_n)
        r = rz[:H]
        z = rz[H:]
        n = jnp.tanh(gi[H2:] + r * (gh[H2:] + bhn))
        h_new = n + z * (h - n)                                 # == (1-z)*n + z*h

        # pack_padded_sequence semantics: freeze h once t >= length.
        h = jnp.where(t < lens, h_new, h)

    out_ref[...] = h


def _pick_tile_n(Np):
    """Generation-aware lane-tile size.  Np is a multiple of 128.

    Single-TC chips (v5e/v6e): collapse the grid into one big tile (cap 512).
    Dual-TC chips (v7x): keep >= 2 tiles so both TensorCores get work.
    """
    n128 = Np // 128
    dual_tc = False
    try:
        kind = jax.devices()[0].device_kind.lower()
        dual_tc = ("v7" in kind) or ("7x" in kind)
    except Exception:
        pass
    cap = 4  # cap tile_n at 512 lanes (vreg-pressure headroom)
    limit = min(cap, n128 // 2) if (dual_tc and n128 >= 2) else min(cap, n128)
    limit = max(limit, 1)
    best = 1
    for d in range(1, limit + 1):
        if n128 % d == 0:
            best = d
    return best * 128


def path_gru_pallas(ids_tn, lens_1n, tableT, whh, bhn, *, tile_n):
    """ids_tn: (T, Np) i32, lens_1n: (1, Np) i32 -> (H, Np) f32 final hidden."""
    T, Np = ids_tn.shape
    H3, H = whh.shape
    assert Np % tile_n == 0
    grid = (Np // tile_n,)
    return pl.pallas_call(
        gru_path_kernel,
        out_shape=jax.ShapeDtypeStruct((H, Np), jnp.float32),
        grid_spec=pltpu.PrefetchScalarGridSpec(
            num_scalar_prefetch=0,
            grid=grid,
            in_specs=[
                pl.BlockSpec((T, tile_n), lambda i: (0, i)),      # ids
                pl.BlockSpec((1, tile_n), lambda i: (0, i)),      # lengths
                pl.BlockSpec(tableT.shape, lambda i: (0, 0)),     # folded table
                pl.BlockSpec(whh.shape, lambda i: (0, 0)),        # W_hh
                pl.BlockSpec(bhn.shape, lambda i: (0, 0)),        # b_hn
            ],
            out_specs=pl.BlockSpec((H, tile_n), lambda i: (0, i)),
            scratch_shapes=[pltpu.VMEM((T, H3, tile_n), jnp.float32)],
        ),
        compiler_params=pltpu.CompilerParams(
            dimension_semantics=("parallel",)),
    )(ids_tn, lens_1n, tableT, whh, bhn)


def path_embedding_forward(paths, paths_mask, emb, w_ih, w_hh, b_ih, b_hh,
                           *, tile_n=None):
    """Pallas implementation of PathEmbedding.forward (unidirectional GRU).

    paths: (bs, max_path_num, T) int ids, paths_mask: (bs, max_path_num) lengths.
    Returns relation: (bs, max_path_num + 1, H).
    """
    bs, mpn, T = paths.shape
    V1, _ = emb.shape
    H = w_hh.shape[1]
    N = bs * mpn
    Np = ((N + 127) // 128) * 128
    if tile_n is None:
        tile_n = _pick_tile_n(Np)

    # ids: (T, Np) int32, time-major, batch on the 128-lane axis.
    # Note: ids are assumed in [0, V1); out-of-range ids would silently drop
    # the folded bias (one-hot column becomes all zero).
    ids_tn = jnp.pad(paths.reshape(N, T).T.astype(jnp.int32),
                     ((0, 0), (0, Np - N)), constant_values=V1 - 1)
    lens_1n = jnp.pad(paths_mask.reshape(1, N).astype(jnp.int32),
                      ((0, 0), (0, Np - N)))                    # padded lanes -> 0

    # Fold embedding + W_ih + b_ih + (r,z) parts of b_hh into one (3H, V+1)
    # table: one-hot columns sum to 1, so the bias folds exactly per lookup.
    bias_fold = b_ih + jnp.concatenate(
        [b_hh[:2 * H], jnp.zeros((H,), b_hh.dtype)])
    tableT = jnp.transpose(emb @ w_ih.T + bias_fold[None, :])   # (3H, V1)
    bhn = b_hh[2 * H:].reshape(H, 1)                            # n-gate hh bias

    h_fm = path_gru_pallas(ids_tn, lens_1n, tableT, w_hh, bhn, tile_n=tile_n)
    h_last = jnp.transpose(h_fm)[:N]                            # (N, H)
    p_7 = h_last.reshape(bs, mpn, H)
    return jnp.concatenate([p_7, jnp.zeros((bs, 1, H), p_7.dtype)], axis=1)


def ref_path_embedding(paths, paths_mask, emb, w_ih, w_hh, b_ih, b_hh, H):
    """Pure-JAX reference with identical packed-GRU final-hidden semantics."""
    bs, mpn, T = paths.shape
    x = emb[paths].reshape(bs * mpn, T, -1)                     # (N, T, E)
    lens = paths_mask.reshape(-1)

    def cell(h, inp):
        xt, t = inp
        gi = xt @ w_ih.T + b_ih
        gh = h @ w_hh.T + b_hh
        r = jax.nn.sigmoid(gi[:, :H] + gh[:, :H])
        z = jax.nn.sigmoid(gi[:, H:2 * H] + gh[:, H:2 * H])
        n = jnp.tanh(gi[:, 2 * H:] + r * gh[:, 2 * H:])
        hn = (1.0 - z) * n + z * h
        return jnp.where((t < lens)[:, None], hn, h), None

    h0 = jnp.zeros((bs * mpn, H), jnp.float32)
    hT, _ = lax.scan(cell, h0, (jnp.transpose(x, (1, 0, 2)), jnp.arange(T)))
    p_7 = hT.reshape(bs, mpn, H)
    return jnp.concatenate([p_7, jnp.zeros((bs, 1, H), p_7.dtype)], axis=1)


if __name__ == "__main__":
    # args: path_embedding_num=20, path_embedding_size=16, hidden=32,
    #       attn_heads=2, bidirectional=False -> gru_size H = 16
    path_embedding_num = 20
    E = 16
    hidden, attn_heads = 32, 2
    H = hidden // attn_heads
    V1 = path_embedding_num + 1
    # N = bs*max_path_num = 200 -> padded to 256 lanes
    # (1 tile of 256 on single-TC v5e/v6e, 2 parallel tiles of 128 on v7x).
    bs, max_path_num, max_path_length = 2, 100, 8

    key = jax.random.PRNGKey(0)
    k_emb, k_paths, k_len, k1, k2, k3, k4 = jax.random.split(key, 7)

    # nn.Embedding(V+1, E, padding_idx=V) -> padding row zeroed.
    emb = jax.random.normal(k_emb, (V1, E), jnp.float32)
    emb = emb.at[path_embedding_num].set(0.0)

    # GRU params in PyTorch layout: weight_ih (3H,E), weight_hh (3H,H), biases (3H,).
    bound = float(1.0 / (H ** 0.5))
    w_ih = jax.random.uniform(k1, (3 * H, E), jnp.float32, -bound, bound)
    w_hh = jax.random.uniform(k2, (3 * H, H), jnp.float32, -bound, bound)
    b_ih = jax.random.uniform(k3, (3 * H,), jnp.float32, -bound, bound)
    b_hh = jax.random.uniform(k4, (3 * H,), jnp.float32, -bound, bound)

    # Inputs: path ids and per-path valid lengths (>= 1, as pack_padded requires).
    paths = jax.random.randint(k_paths, (bs, max_path_num, max_path_length), 0, V1)
    paths_mask = jax.random.randint(k_len, (bs, max_path_num), 1,
                                    max_path_length + 1)

    relation = path_embedding_forward(paths, paths_mask, emb, w_ih, w_hh,
                                      b_ih, b_hh)
    relation = jax.block_until_ready(relation)
    assert relation.shape == (bs, max_path_num + 1, H)

    ref = ref_path_embedding(paths, paths_mask, emb, w_ih, w_hh, b_ih, b_hh, H)
    err = float(jnp.max(jnp.abs(relation - ref)))
    assert jnp.allclose(relation, ref, atol=1e-4, rtol=1e-4), err

    print("KERNEL_OK")
</pallas_src>

<mosaic_0001>
module attributes {stable_mosaic.version = 11 : i64} {
  func.func @gru_path_kernel(%arg0: i32, %arg1: memref<8x256xi32, #tpu.memory_space<vmem>>, %arg2: memref<1x256xi32, #tpu.memory_space<vmem>>, %arg3: memref<48x21xf32, #tpu.memory_space<vmem>>, %arg4: memref<48x16xf32, #tpu.memory_space<vmem>>, %arg5: memref<16x1xf32, #tpu.memory_space<vmem>>, %arg6: memref<16x256xf32, #tpu.memory_space<vmem>>, %arg7: memref<8x48x256xf32, #tpu.memory_space<vmem>>) attributes {dimension_semantics = [#tpu.dimension_semantics<parallel>], iteration_bounds = array<i64: 1>, scalar_prefetch = 0 : i64, scratch_operands = 1 : i64, tpu.core_type = #tpu.core_type<tc>, window_params = [{transform_indices = @transform_0, window_bounds = array<i64: 8, 256>}, {transform_indices = @transform_1, window_bounds = array<i64: 1, 256>}, {pipeline_mode = #tpu.pipeline_mode<synchronous>, transform_indices = @transform_2, window_bounds = array<i64: 48, 21>}, {pipeline_mode = #tpu.pipeline_mode<synchronous>, transform_indices = @transform_3, window_bounds = array<i64: 48, 16>}, {pipeline_mode = #tpu.pipeline_mode<synchronous>, transform_indices = @transform_4, window_bounds = array<i64: 16, 1>}, {transform_indices = @transform_5, window_bounds = array<i64: 16, 256>}]} {
    %c0 = arith.constant 0 : index
    %c0_0 = arith.constant 0 : index
    %0 = vector.load %arg3[%c0, %c0_0] : memref<48x21xf32, #tpu.memory_space<vmem>>, vector<48x21xf32>
    %c0_1 = arith.constant 0 : index
    %c0_2 = arith.constant 0 : index
    %1 = vector.load %arg4[%c0_1, %c0_2] : memref<48x16xf32, #tpu.memory_space<vmem>>, vector<48x16xf32>
    %c0_3 = arith.constant 0 : index
    %c0_4 = arith.constant 0 : index
    %2 = vector.load %arg2[%c0_3, %c0_4] : memref<1x256xi32, #tpu.memory_space<vmem>>, vector<1x256xi32>
    %c0_5 = arith.constant 0 : index
    %c0_6 = arith.constant 0 : index
    %3 = vector.load %arg5[%c0_5, %c0_6] : memref<16x1xf32, #tpu.memory_space<vmem>>, vector<16x1xf32>
    %4 = vector.shape_cast %3 : vector<16x1xf32> to vector<16x1xf32>
    %5 = vector.broadcast %4 : vector<16x1xf32> to vector<16x256xf32>
    %6 = tpu.iota {dimensions = array<i32: 0>} : vector<21x256xi32>
    %c0_7 = arith.constant 0 : index
    %c0_8 = arith.constant 0 : index
    %7 = vector.load %arg1[%c0_7, %c0_8] : memref<8x256xi32, #tpu.memory_space<vmem>>, vector<1x256xi32>
    %8 = vector.broadcast %7 : vector<1x256xi32> to vector<21x256xi32>
    %9 = arith.cmpi eq, %8, %6 : vector<21x256xi32>
    %10 = arith.extui %9 : vector<21x256xi1> to vector<21x256xi32>
    %11 = arith.sitofp %10 : vector<21x256xi32> to vector<21x256xf32>
    %cst = arith.constant dense<0.000000e+00> : vector<48x256xf32>
    %12 = tpu.matmul %0, %11, %cst {dimension_numbers = #tpu.dot_dimension_numbers<[1], [0], [0], [1], [0, 0, 1, 1], [], []>} : vector<48x21xf32>, vector<21x256xf32>, vector<48x256xf32> -> vector<48x256xf32>
    %c0_9 = arith.constant 0 : index
    %c0_10 = arith.constant 0 : index
    %c0_11 = arith.constant 0 : index
    %13 = vector.load %arg7[%c0_9, %c0_10, %c0_11] : memref<8x48x256xf32, #tpu.memory_space<vmem>>, vector<1x48x256xf32>
    %14 = vector.shape_cast %13 : vector<1x48x256xf32> to vector<48x256xf32>
    %15 = vector.shape_cast %12 : vector<48x256xf32> to vector<1x48x256xf32>
    tpu.vector_store %arg7[%c0_9, %c0_10, %c0_11], %15 {strides = array<i32>} : memref<8x48x256xf32, #tpu.memory_space<vmem>>, vector<1x48x256xf32>,
    %c1 = arith.constant 1 : index
    %c0_12 = arith.constant 0 : index
    %16 = vector.load %arg1[%c1, %c0_12] : memref<8x256xi32, #tpu.memory_space<vmem>>, vector<1x256xi32>
    %17 = vector.broadcast %16 : vector<1x256xi32> to vector<21x256xi32>
    %18 = arith.cmpi eq, %17, %6 : vector<21x256xi32>
    %19 = arith.extui %18 : vector<21x256xi1> to vector<21x256xi32>
    %20 = arith.sitofp %19 : vector<21x256xi32> to vector<21x256xf32>
    %cst_13 = arith.constant dense<0.000000e+00> : vector<48x256xf32>
    %21 = tpu.matmul %0, %20, %cst_13 {dimension_numbers = #tpu.dot_dimension_numbers<[1], [0], [0], [1], [0, 0, 1, 1], [], []>} : vector<48x21xf32>, vector<21x256xf32>, vector<48x256xf32> -> vector<48x256xf32>
    %c1_14 = arith.constant 1 : index
    %c0_15 = arith.constant 0 : index
    %c0_16 = arith.constant 0 : index
    %22 = vector.load %arg7[%c1_14, %c0_15, %c0_16] : memref<8x48x256xf32, #tpu.memory_space<vmem>>, vector<1x48x256xf32>
    %23 = vector.shape_cast %22 : vector<1x48x256xf32> to vector<48x256xf32>
    %24 = vector.shape_cast %21 : vector<48x256xf32> to vector<1x48x256xf32>
    tpu.vector_store %arg7[%c1_14, %c0_15, %c0_16], %24 {strides = array<i32>} : memref<8x48x256xf32, #tpu.memory_space<vmem>>, vector<1x48x256xf32>,
    %c2 = arith.constant 2 : index
    %c0_17 = arith.constant 0 : index
    %25 = vector.load %arg1[%c2, %c0_17] : memref<8x256xi32, #tpu.memory_space<vmem>>, vector<1x256xi32>
    %26 = vector.broadcast %25 : vector<1x256xi32> to vector<21x256xi32>
    %27 = arith.cmpi eq, %26, %6 : vector<21x256xi32>
    %28 = arith.extui %27 : vector<21x256xi1> to vector<21x256xi32>
    %29 = arith.sitofp %28 : vector<21x256xi32> to vector<21x256xf32>
    %cst_18 = arith.constant dense<0.000000e+00> : vector<48x256xf32>
    %30 = tpu.matmul %0, %29, %cst_18 {dimension_numbers = #tpu.dot_dimension_numbers<[1], [0], [0], [1], [0, 0, 1, 1], [], []>} : vector<48x21xf32>, vector<21x256xf32>, vector<48x256xf32> -> vector<48x256xf32>
    %c2_19 = arith.constant 2 : index
    %c0_20 = arith.constant 0 : index
    %c0_21 = arith.constant 0 : index
    %31 = vector.load %arg7[%c2_19, %c0_20, %c0_21] : memref<8x48x256xf32, #tpu.memory_space<vmem>>, vector<1x48x256xf32>
    %32 = vector.shape_cast %31 : vector<1x48x256xf32> to vector<48x256xf32>
    %33 = vector.shape_cast %30 : vector<48x256xf32> to vector<1x48x256xf32>
    tpu.vector_store %arg7[%c2_19, %c0_20, %c0_21], %33 {strides = array<i32>} : memref<8x48x256xf32, #tpu.memory_space<vmem>>, vector<1x48x256xf32>,
    %c3 = arith.constant 3 : index
    %c0_22 = arith.constant 0 : index
    %34 = vector.load %arg1[%c3, %c0_22] : memref<8x256xi32, #tpu.memory_space<vmem>>, vector<1x256xi32>
    %35 = vector.broadcast %34 : vector<1x256xi32> to vector<21x256xi32>
    %36 = arith.cmpi eq, %35, %6 : vector<21x256xi32>
    %37 = arith.extui %36 : vector<21x256xi1> to vector<21x256xi32>
    %38 = arith.sitofp %37 : vector<21x256xi32> to vector<21x256xf32>
    %cst_23 = arith.constant dense<0.000000e+00> : vector<48x256xf32>
    %39 = tpu.matmul %0, %38, %cst_23 {dimension_numbers = #tpu.dot_dimension_numbers<[1], [0], [0], [1], [0, 0, 1, 1], [], []>} : vector<48x21xf32>, vector<21x256xf32>, vector<48x256xf32> -> vector<48x256xf32>
    %c3_24 = arith.constant 3 : index
    %c0_25 = arith.constant 0 : index
    %c0_26 = arith.constant 0 : index
    %40 = vector.load %arg7[%c3_24, %c0_25, %c0_26] : memref<8x48x256xf32, #tpu.memory_space<vmem>>, vector<1x48x256xf32>
    %41 = vector.shape_cast %40 : vector<1x48x256xf32> to vector<48x256xf32>
    %42 = vector.shape_cast %39 : vector<48x256xf32> to vector<1x48x256xf32>
    tpu.vector_store %arg7[%c3_24, %c0_25, %c0_26], %42 {strides = array<i32>} : memref<8x48x256xf32, #tpu.memory_space<vmem>>, vector<1x48x256xf32>,
    %c4 = arith.constant 4 : index
    %c0_27 = arith.constant 0 : index
    %43 = vector.load %arg1[%c4, %c0_27] : memref<8x256xi32, #tpu.memory_space<vmem>>, vector<1x256xi32>
    %44 = vector.broadcast %43 : vector<1x256xi32> to vector<21x256xi32>
    %45 = arith.cmpi eq, %44, %6 : vector<21x256xi32>
    %46 = arith.extui %45 : vector<21x256xi1> to vector<21x256xi32>
    %47 = arith.sitofp %46 : vector<21x256xi32> to vector<21x256xf32>
    %cst_28 = arith.constant dense<0.000000e+00> : vector<48x256xf32>
    %48 = tpu.matmul %0, %47, %cst_28 {dimension_numbers = #tpu.dot_dimension_numbers<[1], [0], [0], [1], [0, 0, 1, 1], [], []>} : vector<48x21xf32>, vector<21x256xf32>, vector<48x256xf32> -> vector<48x256xf32>
    %c4_29 = arith.constant 4 : index
    %c0_30 = arith.constant 0 : index
    %c0_31 = arith.constant 0 : index
    %49 = vector.load %arg7[%c4_29, %c0_30, %c0_31] : memref<8x48x256xf32, #tpu.memory_space<vmem>>, vector<1x48x256xf32>
    %50 = vector.shape_cast %49 : vector<1x48x256xf32> to vector<48x256xf32>
    %51 = vector.shape_cast %48 : vector<48x256xf32> to vector<1x48x256xf32>
    tpu.vector_store %arg7[%c4_29, %c0_30, %c0_31], %51 {strides = array<i32>} : memref<8x48x256xf32, #tpu.memory_space<vmem>>, vector<1x48x256xf32>,
    %c5 = arith.constant 5 : index
    %c0_32 = arith.constant 0 : index
    %52 = vector.load %arg1[%c5, %c0_32] : memref<8x256xi32, #tpu.memory_space<vmem>>, vector<1x256xi32>
    %53 = vector.broadcast %52 : vector<1x256xi32> to vector<21x256xi32>
    %54 = arith.cmpi eq, %53, %6 : vector<21x256xi32>
    %55 = arith.extui %54 : vector<21x256xi1> to vector<21x256xi32>
    %56 = arith.sitofp %55 : vector<21x256xi32> to vector<21x256xf32>
    %cst_33 = arith.constant dense<0.000000e+00> : vector<48x256xf32>
    %57 = tpu.matmul %0, %56, %cst_33 {dimension_numbers = #tpu.dot_dimension_numbers<[1], [0], [0], [1], [0, 0, 1, 1], [], []>} : vector<48x21xf32>, vector<21x256xf32>, vector<48x256xf32> -> vector<48x256xf32>
    %c5_34 = arith.constant 5 : index
    %c0_35 = arith.constant 0 : index
    %c0_36 = arith.constant 0 : index
    %58 = vector.load %arg7[%c5_34, %c0_35, %c0_36] : memref<8x48x256xf32, #tpu.memory_space<vmem>>, vector<1x48x256xf32>
    %59 = vector.shape_cast %58 : vector<1x48x256xf32> to vector<48x256xf32>
    %60 = vector.shape_cast %57 : vector<48x256xf32> to vector<1x48x256xf32>
    tpu.vector_store %arg7[%c5_34, %c0_35, %c0_36], %60 {strides = array<i32>} : memref<8x48x256xf32, #tpu.memory_space<vmem>>, vector<1x48x256xf32>,
    %c6 = arith.constant 6 : index
    %c0_37 = arith.constant 0 : index
    %61 = vector.load %arg1[%c6, %c0_37] : memref<8x256xi32, #tpu.memory_space<vmem>>, vector<1x256xi32>
    %62 = vector.broadcast %61 : vector<1x256xi32> to vector<21x256xi32>
    %63 = arith.cmpi eq, %62, %6 : vector<21x256xi32>
    %64 = arith.extui %63 : vector<21x256xi1> to vector<21x256xi32>
    %65 = arith.sitofp %64 : vector<21x256xi32> to vector<21x256xf32>
    %cst_38 = arith.constant dense<0.000000e+00> : vector<48x256xf32>
    %66 = tpu.matmul %0, %65, %cst_38 {dimension_numbers = #tpu.dot_dimension_numbers<[1], [0], [0], [1], [0, 0, 1, 1], [], []>} : vector<48x21xf32>, vector<21x256xf32>, vector<48x256xf32> -> vector<48x256xf32>
    %c6_39 = arith.constant 6 : index
    %c0_40 = arith.constant 0 : index
    %c0_41 = arith.constant 0 : index
    %67 = vector.load %arg7[%c6_39, %c0_40, %c0_41] : memref<8x48x256xf32, #tpu.memory_space<vmem>>, vector<1x48x256xf32>
    %68 = vector.shape_cast %67 : vector<1x48x256xf32> to vector<48x256xf32>
    %69 = vector.shape_cast %66 : vector<48x256xf32> to vector<1x48x256xf32>
    tpu.vector_store %arg7[%c6_39, %c0_40, %c0_41], %69 {strides = array<i32>} : memref<8x48x256xf32, #tpu.memory_space<vmem>>, vector<1x48x256xf32>,
    %c7 = arith.constant 7 : index
    %c0_42 = arith.constant 0 : index
    %70 = vector.load %arg1[%c7, %c0_42] : memref<8x256xi32, #tpu.memory_space<vmem>>, vector<1x256xi32>
    %71 = vector.broadcast %70 : vector<1x256xi32> to vector<21x256xi32>
    %72 = arith.cmpi eq, %71, %6 : vector<21x256xi32>
    %73 = arith.extui %72 : vector<21x256xi1> to vector<21x256xi32>
    %74 = arith.sitofp %73 : vector<21x256xi32> to vector<21x256xf32>
    %cst_43 = arith.constant dense<0.000000e+00> : vector<48x256xf32>
    %75 = tpu.matmul %0, %74, %cst_43 {dimension_numbers = #tpu.dot_dimension_numbers<[1], [0], [0], [1], [0, 0, 1, 1], [], []>} : vector<48x21xf32>, vector<21x256xf32>, vector<48x256xf32> -> vector<48x256xf32>
    %c7_44 = arith.constant 7 : index
    %c0_45 = arith.constant 0 : index
    %c0_46 = arith.constant 0 : index
    %76 = vector.load %arg7[%c7_44, %c0_45, %c0_46] : memref<8x48x256xf32, #tpu.memory_space<vmem>>, vector<1x48x256xf32>
    %77 = vector.shape_cast %76 : vector<1x48x256xf32> to vector<48x256xf32>
    %78 = vector.shape_cast %75 : vector<48x256xf32> to vector<1x48x256xf32>
    tpu.vector_store %arg7[%c7_44, %c0_45, %c0_46], %78 {strides = array<i32>} : memref<8x48x256xf32, #tpu.memory_space<vmem>>, vector<1x48x256xf32>,
    %cst_47 = arith.constant 0.000000e+00 : f32
    %79 = vector.broadcast %cst_47 : f32 to vector<16x256xf32>
    %c0_48 = arith.constant 0 : index
    %c0_49 = arith.constant 0 : index
    %c0_50 = arith.constant 0 : index
    %80 = vector.load %arg7[%c0_48, %c0_49, %c0_50] : memref<8x48x256xf32, #tpu.memory_space<vmem>>, vector<1x48x256xf32>
    %81 = vector.shape_cast %80 : vector<1x48x256xf32> to vector<48x256xf32>
    %cst_51 = arith.constant dense<0.000000e+00> : vector<48x256xf32>
    %82 = tpu.matmul %1, %79, %cst_51 {dimension_numbers = #tpu.dot_dimension_numbers<[1], [0], [0], [1], [0, 0, 1, 1], [], []>} : vector<48x16xf32>, vector<16x256xf32>, vector<48x256xf32> -> vector<48x256xf32>
    %83 = vector.extract_strided_slice %81 {offsets = [0, 0], sizes = [32, 256], strides = [1, 1]} : vector<48x256xf32> to vector<32x256xf32>
    %84 = vector.extract_strided_slice %82 {offsets = [0, 0], sizes = [32, 256], strides = [1, 1]} : vector<48x256xf32> to vector<32x256xf32>
    %85 = arith.addf %83, %84 : vector<32x256xf32>
    %cst_52 = arith.constant 5.000000e-01 : f32
    %86 = vector.broadcast %cst_52 : f32 to vector<32x256xf32>
    %87 = arith.mulf %86, %85 : vector<32x256xf32>
    %88 = math.tanh %87 : vector<32x256xf32>
    %cst_53 = arith.constant 5.000000e-01 : f32
    %89 = vector.broadcast %cst_53 : f32 to vector<32x256xf32>
    %90 = arith.mulf %89, %88 : vector<32x256xf32>
    %cst_54 = arith.constant 5.000000e-01 : f32
    %91 = vector.broadcast %cst_54 : f32 to vector<32x256xf32>
    %92 = arith.addf %90, %91 : vector<32x256xf32>
    %93 = vector.extract_strided_slice %92 {offsets = [0, 0], sizes = [16, 256], strides = [1, 1]} : vector<32x256xf32> to vector<16x256xf32>
    %94 = vector.extract_strided_slice %92 {offsets = [16, 0], sizes = [16, 256], strides = [1, 1]} : vector<32x256xf32> to vector<16x256xf32>
    %95 = vector.extract_strided_slice %81 {offsets = [32, 0], sizes = [16, 256], strides = [1, 1]} : vector<48x256xf32> to vector<16x256xf32>
    %96 = vector.extract_strided_slice %82 {offsets = [32, 0], sizes = [16, 256], strides = [1, 1]} : vector<48x256xf32> to vector<16x256xf32>
    %97 = arith.addf %96, %5 : vector<16x256xf32>
    %98 = arith.mulf %93, %97 : vector<16x256xf32>
    %99 = arith.addf %95, %98 : vector<16x256xf32>
    %100 = math.tanh %99 : vector<16x256xf32>
    %101 = arith.subf %79, %100 : vector<16x256xf32>
    %102 = arith.mulf %94, %101 : vector<16x256xf32>
    %103 = arith.addf %100, %102 : vector<16x256xf32>
    %c0_i32 = arith.constant 0 : i32
    %104 = vector.broadcast %c0_i32 : i32 to vector<1x256xi32>
    %105 = arith.cmpi sgt, %2, %104 : vector<1x256xi32>
    %106 = vector.shape_cast %105 : vector<1x256xi1> to vector<1x256xi1>
    %107 = vector.broadcast %106 : vector<1x256xi1> to vector<16x256xi1>
    %108 = arith.select %107, %103, %79 : vector<16x256xi1>, vector<16x256xf32>
    %c1_55 = arith.constant 1 : index
    %c0_56 = arith.constant 0 : index
    %c0_57 = arith.constant 0 : index
    %109 = vector.load %arg7[%c1_55, %c0_56, %c0_57] : memref<8x48x256xf32, #tpu.memory_space<vmem>>, vector<1x48x256xf32>
    %110 = vector.shape_cast %109 : vector<1x48x256xf32> to vector<48x256xf32>
    %cst_58 = arith.constant dense<0.000000e+00> : vector<48x256xf32>
    %111 = tpu.matmul %1, %108, %cst_58 {dimension_numbers = #tpu.dot_dimension_numbers<[1], [0], [0], [1], [0, 0, 1, 1], [], []>} : vector<48x16xf32>, vector<16x256xf32>, vector<48x256xf32> -> vector<48x256xf32>
    %112 = vector.extract_strided_slice %110 {offsets = [0, 0], sizes = [32, 256], strides = [1, 1]} : vector<48x256xf32> to vector<32x256xf32>
    %113 = vector.extract_strided_slice %111 {offsets = [0, 0], sizes = [32, 256], strides = [1, 1]} : vector<48x256xf32> to vector<32x256xf32>
    %114 = arith.addf %112, %113 : vector<32x256xf32>
    %cst_59 = arith.constant 5.000000e-01 : f32
    %115 = vector.broadcast %cst_59 : f32 to vector<32x256xf32>
    %116 = arith.mulf %115, %114 : vector<32x256xf32>
    %117 = math.tanh %116 : vector<32x256xf32>
    %cst_60 = arith.constant 5.000000e-01 : f32
    %118 = vector.broadcast %cst_60 : f32 to vector<32x256xf32>
    %119 = arith.mulf %118, %117 : vector<32x256xf32>
    %cst_61 = arith.constant 5.000000e-01 : f32
    %120 = vector.broadcast %cst_61 : f32 to vector<32x256xf32>
    %121 = arith.addf %119, %120 : vector<32x256xf32>
    %122 = vector.extract_strided_slice %121 {offsets = [0, 0], sizes = [16, 256], strides = [1, 1]} : vector<32x256xf32> to vector<16x256xf32>
    %123 = vector.extract_strided_slice %121 {offsets = [16, 0], sizes = [16, 256], strides = [1, 1]} : vector<32x256xf32> to vector<16x256xf32>
    %124 = vector.extract_strided_slice %110 {offsets = [32, 0], sizes = [16, 256], strides = [1, 1]} : vector<48x256xf32> to vector<16x256xf32>
    %125 = vector.extract_strided_slice %111 {offsets = [32, 0], sizes = [16, 256], strides = [1, 1]} : vector<48x256xf32> to vector<16x256xf32>
    %126 = arith.addf %125, %5 : vector<16x256xf32>
    %127 = arith.mulf %122, %126 : vector<16x256xf32>
    %128 = arith.addf %124, %127 : vector<16x256xf32>
    %129 = math.tanh %128 : vector<16x256xf32>
    %130 = arith.subf %108, %129 : vector<16x256xf32>
    %131 = arith.mulf %123, %130 : vector<16x256xf32>
    %132 = arith.addf %129, %131 : vector<16x256xf32>
    %c1_i32 = arith.constant 1 : i32
    %133 = vector.broadcast %c1_i32 : i32 to vector<1x256xi32>
    %134 = arith.cmpi sgt, %2, %133 : vector<1x256xi32>
    %135 = vector.shape_cast %134 : vector<1x256xi1> to vector<1x256xi1>
    %136 = vector.broadcast %135 : vector<1x256xi1> to vector<16x256xi1>
    %137 = arith.select %136, %132, %108 : vector<16x256xi1>, vector<16x256xf32>
    %c2_62 = arith.constant 2 : index
    %c0_63 = arith.constant 0 : index
    %c0_64 = arith.constant 0 : index
    %138 = vector.load %arg7[%c2_62, %c0_63, %c0_64] : memref<8x48x256xf32, #tpu.memory_space<vmem>>, vector<1x48x256xf32>
    %139 = vector.shape_cast %138 : vector<1x48x256xf32> to vector<48x256xf32>
    %cst_65 = arith.constant dense<0.000000e+00> : vector<48x256xf32>
    %140 = tpu.matmul %1, %137, %cst_65 {dimension_numbers = #tpu.dot_dimension_numbers<[1], [0], [0], [1], [0, 0, 1, 1], [], []>} : vector<48x16xf32>, vector<16x256xf32>, vector<48x256xf32> -> vector<48x256xf32>
    %141 = vector.extract_strided_slice %139 {offsets = [0, 0], sizes = [32, 256], strides = [1, 1]} : vector<48x256xf32> to vector<32x256xf32>
    %142 = vector.extract_strided_slice %140 {offsets = [0, 0], sizes = [32, 256], strides = [1, 1]} : vector<48x256xf32> to vector<32x256xf32>
    %143 = arith.addf %141, %142 : vector<32x256xf32>
    %cst_66 = arith.constant 5.000000e-01 : f32
    %144 = vector.broadcast %cst_66 : f32 to vector<32x256xf32>
    %145 = arith.mulf %144, %143 : vector<32x256xf32>
    %146 = math.tanh %145 : vector<32x256xf32>
    %cst_67 = arith.constant 5.000000e-01 : f32
    %147 = vector.broadcast %cst_67 : f32 to vector<32x256xf32>
    %148 = arith.mulf %147, %146 : vector<32x256xf32>
    %cst_68 = arith.constant 5.000000e-01 : f32
    %149 = vector.broadcast %cst_68 : f32 to vector<32x256xf32>
    %150 = arith.addf %148, %149 : vector<32x256xf32>
    %151 = vector.extract_strided_slice %150 {offsets = [0, 0], sizes = [16, 256], strides = [1, 1]} : vector<32x256xf32> to vector<16x256xf32>
    %152 = vector.extract_strided_slice %150 {offsets = [16, 0], sizes = [16, 256], strides = [1, 1]} : vector<32x256xf32> to vector<16x256xf32>
    %153 = vector.extract_strided_slice %139 {offsets = [32, 0], sizes = [16, 256], strides = [1, 1]} : vector<48x256xf32> to vector<16x256xf32>
    %154 = vector.extract_strided_slice %140 {offsets = [32, 0], sizes = [16, 256], strides = [1, 1]} : vector<48x256xf32> to vector<16x256xf32>
    %155 = arith.addf %154, %5 : vector<16x256xf32>
    %156 = arith.mulf %151, %155 : vector<16x256xf32>
    %157 = arith.addf %153, %156 : vector<16x256xf32>
    %158 = math.tanh %157 : vector<16x256xf32>
    %159 = arith.subf %137, %158 : vector<16x256xf32>
    %160 = arith.mulf %152, %159 : vector<16x256xf32>
    %161 = arith.addf %158, %160 : vector<16x256xf32>
    %c2_i32 = arith.constant 2 : i32
    %162 = vector.broadcast %c2_i32 : i32 to vector<1x256xi32>
    %163 = arith.cmpi sgt, %2, %162 : vector<1x256xi32>
    %164 = vector.shape_cast %163 : vector<1x256xi1> to vector<1x256xi1>
    %165 = vector.broadcast %164 : vector<1x256xi1> to vector<16x256xi1>
    %166 = arith.select %165, %161, %137 : vector<16x256xi1>, vector<16x256xf32>
    %c3_69 = arith.constant 3 : index
    %c0_70 = arith.constant 0 : index
    %c0_71 = arith.constant 0 : index
    %167 = vector.load %arg7[%c3_69, %c0_70, %c0_71] : memref<8x48x256xf32, #tpu.memory_space<vmem>>, vector<1x48x256xf32>
    %168 = vector.shape_cast %167 : vector<1x48x256xf32> to vector<48x256xf32>
    %cst_72 = arith.constant dense<0.000000e+00> : vector<48x256xf32>
    %169 = tpu.matmul %1, %166, %cst_72 {dimension_numbers = #tpu.dot_dimension_numbers<[1], [0], [0], [1], [0, 0, 1, 1], [], []>} : vector<48x16xf32>, vector<16x256xf32>, vector<48x256xf32> -> vector<48x256xf32>
    %170 = vector.extract_strided_slice %168 {offsets = [0, 0], sizes = [32, 256], strides = [1, 1]} : vector<48x256xf32> to vector<32x256xf32>
    %171 = vector.extract_strided_slice %169 {offsets = [0, 0], sizes = [32, 256], strides = [1, 1]} : vector<48x256xf32> to vector<32x256xf32>
    %172 = arith.addf %170, %171 : vector<32x256xf32>
    %cst_73 = arith.constant 5.000000e-01 : f32
    %173 = vector.broadcast %cst_73 : f32 to vector<32x256xf32>
    %174 = arith.mulf %173, %172 : vector<32x256xf32>
    %175 = math.tanh %174 : vector<32x256xf32>
    %cst_74 = arith.constant 5.000000e-01 : f32
    %176 = vector.broadcast %cst_74 : f32 to vector<32x256xf32>
    %177 = arith.mulf %176, %175 : vector<32x256xf32>
    %cst_75 = arith.constant 5.000000e-01 : f32
    %178 = vector.broadcast %cst_75 : f32 to vector<32x256xf32>
    %179 = arith.addf %177, %178 : vector<32x256xf32>
    %180 = vector.extract_strided_slice %179 {offsets = [0, 0], sizes = [16, 256], strides = [1, 1]} : vector<32x256xf32> to vector<16x256xf32>
    %181 = vector.extract_strided_slice %179 {offsets = [16, 0], sizes = [16, 256], strides = [1, 1]} : vector<32x256xf32> to vector<16x256xf32>
    %182 = vector.extract_strided_slice %168 {offsets = [32, 0], sizes = [16, 256], strides = [1, 1]} : vector<48x256xf32> to vector<16x256xf32>
    %183 = vector.extract_strided_slice %169 {offsets = [32, 0], sizes = [16, 256], strides = [1, 1]} : vector<48x256xf32> to vector<16x256xf32>
    %184 = arith.addf %183, %5 : vector<16x256xf32>
    %185 = arith.mulf %180, %184 : vector<16x256xf32>
    %186 = arith.addf %182, %185 : vector<16x256xf32>
    %187 = math.tanh %186 : vector<16x256xf32>
    %188 = arith.subf %166, %187 : vector<16x256xf32>
    %189 = arith.mulf %181, %188 : vector<16x256xf32>
    %190 = arith.addf %187, %189 : vector<16x256xf32>
    %c3_i32 = arith.constant 3 : i32
    %191 = vector.broadcast %c3_i32 : i32 to vector<1x256xi32>
    %192 = arith.cmpi sgt, %2, %191 : vector<1x256xi32>
    %193 = vector.shape_cast %192 : vector<1x256xi1> to vector<1x256xi1>
    %194 = vector.broadcast %193 : vector<1x256xi1> to vector<16x256xi1>
    %195 = arith.select %194, %190, %166 : vector<16x256xi1>, vector<16x256xf32>
    %c4_76 = arith.constant 4 : index
    %c0_77 = arith.constant 0 : index
    %c0_78 = arith.constant 0 : index
    %196 = vector.load %arg7[%c4_76, %c0_77, %c0_78] : memref<8x48x256xf32, #tpu.memory_space<vmem>>, vector<1x48x256xf32>
    %197 = vector.shape_cast %196 : vector<1x48x256xf32> to vector<48x256xf32>
    %cst_79 = arith.constant dense<0.000000e+00> : vector<48x256xf32>
    %198 = tpu.matmul %1, %195, %cst_79 {dimension_numbers = #tpu.dot_dimension_numbers<[1], [0], [0], [1], [0, 0, 1, 1], [], []>} : vector<48x16xf32>, vector<16x256xf32>, vector<48x256xf32> -> vector<48x256xf32>
    %199 = vector.extract_strided_slice %197 {offsets = [0, 0], sizes = [32, 256], strides = [1, 1]} : vector<48x256xf32> to vector<32x256xf32>
    %200 = vector.extract_strided_slice %198 {offsets = [0, 0], sizes = [32, 256], strides = [1, 1]} : vector<48x256xf32> to vector<32x256xf32>
    %201 = arith.addf %199, %200 : vector<32x256xf32>
    %cst_80 = arith.constant 5.000000e-01 : f32
    %202 = vector.broadcast %cst_80 : f32 to vector<32x256xf32>
    %203 = arith.mulf %202, %201 : vector<32x256xf32>
    %204 = math.tanh %203 : vector<32x256xf32>
    %cst_81 = arith.constant 5.000000e-01 : f32
    %205 = vector.broadcast %cst_81 : f32 to vector<32x256xf32>
    %206 = arith.mulf %205, %204 : vector<32x256xf32>
    %cst_82 = arith.constant 5.000000e-01 : f32
    %207 = vector.broadcast %cst_82 : f32 to vector<32x256xf32>
    %208 = arith.addf %206, %207 : vector<32x256xf32>
    %209 = vector.extract_strided_slice %208 {offsets = [0, 0], sizes = [16, 256], strides = [1, 1]} : vector<32x256xf32> to vector<16x256xf32>
    %210 = vector.extract_strided_slice %208 {offsets = [16, 0], sizes = [16, 256], strides = [1, 1]} : vector<32x256xf32> to vector<16x256xf32>
    %211 = vector.extract_strided_slice %197 {offsets = [32, 0], sizes = [16, 256], strides = [1, 1]} : vector<48x256xf32> to vector<16x256xf32>
    %212 = vector.extract_strided_slice %198 {offsets = [32, 0], sizes = [16, 256], strides = [1, 1]} : vector<48x256xf32> to vector<16x256xf32>
    %213 = arith.addf %212, %5 : vector<16x256xf32>
    %214 = arith.mulf %209, %213 : vector<16x256xf32>
    %215 = arith.addf %211, %214 : vector<16x256xf32>
    %216 = math.tanh %215 : vector<16x256xf32>
    %217 = arith.subf %195, %216 : vector<16x256xf32>
    %218 = arith.mulf %210, %217 : vector<16x256xf32>
    %219 = arith.addf %216, %218 : vector<16x256xf32>
    %c4_i32 = arith.constant 4 : i32
    %220 = vector.broadcast %c4_i32 : i32 to vector<1x256xi32>
    %221 = arith.cmpi sgt, %2, %220 : vector<1x256xi32>
    %222 = vector.shape_cast %221 : vector<1x256xi1> to vector<1x256xi1>
    %223 = vector.broadcast %222 : vector<1x256xi1> to vector<16x256xi1>
    %224 = arith.select %223, %219, %195 : vector<16x256xi1>, vector<16x256xf32>
    %c5_83 = arith.constant 5 : index
    %c0_84 = arith.constant 0 : index
    %c0_85 = arith.constant 0 : index
    %225 = vector.load %arg7[%c5_83, %c0_84, %c0_85] : memref<8x48x256xf32, #tpu.memory_space<vmem>>, vector<1x48x256xf32>
    %226 = vector.shape_cast %225 : vector<1x48x256xf32> to vector<48x256xf32>
    %cst_86 = arith.constant dense<0.000000e+00> : vector<48x256xf32>
    %227 = tpu.matmul %1, %224, %cst_86 {dimension_numbers = #tpu.dot_dimension_numbers<[1], [0], [0], [1], [0, 0, 1, 1], [], []>} : vector<48x16xf32>, vector<16x256xf32>, vector<48x256xf32> -> vector<48x256xf32>
    %228 = vector.extract_strided_slice %226 {offsets = [0, 0], sizes = [32, 256], strides = [1, 1]} : vector<48x256xf32> to vector<32x256xf32>
    %229 = vector.extract_strided_slice %227 {offsets = [0, 0], sizes = [32, 256], strides = [1, 1]} : vector<48x256xf32> to vector<32x256xf32>
    %230 = arith.addf %228, %229 : vector<32x256xf32>
    %cst_87 = arith.constant 5.000000e-01 : f32
    %231 = vector.broadcast %cst_87 : f32 to vector<32x256xf32>
    %232 = arith.mulf %231, %230 : vector<32x256xf32>
    %233 = math.tanh %232 : vector<32x256xf32>
    %cst_88 = arith.constant 5.000000e-01 : f32
    %234 = vector.broadcast %cst_88 : f32 to vector<32x256xf32>
    %235 = arith.mulf %234, %233 : vector<32x256xf32>
    %cst_89 = arith.constant 5.000000e-01 : f32
    %236 = vector.broadcast %cst_89 : f32 to vector<32x256xf32>
    %237 = arith.addf %235, %236 : vector<32x256xf32>
    %238 = vector.extract_strided_slice %237 {offsets = [0, 0], sizes = [16, 256], strides = [1, 1]} : vector<32x256xf32> to vector<16x256xf32>
    %239 = vector.extract_strided_slice %237 {offsets = [16, 0], sizes = [16, 256], strides = [1, 1]} : vector<32x256xf32> to vector<16x256xf32>
    %240 = vector.extract_strided_slice %226 {offsets = [32, 0], sizes = [16, 256], strides = [1, 1]} : vector<48x256xf32> to vector<16x256xf32>
    %241 = vector.extract_strided_slice %227 {offsets = [32, 0], sizes = [16, 256], strides = [1, 1]} : vector<48x256xf32> to vector<16x256xf32>
    %242 = arith.addf %241, %5 : vector<16x256xf32>
    %243 = arith.mulf %238, %242 : vector<16x256xf32>
    %244 = arith.addf %240, %243 : vector<16x256xf32>
    %245 = math.tanh %244 : vector<16x256xf32>
    %246 = arith.subf %224, %245 : vector<16x256xf32>
    %247 = arith.mulf %239, %246 : vector<16x256xf32>
    %248 = arith.addf %245, %247 : vector<16x256xf32>
    %c5_i32 = arith.constant 5 : i32
    %249 = vector.broadcast %c5_i32 : i32 to vector<1x256xi32>
    %250 = arith.cmpi sgt, %2, %249 : vector<1x256xi32>
    %251 = vector.shape_cast %250 : vector<1x256xi1> to vector<1x256xi1>
    %252 = vector.broadcast %251 : vector<1x256xi1> to vector<16x256xi1>
    %253 = arith.select %252, %248, %224 : vector<16x256xi1>, vector<16x256xf32>
    %c6_90 = arith.constant 6 : index
    %c0_91 = arith.constant 0 : index
    %c0_92 = arith.constant 0 : index
    %254 = vector.load %arg7[%c6_90, %c0_91, %c0_92] : memref<8x48x256xf32, #tpu.memory_space<vmem>>, vector<1x48x256xf32>
    %255 = vector.shape_cast %254 : vector<1x48x256xf32> to vector<48x256xf32>
    %cst_93 = arith.constant dense<0.000000e+00> : vector<48x256xf32>
    %256 = tpu.matmul %1, %253, %cst_93 {dimension_numbers = #tpu.dot_dimension_numbers<[1], [0], [0], [1], [0, 0, 1, 1], [], []>} : vector<48x16xf32>, vector<16x256xf32>, vector<48x256xf32> -> vector<48x256xf32>
    %257 = vector.extract_strided_slice %255 {offsets = [0, 0], sizes = [32, 256], strides = [1, 1]} : vector<48x256xf32> to vector<32x256xf32>
    %258 = vector.extract_strided_slice %256 {offsets = [0, 0], sizes = [32, 256], strides = [1, 1]} : vector<48x256xf32> to vector<32x256xf32>
    %259 = arith.addf %257, %258 : vector<32x256xf32>
    %cst_94 = arith.constant 5.000000e-01 : f32
    %260 = vector.broadcast %cst_94 : f32 to vector<32x256xf32>
    %261 = arith.mulf %260, %259 : vector<32x256xf32>
    %262 = math.tanh %261 : vector<32x256xf32>
    %cst_95 = arith.constant 5.000000e-01 : f32
    %263 = vector.broadcast %cst_95 : f32 to vector<32x256xf32>
    %264 = arith.mulf %263, %262 : vector<32x256xf32>
    %cst_96 = arith.constant 5.000000e-01 : f32
    %265 = vector.broadcast %cst_96 : f32 to vector<32x256xf32>
    %266 = arith.addf %264, %265 : vector<32x256xf32>
    %267 = vector.extract_strided_slice %266 {offsets = [0, 0], sizes = [16, 256], strides = [1, 1]} : vector<32x256xf32> to vector<16x256xf32>
    %268 = vector.extract_strided_slice %266 {offsets = [16, 0], sizes = [16, 256], strides = [1, 1]} : vector<32x256xf32> to vector<16x256xf32>
    %269 = vector.extract_strided_slice %255 {offsets = [32, 0], sizes = [16, 256], strides = [1, 1]} : vector<48x256xf32> to vector<16x256xf32>
    %270 = vector.extract_strided_slice %256 {offsets = [32, 0], sizes = [16, 256], strides = [1, 1]} : vector<48x256xf32> to vector<16x256xf32>
    %271 = arith.addf %270, %5 : vector<16x256xf32>
    %272 = arith.mulf %267, %271 : vector<16x256xf32>
    %273 = arith.addf %269, %272 : vector<16x256xf32>
    %274 = math.tanh %273 : vector<16x256xf32>
    %275 = arith.subf %253, %274 : vector<16x256xf32>
    %276 = arith.mulf %268, %275 : vector<16x256xf32>
    %277 = arith.addf %274, %276 : vector<16x256xf32>
    %c6_i32 = arith.constant 6 : i32
    %278 = vector.broadcast %c6_i32 : i32 to vector<1x256xi32>
    %279 = arith.cmpi sgt, %2, %278 : vector<1x256xi32>
    %280 = vector.shape_cast %279 : vector<1x256xi1> to vector<1x256xi1>
    %281 = vector.broadcast %280 : vector<1x256xi1> to vector<16x256xi1>
    %282 = arith.select %281, %277, %253 : vector<16x256xi1>, vector<16x256xf32>
    %c7_97 = arith.constant 7 : index
    %c0_98 = arith.constant 0 : index
    %c0_99 = arith.constant 0 : index
    %283 = vector.load %arg7[%c7_97, %c0_98, %c0_99] : memref<8x48x256xf32, #tpu.memory_space<vmem>>, vector<1x48x256xf32>
    %284 = vector.shape_cast %283 : vector<1x48x256xf32> to vector<48x256xf32>
    %cst_100 = arith.constant dense<0.000000e+00> : vector<48x256xf32>
    %285 = tpu.matmul %1, %282, %cst_100 {dimension_numbers = #tpu.dot_dimension_numbers<[1], [0], [0], [1], [0, 0, 1, 1], [], []>} : vector<48x16xf32>, vector<16x256xf32>, vector<48x256xf32> -> vector<48x256xf32>
    %286 = vector.extract_strided_slice %284 {offsets = [0, 0], sizes = [32, 256], strides = [1, 1]} : vector<48x256xf32> to vector<32x256xf32>
    %287 = vector.extract_strided_slice %285 {offsets = [0, 0], sizes = [32, 256], strides = [1, 1]} : vector<48x256xf32> to vector<32x256xf32>
    %288 = arith.addf %286, %287 : vector<32x256xf32>
    %cst_101 = arith.constant 5.000000e-01 : f32
    %289 = vector.broadcast %cst_101 : f32 to vector<32x256xf32>
    %290 = arith.mulf %289, %288 : vector<32x256xf32>
    %291 = math.tanh %290 : vector<32x256xf32>
    %cst_102 = arith.constant 5.000000e-01 : f32
    %292 = vector.broadcast %cst_102 : f32 to vector<32x256xf32>
    %293 = arith.mulf %292, %291 : vector<32x256xf32>
    %cst_103 = arith.constant 5.000000e-01 : f32
    %294 = vector.broadcast %cst_103 : f32 to vector<32x256xf32>
    %295 = arith.addf %293, %294 : vector<32x256xf32>
    %296 = vector.extract_strided_slice %295 {offsets = [0, 0], sizes = [16, 256], strides = [1, 1]} : vector<32x256xf32> to vector<16x256xf32>
    %297 = vector.extract_strided_slice %295 {offsets = [16, 0], sizes = [16, 256], strides = [1, 1]} : vector<32x256xf32> to vector<16x256xf32>
    %298 = vector.extract_strided_slice %284 {offsets = [32, 0], sizes = [16, 256], strides = [1, 1]} : vector<48x256xf32> to vector<16x256xf32>
    %299 = vector.extract_strided_slice %285 {offsets = [32, 0], sizes = [16, 256], strides = [1, 1]} : vector<48x256xf32> to vector<16x256xf32>
    %300 = arith.addf %299, %5 : vector<16x256xf32>
    %301 = arith.mulf %296, %300 : vector<16x256xf32>
    %302 = arith.addf %298, %301 : vector<16x256xf32>
    %303 = math.tanh %302 : vector<16x256xf32>
    %304 = arith.subf %282, %303 : vector<16x256xf32>
    %305 = arith.mulf %297, %304 : vector<16x256xf32>
    %306 = arith.addf %303, %305 : vector<16x256xf32>
    %c7_i32 = arith.constant 7 : i32
    %307 = vector.broadcast %c7_i32 : i32 to vector<1x256xi32>
    %308 = arith.cmpi sgt, %2, %307 : vector<1x256xi32>
    %309 = vector.shape_cast %308 : vector<1x256xi1> to vector<1x256xi1>
    %310 = vector.broadcast %309 : vector<1x256xi1> to vector<16x256xi1>
    %311 = arith.select %310, %306, %282 : vector<16x256xi1>, vector<16x256xf32>
    %c0_104 = arith.constant 0 : index
    %c0_105 = arith.constant 0 : index
    %312 = vector.load %arg6[%c0_104, %c0_105] : memref<16x256xf32, #tpu.memory_space<vmem>>, vector<16x256xf32>
    tpu.vector_store %arg6[%c0_104, %c0_105], %311 {strides = array<i32>} : memref<16x256xf32, #tpu.memory_space<vmem>>, vector<16x256xf32>,
    return
  }
  func.func @transform_0(%arg0: i32) -> (i32, i32) {
    %c0_i32 = arith.constant 0 : i32
    %c0_i32_0 = arith.constant 0 : i32
    return %c0_i32, %arg0 : i32, i32
  }
  func.func @transform_1(%arg0: i32) -> (i32, i32) {
    %c0_i32 = arith.constant 0 : i32
    %c0_i32_0 = arith.constant 0 : i32
    return %c0_i32, %arg0 : i32, i32
  }
  func.func @transform_2(%arg0: i32) -> (i32, i32) {
    %c0_i32 = arith.constant 0 : i32
    %c0_i32_0 = arith.constant 0 : i32
    %c0_i32_1 = arith.constant 0 : i32
    return %c0_i32, %c0_i32_0 : i32, i32
  }
  func.func @transform_3(%arg0: i32) -> (i32, i32) {
    %c0_i32 = arith.constant 0 : i32
    %c0_i32_0 = arith.constant 0 : i32
    %c0_i32_1 = arith.constant 0 : i32
    return %c0_i32, %c0_i32_0 : i32, i32
  }
  func.func @transform_4(%arg0: i32) -> (i32, i32) {
    %c0_i32 = arith.constant 0 : i32
    %c0_i32_0 = arith.constant 0 : i32
    %c0_i32_1 = arith.constant 0 : i32
    return %c0_i32, %c0_i32_0 : i32, i32
  }
  func.func @transform_5(%arg0: i32) -> (i32, i32) {
    %c0_i32 = arith.constant 0 : i32
    %c0_i32_0 = arith.constant 0 : i32
    return %c0_i32, %arg0 : i32, i32
  }
}

</mosaic_0001>

<llo_original>
// kernel: tpu_custom_call.1
$region0: #{tpu_custom_call.1}
  #allocation0 [shape = 'u32[]', space=smem, size = 0x4, offset = 0x4, fixed_abs, tag = 'smem constant byte address 0x4 - core index']
  #allocation1 [shape = 'u32[144,128]{1,0:T(1,128)}', space=vmem, size = 0x12000, scoped, tag = 'internal scratch']
  #allocation2 [shape = 'f32[8,48,256]{2,1,0:T(8,128)}', space=vmem, size = 0x60000, scoped, tag = 'scratch operand']
  %s0 = inlined_call_operand.vmem [shape: s32[8,256], index: 0, kind: input, shape index: {}]
  %s1 = inlined_call_operand.vmem [shape: s32[1,256], index: 1, kind: input, shape index: {}]
  %s2 = inlined_call_operand.vmem [shape: f32[48,21], index: 2, kind: input, shape index: {}]
  %s3 = inlined_call_operand.vmem [shape: f32[48,16], index: 3, kind: input, shape index: {}]
  %s4 = inlined_call_operand.vmem [shape: f32[16,1], index: 4, kind: input, shape index: {}]
  %s5 = inlined_call_operand.hbm [shape: f32[16,256], index: 5, kind: output, shape index: {}]
  %s6 = sld [smem:[#allocation0]]
  $region30: #{tpu_custom_call.1} parent=0
    _
  %s8 = ssub.s32 1, %s6
  %s9 = scalar_select 0, %s8, %s6
  $region1: #{tpu_custom_call.1} parent=0
    #allocation3 [shape = 'u8[16384]{0}', space=vmem, size = 0x4000, scoped, tag = 'output window, operand 0, single buffered']
    #allocation4 [shape = 's32[1]{0}', space=sflag, size = 0x4, scoped, tag = 'scoped memory for tpu_custom_call.1']
    %10 = vsyncpa [#allocation4], 0
    // Predicated region
    $region2: #{tpu_custom_call.1} parent=1 // pred_check
      _
    $region3: #{tpu_custom_call.1} parent=1 // pred_check_branch
      %12 = sbr.rel (0) target = $region5
    $region4: #{tpu_custom_call.1} parent=1 // pred_region
      _
    $region5: #{tpu_custom_call.1} parent=1 // pred_fallthru
      _
    // Predicated region
    $region6: #{tpu_custom_call.1} parent=1 // pred_check
      _
    $region7: #{tpu_custom_call.1} parent=1 // pred_check_branch
      %14 = sbr.rel (0) target = $region9
    $region8: #{tpu_custom_call.1} parent=1 // pred_region
      _
    $region9: #{tpu_custom_call.1} parent=1 // pred_fallthru
      _
    // Predicated region
    $region10: #{tpu_custom_call.1} parent=1 // pred_check
      _
    $region11: #{tpu_custom_call.1} parent=1 // pred_check_branch
      %16 = sbr.rel (0) target = $region13
    $region12: #{tpu_custom_call.1} parent=1 // pred_region
      _
    $region13: #{tpu_custom_call.1} parent=1 // pred_fallthru
      _
    // Predicated region
    $region14: #{tpu_custom_call.1} parent=1 // pred_check
      _
    $region15: #{tpu_custom_call.1} parent=1 // pred_check_branch
      %18 = sbr.rel (0) target = $region17
    $region16: #{tpu_custom_call.1} parent=1 // pred_region
      _
    $region17: #{tpu_custom_call.1} parent=1 // pred_fallthru
      _
    // Predicated region
    $region18: #{tpu_custom_call.1} parent=1 // pred_check
      _
    $region19: #{tpu_custom_call.1} parent=1 // pred_check_branch
      %20 = sbr.rel (0) target = $region21
    $region20: #{tpu_custom_call.1} parent=1 // pred_region
      _
    $region21: #{tpu_custom_call.1} parent=1 // pred_fallthru
      _
    %v21 = vld [vmem:[%s2] sm:$0xff]
    %v22 = vld [vmem:[%s2 + $0x8] sm:$0xff]
    %v23 = vld [vmem:[%s2 + $0x10] sm:$0xff]
    %v24 = vld [vmem:[%s2 + $0x18] sm:$0xff]
    %v25 = vld [vmem:[%s2 + $0x20] sm:$0xff]
    %v26 = vld [vmem:[%s2 + $0x28] sm:$0xff]
    %v27 = vld [vmem:[%s3] sm:$0xff]
    %v28 = vld [vmem:[%s3 + $0x8] sm:$0xff]
    %v29 = vld [vmem:[%s3 + $0x10] sm:$0xff]
    %v30 = vld [vmem:[%s3 + $0x18] sm:$0xff]
    %v31 = vld [vmem:[%s3 + $0x20] sm:$0xff]
    %v32 = vld [vmem:[%s3 + $0x28] sm:$0xff]
    %v33 = vld [vmem:[%s1] sm:$0x3]
    %v34 = vld [vmem:[%s4] sm:$0xff]
    %v35 = vld [vmem:[%s4 + $0x8] sm:$0xff]
    %37 = vset.pattern.permute.xlu0 0
    %38 = vperm.xlu0 %37, %v34
    %v39 = vpop.permute.xlu0 %38
    %42 = vset.pattern.permute.xlu0 0
    %43 = vperm.xlu0 %42, %v35
    %v44 = vpop.permute.xlu0 %43
    %v46 = vlaneseq
    %v47 = vshrl.u32 %v46, 7
    %v48 = vadd.s32 %v47, 8
    %v49 = vadd.s32 %v47, 16
    %v50 = vld [vmem:[%s0] ss:$8 sm:$0x3]
    %v51 = vlaneseq
    %v52 = vshrl.u32 %v51, 7
    %v53 = vsub.s32 0, %v52
    %v54 = vrot.slane %v50, %v53
    %v55 = vlaneseq
    %v56 = vshrl.u32 %v55, 7
    %v57 = vsub.s32 1, %v56
    %v58 = vrot.slane %v50, %v57
    %vm59 = vcmp.eq.s32.totalorder %v54, %v47
    %vm60 = vcmp.eq.s32.totalorder %v58, %v47
    %vm61 = vcmp.eq.s32.totalorder %v54, %v48
    %vm62 = vcmp.eq.s32.totalorder %v58, %v48
    %vm63 = vcmp.eq.s32.totalorder %v54, %v49
    %vm64 = vcmp.eq.s32.totalorder %v58, %v49
    %v65 = vsel %vm59, 1, 0
    %v66 = vsel %vm60, 1, 0
    %v67 = vsel %vm61, 1, 0
    %v68 = vsel %vm62, 1, 0
    %v69 = vsel %vm63, 1, 0
    %v70 = vsel %vm64, 1, 0
    %v71 = vcvt.s32.f32 %v65
    %v72 = vcvt.s32.f32 %v66
    %v73 = vcvt.s32.f32 %v67
    %v74 = vcvt.s32.f32 %v68
    %v75 = vcvt.s32.f32 %v69
    %v76 = vcvt.s32.f32 %v70
    %vm77 = vcmask 171008
    %v79 = vsel %vm77, %v21, 0
    %v82 = vsel %vm77, %v22, 0
    %v85 = vsel %vm77, %v23, 0
    %v88 = vsel %vm77, %v24, 0
    %v91 = vsel %vm77, %v25, 0
    %v94 = vsel %vm77, %v26, 0
    %vm96 = vcmask 1044480
    %v98 = vsel %vm96, %v75, 0
    %v101 = vsel %vm96, %v76, 0
    %103 = vmatprep.subr.mxu0 %v72
    %104 = vmatpush1.msra.mxu0 %v71
    %105 = vmatprep.subr.mxu0 %v74
    %106 = vmatpush1.msra.mxu0 %v73
    %107 = vmatprep.subr.mxu0 %v101
    %108 = vmatpush1.msra.mxu0 %v98
    %109 = vmatprep.subr.mxu0 0.0
    %110 = vmatpush1.msra.mxu0 0.0
    %111 = vmatprep.subr.mxu0 0.0
    %112 = vmatpush1.msra.mxu0 0.0
    %113 = vmatprep.subr.mxu0 0.0
    %114 = vmatpush1.msra.mxu0 0.0
    %115 = vmatprep.subr.mxu0 0.0
    %116 = vmatpush1.msra.mxu0 0.0
    %117 = vmatprep.subr.mxu0 0.0
    %118 = vmatpush1.msra.mxu0 0.0
    %119 = vmatprep.subr.mxu0 0.0
    %120 = vmatpush1.msra.mxu0 0.0
    %121 = vmatprep.subr.mxu0 0.0
    %122 = vmatpush1.msra.mxu0 0.0
    %123 = vmatprep.subr.mxu0 0.0
    %124 = vmatpush1.msra.mxu0 0.0
    %125 = vmatprep.subr.mxu0 0.0
    %126 = vmatpush1.msra.mxu0 0.0
    %127 = vmatprep.subr.mxu0 0.0
    %128 = vmatpush1.msra.mxu0 0.0
    %129 = vmatprep.subr.mxu0 0.0
    %130 = vmatpush1.msra.mxu0 0.0
    %131 = vmatprep.subr.mxu0 0.0
    %132 = vmatpush1.msra.mxu0 0.0
    %133 = vmatprep.subr.mxu0 0.0
    %134 = vmatpush1.msra.mxu0 0.0
    %135 = vmatprep.subr.mxu0 0.0
    %136 = vmatpush1.msra.mxu0 0.0
    %137 = vmatprep.subr.mxu0 0.0
    %138 = vmatpush1.msra.mxu0 0.0
    %139 = vmatprep.subr.mxu0 0.0
    %140 = vmatpush1.msra.mxu0 0.0
    %141 = vmatprep.subr.mxu0 0.0
    %142 = vmatpush1.msra.mxu0 0.0
    %143 = vmatprep.subr.mxu0 0.0
    %144 = vmatpush1.msra.mxu0 0.0
    %145 = vmatprep.subr.mxu0 0.0
    %146 = vmatpush1.msra.mxu0 0.0
    %147 = vmatprep.subr.mxu0 0.0
    %148 = vmatpush1.msra.mxu0 0.0
    %149 = vmatprep.subr.mxu0 0.0
    %150 = vmatpush1.msra.mxu0 0.0
    %151 = vmatprep.subr.mxu0 0.0
    %152 = vmatpush1.msra.mxu0 0.0
    %153 = vmatprep.subr.mxu0 0.0
    %154 = vmatpush1.msra.mxu0 0.0
    %155 = vmatprep.subr.mxu0 0.0
    %156 = vmatpush1.msra.mxu0 0.0
    %157 = vmatprep.subr.mxu0 0.0
    %158 = vmatpush1.msra.mxu0 0.0
    %159 = vmatprep.subr.mxu0 0.0
    %160 = vmatpush1.msra.mxu0 0.0
    %161 = vmatprep.subr.mxu0 0.0
    %162 = vmatpush1.msra.mxu0 0.0
    %163 = vmatprep.subr.mxu0 0.0
    %164 = vmatpush1.msra.mxu0 0.0
    %165 = vmatprep.subr.mxu0 0.0
    %166 = vmatpush1.msra.mxu0 0.0
    %167 = vmatprep.mubr.f32.mxu0 0.0
    %168 = vmatmul.mubr.f32.gmra.mrb[0].mxu0 %v79
    %v169 = vpop.f32.mrb[0].mxu0
    %v170 = vadd.f32 0.0, %v169
    %v171 = vpop.f32.mrb[0].mxu0
    %v172 = vadd.f32 0.0, %v171
    %173 = vmatprep.mubr.f32.mxu0 0.0
    %174 = vmatmul.mubr.f32.gmra.mrb[0].mxu0 %v82
    %v175 = vpop.f32.mrb[0].mxu0
    %v176 = vadd.f32 0.0, %v175
    %v177 = vpop.f32.mrb[0].mxu0
    %v178 = vadd.f32 0.0, %v177
    %179 = vmatprep.mubr.f32.mxu0 0.0
    %180 = vmatmul.mubr.f32.gmra.mrb[0].mxu0 %v85
    %v181 = vpop.f32.mrb[0].mxu0
    %v182 = vadd.f32 0.0, %v181
    %v183 = vpop.f32.mrb[0].mxu0
    %v184 = vadd.f32 0.0, %v183
    %185 = vmatprep.mubr.f32.mxu0 0.0
    %186 = vmatmul.mubr.f32.gmra.mrb[0].mxu0 %v88
    %v187 = vpop.f32.mrb[0].mxu0
    %v188 = vadd.f32 0.0, %v187
    %v189 = vpop.f32.mrb[0].mxu0
    %v190 = vadd.f32 0.0, %v189
    %191 = vmatprep.mubr.f32.mxu0 0.0
    %192 = vmatmul.mubr.f32.gmra.mrb[0].mxu0 %v91
    %v193 = vpop.f32.mrb[0].mxu0
    %v194 = vadd.f32 0.0, %v193
    %v195 = vpop.f32.mrb[0].mxu0
    %v196 = vadd.f32 0.0, %v195
    %197 = vmatprep.mubr.f32.mxu0 0.0
    %198 = vmatmul.mubr.f32.gmra.mrb[0].mxu0 %v94
    %v199 = vpop.f32.mrb[0].mxu0
    %v200 = vadd.f32 0.0, %v199
    %v201 = vpop.f32.mrb[0].mxu0
    %v202 = vadd.f32 0.0, %v201
    %203 = vdwg.mxu0
    %204 = vst [vmem:[#allocation2] sm:$0xff] %v170
    %205 = vst [vmem:[#allocation2 + $0x8] sm:$0xff] %v172
    %206 = vst [vmem:[#allocation2 + $0x10] sm:$0xff] %v176
    %207 = vst [vmem:[#allocation2 + $0x18] sm:$0xff] %v178
    %208 = vst [vmem:[#allocation2 + $0x20] sm:$0xff] %v182
    %209 = vst [vmem:[#allocation2 + $0x28] sm:$0xff] %v184
    %210 = vst [vmem:[#allocation2 + $0x30] sm:$0xff] %v188
    %211 = vst [vmem:[#allocation2 + $0x38] sm:$0xff] %v190
    %212 = vst [vmem:[#allocation2 + $0x40] sm:$0xff] %v194
    %213 = vst [vmem:[#allocation2 + $0x48] sm:$0xff] %v196
    %214 = vst [vmem:[#allocation2 + $0x50] sm:$0xff] %v200
    %215 = vst [vmem:[#allocation2 + $0x58] sm:$0xff] %v202
    %s216 = scalar_lea.vmem %s0, 1
    %v217 = vld [vmem:[%s216] ss:$8 sm:$0x3]
    %v218 = vlaneseq
    %v219 = vshrl.u32 %v218, 7
    %v220 = vsub.s32 0, %v219
    %v221 = vrot.slane %v217, %v220
    %v222 = vlaneseq
    %v223 = vshrl.u32 %v222, 7
    %v224 = vsub.s32 1, %v223
    %v225 = vrot.slane %v217, %v224
    %vm226 = vcmp.eq.s32.totalorder %v221, %v47
    %vm227 = vcmp.eq.s32.totalorder %v225, %v47
    %vm228 = vcmp.eq.s32.totalorder %v221, %v48
    %vm229 = vcmp.eq.s32.totalorder %v225, %v48
    %vm230 = vcmp.eq.s32.totalorder %v221, %v49
    %vm231 = vcmp.eq.s32.totalorder %v225, %v49
    %v232 = vsel %vm226, 1, 0
    %v233 = vsel %vm227, 1, 0
    %v234 = vsel %vm228, 1, 0
    %v235 = vsel %vm229, 1, 0
    %v236 = vsel %vm230, 1, 0
    %v237 = vsel %vm231, 1, 0
    %v238 = vcvt.s32.f32 %v232
    %v239 = vcvt.s32.f32 %v233
    %v240 = vcvt.s32.f32 %v234
    %v241 = vcvt.s32.f32 %v235
    %v242 = vcvt.s32.f32 %v236
    %v243 = vcvt.s32.f32 %v237
    %v245 = vsel %vm96, %v242, 0
    %v248 = vsel %vm96, %v243, 0
    %250 = vmatprep.subr.mxu0 %v239
    %251 = vmatpush1.msra.mxu0 %v238
    %252 = vmatprep.subr.mxu0 %v241
    %253 = vmatpush1.msra.mxu0 %v240
    %254 = vmatprep.subr.mxu0 %v248
    %255 = vmatpush1.msra.mxu0 %v245
    %256 = vmatprep.subr.mxu0 0.0
    %257 = vmatpush1.msra.mxu0 0.0
    %258 = vmatprep.subr.mxu0 0.0
    %259 = vmatpush1.msra.mxu0 0.0
    %260 = vmatprep.subr.mxu0 0.0
    %261 = vmatpush1.msra.mxu0 0.0
    %262 = vmatprep.subr.mxu0 0.0
    %263 = vmatpush1.msra.mxu0 0.0
    %264 = vmatprep.subr.mxu0 0.0
    %265 = vmatpush1.msra.mxu0 0.0
    %266 = vmatprep.subr.mxu0 0.0
    %267 = vmatpush1.msra.mxu0 0.0
    %268 = vmatprep.subr.mxu0 0.0
    %269 = vmatpush1.msra.mxu0 0.0
    %270 = vmatprep.subr.mxu0 0.0
    %271 = vmatpush1.msra.mxu0 0.0
    %272 = vmatprep.subr.mxu0 0.0
    %273 = vmatpush1.msra.mxu0 0.0
    %274 = vmatprep.subr.mxu0 0.0
    %275 = vmatpush1.msra.mxu0 0.0
    %276 = vmatprep.subr.mxu0 0.0
    %277 = vmatpush1.msra.mxu0 0.0
    %278 = vmatprep.subr.mxu0 0.0
    %279 = vmatpush1.msra.mxu0 0.0
    %280 = vmatprep.subr.mxu0 0.0
    %281 = vmatpush1.msra.mxu0 0.0
    %282 = vmatprep.subr.mxu0 0.0
    %283 = vmatpush1.msra.mxu0 0.0
    %284 = vmatprep.subr.mxu0 0.0
    %285 = vmatpush1.msra.mxu0 0.0
    %286 = vmatprep.subr.mxu0 0.0
    %287 = vmatpush1.msra.mxu0 0.0
    %288 = vmatprep.subr.mxu0 0.0
    %289 = vmatpush1.msra.mxu0 0.0
    %290 = vmatprep.subr.mxu0 0.0
    %291 = vmatpush1.msra.mxu0 0.0
    %292 = vmatprep.subr.mxu0 0.0
    %293 = vmatpush1.msra.mxu0 0.0
    %294 = vmatprep.subr.mxu0 0.0
    %295 = vmatpush1.msra.mxu0 0.0
    %296 = vmatprep.subr.mxu0 0.0
    %297 = vmatpush1.msra.mxu0 0.0
    %298 = vmatprep.subr.mxu0 0.0
    %299 = vmatpush1.msra.mxu0 0.0
    %300 = vmatprep.subr.mxu0 0.0
    %301 = vmatpush1.msra.mxu0 0.0
    %302 = vmatprep.subr.mxu0 0.0
    %303 = vmatpush1.msra.mxu0 0.0
    %304 = vmatprep.subr.mxu0 0.0
    %305 = vmatpush1.msra.mxu0 0.0
    %306 = vmatprep.subr.mxu0 0.0
    %307 = vmatpush1.msra.mxu0 0.0
    %308 = vmatprep.subr.mxu0 0.0
    %309 = vmatpush1.msra.mxu0 0.0
    %310 = vmatprep.subr.mxu0 0.0
    %311 = vmatpush1.msra.mxu0 0.0
    %312 = vmatprep.subr.mxu0 0.0
    %313 = vmatpush1.msra.mxu0 0.0
    %314 = vmatprep.mubr.f32.mxu0 0.0
    %315 = vmatmul.mubr.f32.gmra.mrb[0].mxu0 %v79
    %v316 = vpop.f32.mrb[0].mxu0
    %v317 = vadd.f32 0.0, %v316
    %v318 = vpop.f32.mrb[0].mxu0
    %v319 = vadd.f32 0.0, %v318
    %320 = vmatprep.mubr.f32.mxu0 0.0
    %321 = vmatmul.mubr.f32.gmra.mrb[0].mxu0 %v82
    %v322 = vpop.f32.mrb[0].mxu0
    %v323 = vadd.f32 0.0, %v322
    %v324 = vpop.f32.mrb[0].mxu0
    %v325 = vadd.f32 0.0, %v324
    %326 = vmatprep.mubr.f32.mxu0 0.0
    %327 = vmatmul.mubr.f32.gmra.mrb[0].mxu0 %v85
    %v328 = vpop.f32.mrb[0].mxu0
    %v329 = vadd.f32 0.0, %v328
    %v330 = vpop.f32.mrb[0].mxu0
    %v331 = vadd.f32 0.0, %v330
    %332 = vmatprep.mubr.f32.mxu0 0.0
    %333 = vmatmul.mubr.f32.gmra.mrb[0].mxu0 %v88
    %v334 = vpop.f32.mrb[0].mxu0
    %v335 = vadd.f32 0.0, %v334
    %v336 = vpop.f32.mrb[0].mxu0
    %v337 = vadd.f32 0.0, %v336
    %338 = vmatprep.mubr.f32.mxu0 0.0
    %339 = vmatmul.mubr.f32.gmra.mrb[0].mxu0 %v91
    %v340 = vpop.f32.mrb[0].mxu0
    %v341 = vadd.f32 0.0, %v340
    %v342 = vpop.f32.mrb[0].mxu0
    %v343 = vadd.f32 0.0, %v342
    %344 = vmatprep.mubr.f32.mxu0 0.0
    %345 = vmatmul.mubr.f32.gmra.mrb[0].mxu0 %v94
    %v346 = vpop.f32.mrb[0].mxu0
    %v347 = vadd.f32 0.0, %v346
    %v348 = vpop.f32.mrb[0].mxu0
    %v349 = vadd.f32 0.0, %v348
    %350 = vdwg.mxu0
    %s351 = scalar_lea.vmem [#allocation2], 96
    %352 = vst [vmem:[%s351] sm:$0xff] %v317
    %353 = vst [vmem:[%s351 + $0x8] sm:$0xff] %v319
    %354 = vst [vmem:[%s351 + $0x10] sm:$0xff] %v323
    %355 = vst [vmem:[%s351 + $0x18] sm:$0xff] %v325
    %356 = vst [vmem:[%s351 + $0x20] sm:$0xff] %v329
    %357 = vst [vmem:[%s351 + $0x28] sm:$0xff] %v331
    %358 = vst [vmem:[%s351 + $0x30] sm:$0xff] %v335
    %359 = vst [vmem:[%s351 + $0x38] sm:$0xff] %v337
    %360 = vst [vmem:[%s351 + $0x40] sm:$0xff] %v341
    %361 = vst [vmem:[%s351 + $0x48] sm:$0xff] %v343
    %362 = vst [vmem:[%s351 + $0x50] sm:$0xff] %v347
    %363 = vst [vmem:[%s351 + $0x58] sm:$0xff] %v349
    %s364 = scalar_lea.vmem %s0, 2
    %v365 = vld [vmem:[%s364] ss:$8 sm:$0x3]
    %v366 = vlaneseq
    %v367 = vshrl.u32 %v366, 7
    %v368 = vsub.s32 0, %v367
    %v369 = vrot.slane %v365, %v368
    %v370 = vlaneseq
    %v371 = vshrl.u32 %v370, 7
    %v372 = vsub.s32 1, %v371
    %v373 = vrot.slane %v365, %v372
    %vm374 = vcmp.eq.s32.totalorder %v369, %v47
    %vm375 = vcmp.eq.s32.totalorder %v373, %v47
    %vm376 = vcmp.eq.s32.totalorder %v369, %v48
    %vm377 = vcmp.eq.s32.totalorder %v373, %v48
    %vm378 = vcmp.eq.s32.totalorder %v369, %v49
    %vm379 = vcmp.eq.s32.totalorder %v373, %v49
    %v380 = vsel %vm374, 1, 0
    %v381 = vsel %vm375, 1, 0
    %v382 = vsel %vm376, 1, 0
    %v383 = vsel %vm377, 1, 0
    %v384 = vsel %vm378, 1, 0
    %v385 = vsel %vm379, 1, 0
    %v386 = vcvt.s32.f32 %v380
    %v387 = vcvt.s32.f32 %v381
    %v388 = vcvt.s32.f32 %v382
    %v389 = vcvt.s32.f32 %v383
    %v390 = vcvt.s32.f32 %v384
    %v391 = vcvt.s32.f32 %v385
    %v393 = vsel %vm96, %v390, 0
    %v396 = vsel %vm96, %v391, 0
    %398 = vmatprep.subr.mxu0 %v387
    %399 = vmatpush1.msra.mxu0 %v386
    %400 = vmatprep.subr.mxu0 %v389
    %401 = vmatpush1.msra.mxu0 %v388
    %402 = vmatprep.subr.mxu0 %v396
    %403 = vmatpush1.msra.mxu0 %v393
    %404 = vmatprep.subr.mxu0 0.0
    %405 = vmatpush1.msra.mxu0 0.0
    %406 = vmatprep.subr.mxu0 0.0
    %407 = vmatpush1.msra.mxu0 0.0
    %408 = vmatprep.subr.mxu0 0.0
    %409 = vmatpush1.msra.mxu0 0.0
    %410 = vmatprep.subr.mxu0 0.0
    %411 = vmatpush1.msra.mxu0 0.0
    %412 = vmatprep.subr.mxu0 0.0
    %413 = vmatpush1.msra.mxu0 0.0
    %414 = vmatprep.subr.mxu0 0.0
    %415 = vmatpush1.msra.mxu0 0.0
    %416 = vmatprep.subr.mxu0 0.0
    %417 = vmatpush1.msra.mxu0 0.0
    %418 = vmatprep.subr.mxu0 0.0
    %419 = vmatpush1.msra.mxu0 0.0
    %420 = vmatprep.subr.mxu0 0.0
    %421 = vmatpush1.msra.mxu0 0.0
    %422 = vmatprep.subr.mxu0 0.0
    %423 = vmatpush1.msra.mxu0 0.0
    %424 = vmatprep.subr.mxu0 0.0
    %425 = vmatpush1.msra.mxu0 0.0
    %426 = vmatprep.subr.mxu0 0.0
    %427 = vmatpush1.msra.mxu0 0.0
    %428 = vmatprep.subr.mxu0 0.0
    %429 = vmatpush1.msra.mxu0 0.0
    %430 = vmatprep.subr.mxu0 0.0
    %431 = vmatpush1.msra.mxu0 0.0
    %432 = vmatprep.subr.mxu0 0.0
    %433 = vmatpush1.msra.mxu0 0.0
    %434 = vmatprep.subr.mxu0 0.0
    %435 = vmatpush1.msra.mxu0 0.0
    %436 = vmatprep.subr.mxu0 0.0
    %437 = vmatpush1.msra.mxu0 0.0
    %438 = vmatprep.subr.mxu0 0.0
    %439 = vmatpush1.msra.mxu0 0.0
    %440 = vmatprep.subr.mxu0 0.0
    %441 = vmatpush1.msra.mxu0 0.0
    %442 = vmatprep.subr.mxu0 0.0
    %443 = vmatpush1.msra.mxu0 0.0
    %444 = vmatprep.subr.mxu0 0.0
    %445 = vmatpush1.msra.mxu0 0.0
    %446 = vmatprep.subr.mxu0 0.0
    %447 = vmatpush1.msra.mxu0 0.0
    %448 = vmatprep.subr.mxu0 0.0
    %449 = vmatpush1.msra.mxu0 0.0
    %450 = vmatprep.subr.mxu0 0.0
    %451 = vmatpush1.msra.mxu0 0.0
    %452 = vmatprep.subr.mxu0 0.0
    %453 = vmatpush1.msra.mxu0 0.0
    %454 = vmatprep.subr.mxu0 0.0
    %455 = vmatpush1.msra.mxu0 0.0
    %456 = vmatprep.subr.mxu0 0.0
    %457 = vmatpush1.msra.mxu0 0.0
    %458 = vmatprep.subr.mxu0 0.0
    %459 = vmatpush1.msra.mxu0 0.0
    %460 = vmatprep.subr.mxu0 0.0
    %461 = vmatpush1.msra.mxu0 0.0
    %462 = vmatprep.mubr.f32.mxu0 0.0
    %463 = vmatmul.mubr.f32.gmra.mrb[0].mxu0 %v79
    %v464 = vpop.f32.mrb[0].mxu0
    %v465 = vadd.f32 0.0, %v464
    %v466 = vpop.f32.mrb[0].mxu0
    %v467 = vadd.f32 0.0, %v466
    %468 = vmatprep.mubr.f32.mxu0 0.0
    %469 = vmatmul.mubr.f32.gmra.mrb[0].mxu0 %v82
    %v470 = vpop.f32.mrb[0].mxu0
    %v471 = vadd.f32 0.0, %v470
    %v472 = vpop.f32.mrb[0].mxu0
    %v473 = vadd.f32 0.0, %v472
    %474 = vmatprep.mubr.f32.mxu0 0.0
    %475 = vmatmul.mubr.f32.gmra.mrb[0].mxu0 %v85
    %v476 = vpop.f32.mrb[0].mxu0
    %v477 = vadd.f32 0.0, %v476
    %v478 = vpop.f32.mrb[0].mxu0
    %v479 = vadd.f32 0.0, %v478
    %480 = vmatprep.mubr.f32.mxu0 0.0
    %481 = vmatmul.mubr.f32.gmra.mrb[0].mxu0 %v88
    %v482 = vpop.f32.mrb[0].mxu0
    %v483 = vadd.f32 0.0, %v482
    %v484 = vpop.f32.mrb[0].mxu0
    %v485 = vadd.f32 0.0, %v484
    %486 = vmatprep.mubr.f32.mxu0 0.0
    %487 = vmatmul.mubr.f32.gmra.mrb[0].mxu0 %v91
    %v488 = vpop.f32.mrb[0].mxu0
    %v489 = vadd.f32 0.0, %v488
    %v490 = vpop.f32.mrb[0].mxu0
    %v491 = vadd.f32 0.0, %v490
    %492 = vmatprep.mubr.f32.mxu0 0.0
    %493 = vmatmul.mubr.f32.gmra.mrb[0].mxu0 %v94
    %v494 = vpop.f32.mrb[0].mxu0
    %v495 = vadd.f32 0.0, %v494
    %v496 = vpop.f32.mrb[0].mxu0
    %v497 = vadd.f32 0.0, %v496
    %498 = vdwg.mxu0
    %s499 = scalar_lea.vmem [#allocation2], 192
    %500 = vst [vmem:[%s499] sm:$0xff] %v465
    %501 = vst [vmem:[%s499 + $0x8] sm:$0xff] %v467
    %502 = vst [vmem:[%s499 + $0x10] sm:$0xff] %v471
    %503 = vst [vmem:[%s499 + $0x18] sm:$0xff] %v473
    %504 = vst [vmem:[%s499 + $0x20] sm:$0xff] %v477
    %505 = vst [vmem:[%s499 + $0x28] sm:$0xff] %v479
    %506 = vst [vmem:[%s499 + $0x30] sm:$0xff] %v483
    %507 = vst [vmem:[%s499 + $0x38] sm:$0xff] %v485
    %508 = vst [vmem:[%s499 + $0x40] sm:$0xff] %v489
    %509 = vst [vmem:[%s499 + $0x48] sm:$0xff] %v491
    %510 = vst [vmem:[%s499 + $0x50] sm:$0xff] %v495
    %511 = vst [vmem:[%s499 + $0x58] sm:$0xff] %v497
    %s512 = scalar_lea.vmem %s0, 3
    %v513 = vld [vmem:[%s512] ss:$8 sm:$0x3]
    %v514 = vlaneseq
    %v515 = vshrl.u32 %v514, 7
    %v516 = vsub.s32 0, %v515
    %v517 = vrot.slane %v513, %v516
    %v518 = vlaneseq
    %v519 = vshrl.u32 %v518, 7
    %v520 = vsub.s32 1, %v519
    %v521 = vrot.slane %v513, %v520
    %vm522 = vcmp.eq.s32.totalorder %v517, %v47
    %vm523 = vcmp.eq.s32.totalorder %v521, %v47
    %vm524 = vcmp.eq.s32.totalorder %v517, %v48
    %vm525 = vcmp.eq.s32.totalorder %v521, %v48
    %vm526 = vcmp.eq.s32.totalorder %v517, %v49
    %vm527 = vcmp.eq.s32.totalorder %v521, %v49
    %v528 = vsel %vm522, 1, 0
    %v529 = vsel %vm523, 1, 0
    %v530 = vsel %vm524, 1, 0
    %v531 = vsel %vm525, 1, 0
    %v532 = vsel %vm526, 1, 0
    %v533 = vsel %vm527, 1, 0
    %v534 = vcvt.s32.f32 %v528
    %v535 = vcvt.s32.f32 %v529
    %v536 = vcvt.s32.f32 %v530
    %v537 = vcvt.s32.f32 %v531
    %v538 = vcvt.s32.f32 %v532
    %v539 = vcvt.s32.f32 %v533
    %v541 = vsel %vm96, %v538, 0
    %v544 = vsel %vm96, %v539, 0
    %546 = vmatprep.subr.mxu0 %v535
    %547 = vmatpush1.msra.mxu0 %v534
    %548 = vmatprep.subr.mxu0 %v537
    %549 = vmatpush1.msra.mxu0 %v536
    %550 = vmatprep.subr.mxu0 %v544
    %551 = vmatpush1.msra.mxu0 %v541
    %552 = vmatprep.subr.mxu0 0.0
    %553 = vmatpush1.msra.mxu0 0.0
    %554 = vmatprep.subr.mxu0 0.0
    %555 = vmatpush1.msra.mxu0 0.0
    %556 = vmatprep.subr.mxu0 0.0
    %557 = vmatpush1.msra.mxu0 0.0
    %558 = vmatprep.subr.mxu0 0.0
    %559 = vmatpush1.msra.mxu0 0.0
    %560 = vmatprep.subr.mxu0 0.0
    %561 = vmatpush1.msra.mxu0 0.0
    %562 = vmatprep.subr.mxu0 0.0
    %563 = vmatpush1.msra.mxu0 0.0
    %564 = vmatprep.subr.mxu0 0.0
    %565 = vmatpush1.msra.mxu0 0.0
    %566 = vmatprep.subr.mxu0 0.0
    %567 = vmatpush1.msra.mxu0 0.0
    %568 = vmatprep.subr.mxu0 0.0
    %569 = vmatpush1.msra.mxu0 0.0
    %570 = vmatprep.subr.mxu0 0.0
    %571 = vmatpush1.msra.mxu0 0.0
    %572 = vmatprep.subr.mxu0 0.0
    %573 = vmatpush1.msra.mxu0 0.0
    %574 = vmatprep.subr.mxu0 0.0
    %575 = vmatpush1.msra.mxu0 0.0
    %576 = vmatprep.subr.mxu0 0.0
    %577 = vmatpush1.msra.mxu0 0.0
    %578 = vmatprep.subr.mxu0 0.0
    %579 = vmatpush1.msra.mxu0 0.0
    %580 = vmatprep.subr.mxu0 0.0
    %581 = vmatpush1.msra.mxu0 0.0
    %582 = vmatprep.subr.mxu0 0.0
    %583 = vmatpush1.msra.mxu0 0.0
    %584 = vmatprep.subr.mxu0 0.0
    %585 = vmatpush1.msra.mxu0 0.0
    %586 = vmatprep.subr.mxu0 0.0
    %587 = vmatpush1.msra.mxu0 0.0
    %588 = vmatprep.subr.mxu0 0.0
    %589 = vmatpush1.msra.mxu0 0.0
    %590 = vmatprep.subr.mxu0 0.0
    %591 = vmatpush1.msra.mxu0 0.0
    %592 = vmatprep.subr.mxu0 0.0
    %593 = vmatpush1.msra.mxu0 0.0
    %594 = vmatprep.subr.mxu0 0.0
    %595 = vmatpush1.msra.mxu0 0.0
    %596 = vmatprep.subr.mxu0 0.0
    %597 = vmatpush1.msra.mxu0 0.0
    %598 = vmatprep.subr.mxu0 0.0
    %599 = vmatpush1.msra.mxu0 0.0
    %600 = vmatprep.subr.mxu0 0.0
    %601 = vmatpush1.msra.mxu0 0.0
    %602 = vmatprep.subr.mxu0 0.0
    %603 = vmatpush1.msra.mxu0 0.0
    %604 = vmatprep.subr.mxu0 0.0
    %605 = vmatpush1.msra.mxu0 0.0
    %606 = vmatprep.subr.mxu0 0.0
    %607 = vmatpush1.msra.mxu0 0.0
    %608 = vmatprep.subr.mxu0 0.0
    %609 = vmatpush1.msra.mxu0 0.0
    %610 = vmatprep.mubr.f32.mxu0 0.0
    %611 = vmatmul.mubr.f32.gmra.mrb[0].mxu0 %v79
    %v612 = vpop.f32.mrb[0].mxu0
    %v613 = vadd.f32 0.0, %v612
    %v614 = vpop.f32.mrb[0].mxu0
    %v615 = vadd.f32 0.0, %v614
    %616 = vmatprep.mubr.f32.mxu0 0.0
    %617 = vmatmul.mubr.f32.gmra.mrb[0].mxu0 %v82
    %v618 = vpop.f32.mrb[0].mxu0
    %v619 = vadd.f32 0.0, %v618
    %v620 = vpop.f32.mrb[0].mxu0
    %v621 = vadd.f32 0.0, %v620
    %622 = vmatprep.mubr.f32.mxu0 0.0
    %623 = vmatmul.mubr.f32.gmra.mrb[0].mxu0 %v85
    %v624 = vpop.f32.mrb[0].mxu0
    %v625 = vadd.f32 0.0, %v624
    %v626 = vpop.f32.mrb[0].mxu0
    %v627 = vadd.f32 0.0, %v626
    %628 = vmatprep.mubr.f32.mxu0 0.0
    %629 = vmatmul.mubr.f32.gmra.mrb[0].mxu0 %v88
    %v630 = vpop.f32.mrb[0].mxu0
    %v631 = vadd.f32 0.0, %v630
    %v632 = vpop.f32.mrb[0].mxu0
    %v633 = vadd.f32 0.0, %v632
    %634 = vmatprep.mubr.f32.mxu0 0.0
    %635 = vmatmul.mubr.f32.gmra.mrb[0].mxu0 %v91
    %v636 = vpop.f32.mrb[0].mxu0
    %v637 = vadd.f32 0.0, %v636
    %v638 = vpop.f32.mrb[0].mxu0
    %v639 = vadd.f32 0.0, %v638
    %640 = vmatprep.mubr.f32.mxu0 0.0
    %641 = vmatmul.mubr.f32.gmra.mrb[0].mxu0 %v94
    %v642 = vpop.f32.mrb[0].mxu0
    %v643 = vadd.f32 0.0, %v642
    %v644 = vpop.f32.mrb[0].mxu0
    %v645 = vadd.f32 0.0, %v644
    %646 = vdwg.mxu0
    %s647 = scalar_lea.vmem [#allocation2], 288
    %648 = vst [vmem:[%s647] sm:$0xff] %v613
    %649 = vst [vmem:[%s647 + $0x8] sm:$0xff] %v615
    %650 = vst [vmem:[%s647 + $0x10] sm:$0xff] %v619
    %651 = vst [vmem:[%s647 + $0x18] sm:$0xff] %v621
    %652 = vst [vmem:[%s647 + $0x20] sm:$0xff] %v625
    %653 = vst [vmem:[%s647 + $0x28] sm:$0xff] %v627
    %654 = vst [vmem:[%s647 + $0x30] sm:$0xff] %v631
    %655 = vst [vmem:[%s647 + $0x38] sm:$0xff] %v633
    %656 = vst [vmem:[%s647 + $0x40] sm:$0xff] %v637
    %657 = vst [vmem:[%s647 + $0x48] sm:$0xff] %v639
    %658 = vst [vmem:[%s647 + $0x50] sm:$0xff] %v643
    %659 = vst [vmem:[%s647 + $0x58] sm:$0xff] %v645
    %s660 = scalar_lea.vmem %s0, 4
    %v661 = vld [vmem:[%s660] ss:$8 sm:$0x3]
    %v662 = vlaneseq
    %v663 = vshrl.u32 %v662, 7
    %v664 = vsub.s32 0, %v663
    %v665 = vrot.slane %v661, %v664
    %v666 = vlaneseq
    %v667 = vshrl.u32 %v666, 7
    %v668 = vsub.s32 1, %v667
    %v669 = vrot.slane %v661, %v668
    %vm670 = vcmp.eq.s32.totalorder %v665, %v47
    %vm671 = vcmp.eq.s32.totalorder %v669, %v47
    %vm672 = vcmp.eq.s32.totalorder %v665, %v48
    %vm673 = vcmp.eq.s32.totalorder %v669, %v48
    %vm674 = vcmp.eq.s32.totalorder %v665, %v49
    %vm675 = vcmp.eq.s32.totalorder %v669, %v49
    %v676 = vsel %vm670, 1, 0
    %v677 = vsel %vm671, 1, 0
    %v678 = vsel %vm672, 1, 0
    %v679 = vsel %vm673, 1, 0
    %v680 = vsel %vm674, 1, 0
    %v681 = vsel %vm675, 1, 0
    %v682 = vcvt.s32.f32 %v676
    %v683 = vcvt.s32.f32 %v677
    %v684 = vcvt.s32.f32 %v678
    %v685 = vcvt.s32.f32 %v679
    %v686 = vcvt.s32.f32 %v680
    %v687 = vcvt.s32.f32 %v681
    %v689 = vsel %vm96, %v686, 0
    %v692 = vsel %vm96, %v687, 0
    %694 = vmatprep.subr.mxu0 %v683
    %695 = vmatpush1.msra.mxu0 %v682
    %696 = vmatprep.subr.mxu0 %v685
    %697 = vmatpush1.msra.mxu0 %v684
    %698 = vmatprep.subr.mxu0 %v692
    %699 = vmatpush1.msra.mxu0 %v689
    %700 = vmatprep.subr.mxu0 0.0
    %701 = vmatpush1.msra.mxu0 0.0
    %702 = vmatprep.subr.mxu0 0.0
    %703 = vmatpush1.msra.mxu0 0.0
    %704 = vmatprep.subr.mxu0 0.0
    %705 = vmatpush1.msra.mxu0 0.0
    %706 = vmatprep.subr.mxu0 0.0
    %707 = vmatpush1.msra.mxu0 0.0
    %708 = vmatprep.subr.mxu0 0.0
    %709 = vmatpush1.msra.mxu0 0.0
    %710 = vmatprep.subr.mxu0 0.0
    %711 = vmatpush1.msra.mxu0 0.0
    %712 = vmatprep.subr.mxu0 0.0
    %713 = vmatpush1.msra.mxu0 0.0
    %714 = vmatprep.subr.mxu0 0.0
    %715 = vmatpush1.msra.mxu0 0.0
    %716 = vmatprep.subr.mxu0 0.0
    %717 = vmatpush1.msra.mxu0 0.0
    %718 = vmatprep.subr.mxu0 0.0
    %719 = vmatpush1.msra.mxu0 0.0
    %720 = vmatprep.subr.mxu0 0.0
    %721 = vmatpush1.msra.mxu0 0.0
    %722 = vmatprep.subr.mxu0 0.0
    %723 = vmatpush1.msra.mxu0 0.0
    %724 = vmatprep.subr.mxu0 0.0
    %725 = vmatpush1.msra.mxu0 0.0
    %726 = vmatprep.subr.mxu0 0.0
    %727 = vmatpush1.msra.mxu0 0.0
    %728 = vmatprep.subr.mxu0 0.0
    %729 = vmatpush1.msra.mxu0 0.0
    %730 = vmatprep.subr.mxu0 0.0
    %731 = vmatpush1.msra.mxu0 0.0
    %732 = vmatprep.subr.mxu0 0.0
    %733 = vmatpush1.msra.mxu0 0.0
    %734 = vmatprep.subr.mxu0 0.0
    %735 = vmatpush1.msra.mxu0 0.0
    %736 = vmatprep.subr.mxu0 0.0
    %737 = vmatpush1.msra.mxu0 0.0
    %738 = vmatprep.subr.mxu0 0.0
    %739 = vmatpush1.msra.mxu0 0.0
    %740 = vmatprep.subr.mxu0 0.0
    %741 = vmatpush1.msra.mxu0 0.0
    %742 = vmatprep.subr.mxu0 0.0
    %743 = vmatpush1.msra.mxu0 0.0
    %744 = vmatprep.subr.mxu0 0.0
    %745 = vmatpush1.msra.mxu0 0.0
    %746 = vmatprep.subr.mxu0 0.0
    %747 = vmatpush1.msra.mxu0 0.0
    %748 = vmatprep.subr.mxu0 0.0
    %749 = vmatpush1.msra.mxu0 0.0
    %750 = vmatprep.subr.mxu0 0.0
    %751 = vmatpush1.msra.mxu0 0.0
    %752 = vmatprep.subr.mxu0 0.0
    %753 = vmatpush1.msra.mxu0 0.0
    %754 = vmatprep.subr.mxu0 0.0
    %755 = vmatpush1.msra.mxu0 0.0
    %756 = vmatprep.subr.mxu0 0.0
    %757 = vmatpush1.msra.mxu0 0.0
    %758 = vmatprep.mubr.f32.mxu0 0.0
    %759 = vmatmul.mubr.f32.gmra.mrb[0].mxu0 %v79
    %v760 = vpop.f32.mrb[0].mxu0
    %v761 = vadd.f32 0.0, %v760
    %v762 = vpop.f32.mrb[0].mxu0
    %v763 = vadd.f32 0.0, %v762
    %764 = vmatprep.mubr.f32.mxu0 0.0
    %765 = vmatmul.mubr.f32.gmra.mrb[0].mxu0 %v82
    %v766 = vpop.f32.mrb[0].mxu0
    %v767 = vadd.f32 0.0, %v766
    %v768 = vpop.f32.mrb[0].mxu0
    %v769 = vadd.f32 0.0, %v768
    %770 = vmatprep.mubr.f32.mxu0 0.0
    %771 = vmatmul.mubr.f32.gmra.mrb[0].mxu0 %v85
    %v772 = vpop.f32.mrb[0].mxu0
    %v773 = vadd.f32 0.0, %v772
    %v774 = vpop.f32.mrb[0].mxu0
    %v775 = vadd.f32 0.0, %v774
    %776 = vmatprep.mubr.f32.mxu0 0.0
    %777 = vmatmul.mubr.f32.gmra.mrb[0].mxu0 %v88
    %v778 = vpop.f32.mrb[0].mxu0
    %v779 = vadd.f32 0.0, %v778
    %v780 = vpop.f32.mrb[0].mxu0
    %v781 = vadd.f32 0.0, %v780
    %782 = vmatprep.mubr.f32.mxu0 0.0
    %783 = vmatmul.mubr.f32.gmra.mrb[0].mxu0 %v91
    %v784 = vpop.f32.mrb[0].mxu0
    %v785 = vadd.f32 0.0, %v784
    %v786 = vpop.f32.mrb[0].mxu0
    %v787 = vadd.f32 0.0, %v786
    %788 = vmatprep.mubr.f32.mxu0 0.0
    %789 = vmatmul.mubr.f32.gmra.mrb[0].mxu0 %v94
    %v790 = vpop.f32.mrb[0].mxu0
    %v791 = vadd.f32 0.0, %v790
    %v792 = vpop.f32.mrb[0].mxu0
    %v793 = vadd.f32 0.0, %v792
    %794 = vdwg.mxu0
    %s795 = scalar_lea.vmem [#allocation2], 384
    %796 = vst [vmem:[%s795] sm:$0xff] %v761
    %797 = vst [vmem:[%s795 + $0x8] sm:$0xff] %v763
    %798 = vst [vmem:[%s795 + $0x10] sm:$0xff] %v767
    %799 = vst [vmem:[%s795 + $0x18] sm:$0xff] %v769
    %800 = vst [vmem:[%s795 + $0x20] sm:$0xff] %v773
    %801 = vst [vmem:[%s795 + $0x28] sm:$0xff] %v775
    %802 = vst [vmem:[%s795 + $0x30] sm:$0xff] %v779
    %803 = vst [vmem:[%s795 + $0x38] sm:$0xff] %v781
    %804 = vst [vmem:[%s795 + $0x40] sm:$0xff] %v785
    %805 = vst [vmem:[%s795 + $0x48] sm:$0xff] %v787
    %806 = vst [vmem:[%s795 + $0x50] sm:$0xff] %v791
    %807 = vst [vmem:[%s795 + $0x58] sm:$0xff] %v793
    %s808 = scalar_lea.vmem %s0, 5
    %v809 = vld [vmem:[%s808] ss:$8 sm:$0x3]
    %v810 = vlaneseq
    %v811 = vshrl.u32 %v810, 7
    %v812 = vsub.s32 0, %v811
    %v813 = vrot.slane %v809, %v812
    %v814 = vlaneseq
    %v815 = vshrl.u32 %v814, 7
    %v816 = vsub.s32 1, %v815
    %v817 = vrot.slane %v809, %v816
    %vm818 = vcmp.eq.s32.totalorder %v813, %v47
    %vm819 = vcmp.eq.s32.totalorder %v817, %v47
    %vm820 = vcmp.eq.s32.totalorder %v813, %v48
    %vm821 = vcmp.eq.s32.totalorder %v817, %v48
    %vm822 = vcmp.eq.s32.totalorder %v813, %v49
    %vm823 = vcmp.eq.s32.totalorder %v817, %v49
    %v824 = vsel %vm818, 1, 0
    %v825 = vsel %vm819, 1, 0
    %v826 = vsel %vm820, 1, 0
    %v827 = vsel %vm821, 1, 0
    %v828 = vsel %vm822, 1, 0
    %v829 = vsel %vm823, 1, 0
    %v830 = vcvt.s32.f32 %v824
    %v831 = vcvt.s32.f32 %v825
    %v832 = vcvt.s32.f32 %v826
    %v833 = vcvt.s32.f32 %v827
    %v834 = vcvt.s32.f32 %v828
    %v835 = vcvt.s32.f32 %v829
    %v837 = vsel %vm96, %v834, 0
    %v840 = vsel %vm96, %v835, 0
    %842 = vmatprep.subr.mxu0 %v831
    %843 = vmatpush1.msra.mxu0 %v830
    %844 = vmatprep.subr.mxu0 %v833
    %845 = vmatpush1.msra.mxu0 %v832
    %846 = vmatprep.subr.mxu0 %v840
    %847 = vmatpush1.msra.mxu0 %v837
    %848 = vmatprep.subr.mxu0 0.0
    %849 = vmatpush1.msra.mxu0 0.0
    %850 = vmatprep.subr.mxu0 0.0
    %851 = vmatpush1.msra.mxu0 0.0
    %852 = vmatprep.subr.mxu0 0.0
    %853 = vmatpush1.msra.mxu0 0.0
    %854 = vmatprep.subr.mxu0 0.0
    %855 = vmatpush1.msra.mxu0 0.0
    %856 = vmatprep.subr.mxu0 0.0
    %857 = vmatpush1.msra.mxu0 0.0
    %858 = vmatprep.subr.mxu0 0.0
    %859 = vmatpush1.msra.mxu0 0.0
    %860 = vmatprep.subr.mxu0 0.0
    %861 = vmatpush1.msra.mxu0 0.0
    %862 = vmatprep.subr.mxu0 0.0
    %863 = vmatpush1.msra.mxu0 0.0
    %864 = vmatprep.subr.mxu0 0.0
    %865 = vmatpush1.msra.mxu0 0.0
    %866 = vmatprep.subr.mxu0 0.0
    %867 = vmatpush1.msra.mxu0 0.0
    %868 = vmatprep.subr.mxu0 0.0
    %869 = vmatpush1.msra.mxu0 0.0
    %870 = vmatprep.subr.mxu0 0.0
    %871 = vmatpush1.msra.mxu0 0.0
    %872 = vmatprep.subr.mxu0 0.0
    %873 = vmatpush1.msra.mxu0 0.0
    %874 = vmatprep.subr.mxu0 0.0
    %875 = vmatpush1.msra.mxu0 0.0
    %876 = vmatprep.subr.mxu0 0.0
    %877 = vmatpush1.msra.mxu0 0.0
    %878 = vmatprep.subr.mxu0 0.0
    %879 = vmatpush1.msra.mxu0 0.0
    %880 = vmatprep.subr.mxu0 0.0
    %881 = vmatpush1.msra.mxu0 0.0
    %882 = vmatprep.subr.mxu0 0.0
    %883 = vmatpush1.msra.mxu0 0.0
    %884 = vmatprep.subr.mxu0 0.0
    %885 = vmatpush1.msra.mxu0 0.0
    %886 = vmatprep.subr.mxu0 0.0
    %887 = vmatpush1.msra.mxu0 0.0
    %888 = vmatprep.subr.mxu0 0.0
    %889 = vmatpush1.msra.mxu0 0.0
    %890 = vmatprep.subr.mxu0 0.0
    %891 = vmatpush1.msra.mxu0 0.0
    %892 = vmatprep.subr.mxu0 0.0
    %893 = vmatpush1.msra.mxu0 0.0
    %894 = vmatprep.subr.mxu0 0.0
    %895 = vmatpush1.msra.mxu0 0.0
    %896 = vmatprep.subr.mxu0 0.0
    %897 = vmatpush1.msra.mxu0 0.0
    %898 = vmatprep.subr.mxu0 0.0
    %899 = vmatpush1.msra.mxu0 0.0
    %900 = vmatprep.subr.mxu0 0.0
    %901 = vmatpush1.msra.mxu0 0.0
    %902 = vmatprep.subr.mxu0 0.0
    %903 = vmatpush1.msra.mxu0 0.0
    %904 = vmatprep.subr.mxu0 0.0
    %905 = vmatpush1.msra.mxu0 0.0
    %906 = vmatprep.mubr.f32.mxu0 0.0
    %907 = vmatmul.mubr.f32.gmra.mrb[0].mxu0 %v79
    %v908 = vpop.f32.mrb[0].mxu0
    %v909 = vadd.f32 0.0, %v908
    %v910 = vpop.f32.mrb[0].mxu0
    %v911 = vadd.f32 0.0, %v910
    %912 = vmatprep.mubr.f32.mxu0 0.0
    %913 = vmatmul.mubr.f32.gmra.mrb[0].mxu0 %v82
    %v914 = vpop.f32.mrb[0].mxu0
    %v915 = vadd.f32 0.0, %v914
    %v916 = vpop.f32.mrb[0].mxu0
    %v917 = vadd.f32 0.0, %v916
    %918 = vmatprep.mubr.f32.mxu0 0.0
    %919 = vmatmul.mubr.f32.gmra.mrb[0].mxu0 %v85
    %v920 = vpop.f32.mrb[0].mxu0
    %v921 = vadd.f32 0.0, %v920
    %v922 = vpop.f32.mrb[0].mxu0
    %v923 = vadd.f32 0.0, %v922
    %924 = vmatprep.mubr.f32.mxu0 0.0
    %925 = vmatmul.mubr.f32.gmra.mrb[0].mxu0 %v88
    %v926 = vpop.f32.mrb[0].mxu0
    %v927 = vadd.f32 0.0, %v926
    %v928 = vpop.f32.mrb[0].mxu0
    %v929 = vadd.f32 0.0, %v928
    %930 = vmatprep.mubr.f32.mxu0 0.0
    %931 = vmatmul.mubr.f32.gmra.mrb[0].mxu0 %v91
    %v932 = vpop.f32.mrb[0].mxu0
    %v933 = vadd.f32 0.0, %v932
    %v934 = vpop.f32.mrb[0].mxu0
    %v935 = vadd.f32 0.0, %v934
    %936 = vmatprep.mubr.f32.mxu0 0.0
    %937 = vmatmul.mubr.f32.gmra.mrb[0].mxu0 %v94
    %v938 = vpop.f32.mrb[0].mxu0
    %v939 = vadd.f32 0.0, %v938
    %v940 = vpop.f32.mrb[0].mxu0
    %v941 = vadd.f32 0.0, %v940
    %942 = vdwg.mxu0
    %s943 = scalar_lea.vmem [#allocation2], 480
    %944 = vst [vmem:[%s943] sm:$0xff] %v909
    %945 = vst [vmem:[%s943 + $0x8] sm:$0xff] %v911
    %946 = vst [vmem:[%s943 + $0x10] sm:$0xff] %v915
    %947 = vst [vmem:[%s943 + $0x18] sm:$0xff] %v917
    %948 = vst [vmem:[%s943 + $0x20] sm:$0xff] %v921
    %949 = vst [vmem:[%s943 + $0x28] sm:$0xff] %v923
    %950 = vst [vmem:[%s943 + $0x30] sm:$0xff] %v927
    %951 = vst [vmem:[%s943 + $0x38] sm:$0xff] %v929
    %952 = vst [vmem:[%s943 + $0x40] sm:$0xff] %v933
    %953 = vst [vmem:[%s943 + $0x48] sm:$0xff] %v935
    %954 = vst [vmem:[%s943 + $0x50] sm:$0xff] %v939
    %955 = vst [vmem:[%s943 + $0x58] sm:$0xff] %v941
    %s956 = scalar_lea.vmem %s0, 6
    %v957 = vld [vmem:[%s956] ss:$8 sm:$0x3]
    %v958 = vlaneseq
    %v959 = vshrl.u32 %v958, 7
    %v960 = vsub.s32 0, %v959
    %v961 = vrot.slane %v957, %v960
    %v962 = vlaneseq
    %v963 = vshrl.u32 %v962, 7
    %v964 = vsub.s32 1, %v963
    %v965 = vrot.slane %v957, %v964
    %vm966 = vcmp.eq.s32.totalorder %v961, %v47
    %vm967 = vcmp.eq.s32.totalorder %v965, %v47
    %vm968 = vcmp.eq.s32.totalorder %v961, %v48
    %vm969 = vcmp.eq.s32.totalorder %v965, %v48
    %vm970 = vcmp.eq.s32.totalorder %v961, %v49
    %vm971 = vcmp.eq.s32.totalorder %v965, %v49
    %v972 = vsel %vm966, 1, 0
    %v973 = vsel %vm967, 1, 0
    %v974 = vsel %vm968, 1, 0
    %v975 = vsel %vm969, 1, 0
    %v976 = vsel %vm970, 1, 0
    %v977 = vsel %vm971, 1, 0
    %v978 = vcvt.s32.f32 %v972
    %v979 = vcvt.s32.f32 %v973
    %v980 = vcvt.s32.f32 %v974
    %v981 = vcvt.s32.f32 %v975
    %v982 = vcvt.s32.f32 %v976
    %v983 = vcvt.s32.f32 %v977
    %v985 = vsel %vm96, %v982, 0
    %v988 = vsel %vm96, %v983, 0
    %990 = vmatprep.subr.mxu0 %v979
    %991 = vmatpush1.msra.mxu0 %v978
    %992 = vmatprep.subr.mxu0 %v981
    %993 = vmatpush1.msra.mxu0 %v980
    %994 = vmatprep.subr.mxu0 %v988
    %995 = vmatpush1.msra.mxu0 %v985
    %996 = vmatprep.subr.mxu0 0.0
    %997 = vmatpush1.msra.mxu0 0.0
    %998 = vmatprep.subr.mxu0 0.0
    %999 = vmatpush1.msra.mxu0 0.0
    %1000 = vmatprep.subr.mxu0 0.0
    %1001 = vmatpush1.msra.mxu0 0.0
    %1002 = vmatprep.subr.mxu0 0.0
    %1003 = vmatpush1.msra.mxu0 0.0
    %1004 = vmatprep.subr.mxu0 0.0
    %1005 = vmatpush1.msra.mxu0 0.0
    %1006 = vmatprep.subr.mxu0 0.0
    %1007 = vmatpush1.msra.mxu0 0.0
    %1008 = vmatprep.subr.mxu0 0.0
    %1009 = vmatpush1.msra.mxu0 0.0
    %1010 = vmatprep.subr.mxu0 0.0
    %1011 = vmatpush1.msra.mxu0 0.0
    %1012 = vmatprep.subr.mxu0 0.0
    %1013 = vmatpush1.msra.mxu0 0.0
    %1014 = vmatprep.subr.mxu0 0.0
    %1015 = vmatpush1.msra.mxu0 0.0
    %1016 = vmatprep.subr.mxu0 0.0
    %1017 = vmatpush1.msra.mxu0 0.0
    %1018 = vmatprep.subr.mxu0 0.0
    %1019 = vmatpush1.msra.mxu0 0.0
    %1020 = vmatprep.subr.mxu0 0.0
    %1021 = vmatpush1.msra.mxu0 0.0
    %1022 = vmatprep.subr.mxu0 0.0
    %1023 = vmatpush1.msra.mxu0 0.0
    %1024 = vmatprep.subr.mxu0 0.0
    %1025 = vmatpush1.msra.mxu0 0.0
    %1026 = vmatprep.subr.mxu0 0.0
    %1027 = vmatpush1.msra.mxu0 0.0
    %1028 = vmatprep.subr.mxu0 0.0
    %1029 = vmatpush1.msra.mxu0 0.0
    %1030 = vmatprep.subr.mxu0 0.0
    %1031 = vmatpush1.msra.mxu0 0.0
    %1032 = vmatprep.subr.mxu0 0.0
    %1033 = vmatpush1.msra.mxu0 0.0
    %1034 = vmatprep.subr.mxu0 0.0
    %1035 = vmatpush1.msra.mxu0 0.0
    %1036 = vmatprep.subr.mxu0 0.0
    %1037 = vmatpush1.msra.mxu0 0.0
    %1038 = vmatprep.subr.mxu0 0.0
    %1039 = vmatpush1.msra.mxu0 0.0
    %1040 = vmatprep.subr.mxu0 0.0
    %1041 = vmatpush1.msra.mxu0 0.0
    %1042 = vmatprep.subr.mxu0 0.0
    %1043 = vmatpush1.msra.mxu0 0.0
    %1044 = vmatprep.subr.mxu0 0.0
    %1045 = vmatpush1.msra.mxu0 0.0
    %1046 = vmatprep.subr.mxu0 0.0
    %1047 = vmatpush1.msra.mxu0 0.0
    %1048 = vmatprep.subr.mxu0 0.0
    %1049 = vmatpush1.msra.mxu0 0.0
    %1050 = vmatprep.subr.mxu0 0.0
    %1051 = vmatpush1.msra.mxu0 0.0
    %1052 = vmatprep.subr.mxu0 0.0
    %1053 = vmatpush1.msra.mxu0 0.0
    %1054 = vmatprep.mubr.f32.mxu0 0.0
    %1055 = vmatmul.mubr.f32.gmra.mrb[0].mxu0 %v79
    %v1056 = vpop.f32.mrb[0].mxu0
    %v1057 = vadd.f32 0.0, %v1056
    %v1058 = vpop.f32.mrb[0].mxu0
    %v1059 = vadd.f32 0.0, %v1058
    %1060 = vmatprep.mubr.f32.mxu0 0.0
    %1061 = vmatmul.mubr.f32.gmra.mrb[0].mxu0 %v82
    %v1062 = vpop.f32.mrb[0].mxu0
    %v1063 = vadd.f32 0.0, %v1062
    %v1064 = vpop.f32.mrb[0].mxu0
    %v1065 = vadd.f32 0.0, %v1064
    %1066 = vmatprep.mubr.f32.mxu0 0.0
    %1067 = vmatmul.mubr.f32.gmra.mrb[0].mxu0 %v85
    %v1068 = vpop.f32.mrb[0].mxu0
    %v1069 = vadd.f32 0.0, %v1068
    %v1070 = vpop.f32.mrb[0].mxu0
    %v1071 = vadd.f32 0.0, %v1070
    %1072 = vmatprep.mubr.f32.mxu0 0.0
    %1073 = vmatmul.mubr.f32.gmra.mrb[0].mxu0 %v88
    %v1074 = vpop.f32.mrb[0].mxu0
    %v1075 = vadd.f32 0.0, %v1074
    %v1076 = vpop.f32.mrb[0].mxu0
    %v1077 = vadd.f32 0.0, %v1076
    %1078 = vmatprep.mubr.f32.mxu0 0.0
    %1079 = vmatmul.mubr.f32.gmra.mrb[0].mxu0 %v91
    %v1080 = vpop.f32.mrb[0].mxu0
    %v1081 = vadd.f32 0.0, %v1080
    %v1082 = vpop.f32.mrb[0].mxu0
    %v1083 = vadd.f32 0.0, %v1082
    %1084 = vmatprep.mubr.f32.mxu0 0.0
    %1085 = vmatmul.mubr.f32.gmra.mrb[0].mxu0 %v94
    %v1086 = vpop.f32.mrb[0].mxu0
    %v1087 = vadd.f32 0.0, %v1086
    %v1088 = vpop.f32.mrb[0].mxu0
    %v1089 = vadd.f32 0.0, %v1088
    %1090 = vdwg.mxu0
    %s1091 = scalar_lea.vmem [#allocation2], 576
    %1092 = vst [vmem:[%s1091] sm:$0xff] %v1057
    %1093 = vst [vmem:[%s1091 + $0x8] sm:$0xff] %v1059
    %1094 = vst [vmem:[%s1091 + $0x10] sm:$0xff] %v1063
    %1095 = vst [vmem:[%s1091 + $0x18] sm:$0xff] %v1065
    %1096 = vst [vmem:[%s1091 + $0x20] sm:$0xff] %v1069
    %1097 = vst [vmem:[%s1091 + $0x28] sm:$0xff] %v1071
    %1098 = vst [vmem:[%s1091 + $0x30] sm:$0xff] %v1075
    %1099 = vst [vmem:[%s1091 + $0x38] sm:$0xff] %v1077
    %1100 = vst [vmem:[%s1091 + $0x40] sm:$0xff] %v1081
    %1101 = vst [vmem:[%s1091 + $0x48] sm:$0xff] %v1083
    %1102 = vst [vmem:[%s1091 + $0x50] sm:$0xff] %v1087
    %1103 = vst [vmem:[%s1091 + $0x58] sm:$0xff] %v1089
    %s1104 = scalar_lea.vmem %s0, 7
    %v1105 = vld [vmem:[%s1104] ss:$8 sm:$0x3]
    %v1106 = vlaneseq
    %v1107 = vshrl.u32 %v1106, 7
    %v1108 = vsub.s32 0, %v1107
    %v1109 = vrot.slane %v1105, %v1108
    %v1110 = vlaneseq
    %v1111 = vshrl.u32 %v1110, 7
    %v1112 = vsub.s32 1, %v1111
    %v1113 = vrot.slane %v1105, %v1112
    %vm1114 = vcmp.eq.s32.totalorder %v1109, %v47
    %vm1115 = vcmp.eq.s32.totalorder %v1113, %v47
    %vm1116 = vcmp.eq.s32.totalorder %v1109, %v48
    %vm1117 = vcmp.eq.s32.totalorder %v1113, %v48
    %vm1118 = vcmp.eq.s32.totalorder %v1109, %v49
    %vm1119 = vcmp.eq.s32.totalorder %v1113, %v49
    %v1120 = vsel %vm1114, 1, 0
    %v1121 = vsel %vm1115, 1, 0
    %v1122 = vsel %vm1116, 1, 0
    %v1123 = vsel %vm1117, 1, 0
    %v1124 = vsel %vm1118, 1, 0
    %v1125 = vsel %vm1119, 1, 0
    %v1126 = vcvt.s32.f32 %v1120
    %v1127 = vcvt.s32.f32 %v1121
    %v1128 = vcvt.s32.f32 %v1122
    %v1129 = vcvt.s32.f32 %v1123
    %v1130 = vcvt.s32.f32 %v1124
    %v1131 = vcvt.s32.f32 %v1125
    %v1133 = vsel %vm96, %v1130, 0
    %v1136 = vsel %vm96, %v1131, 0
    %1138 = vmatprep.subr.mxu0 %v1127
    %1139 = vmatpush1.msra.mxu0 %v1126
    %1140 = vmatprep.subr.mxu0 %v1129
    %1141 = vmatpush1.msra.mxu0 %v1128
    %1142 = vmatprep.subr.mxu0 %v1136
    %1143 = vmatpush1.msra.mxu0 %v1133
    %1144 = vmatprep.subr.mxu0 0.0
    %1145 = vmatpush1.msra.mxu0 0.0
    %1146 = vmatprep.subr.mxu0 0.0
    %1147 = vmatpush1.msra.mxu0 0.0
    %1148 = vmatprep.subr.mxu0 0.0
    %1149 = vmatpush1.msra.mxu0 0.0
    %1150 = vmatprep.subr.mxu0 0.0
    %1151 = vmatpush1.msra.mxu0 0.0
    %1152 = vmatprep.subr.mxu0 0.0
    %1153 = vmatpush1.msra.mxu0 0.0
    %1154 = vmatprep.subr.mxu0 0.0
    %1155 = vmatpush1.msra.mxu0 0.0
    %1156 = vmatprep.subr.mxu0 0.0
    %1157 = vmatpush1.msra.mxu0 0.0
    %1158 = vmatprep.subr.mxu0 0.0
    %1159 = vmatpush1.msra.mxu0 0.0
    %1160 = vmatprep.subr.mxu0 0.0
    %1161 = vmatpush1.msra.mxu0 0.0
    %1162 = vmatprep.subr.mxu0 0.0
    %1163 = vmatpush1.msra.mxu0 0.0
    %1164 = vmatprep.subr.mxu0 0.0
    %1165 = vmatpush1.msra.mxu0 0.0
    %1166 = vmatprep.subr.mxu0 0.0
    %1167 = vmatpush1.msra.mxu0 0.0
    %1168 = vmatprep.subr.mxu0 0.0
    %1169 = vmatpush1.msra.mxu0 0.0
    %1170 = vmatprep.subr.mxu0 0.0
    %1171 = vmatpush1.msra.mxu0 0.0
    %1172 = vmatprep.subr.mxu0 0.0
    %1173 = vmatpush1.msra.mxu0 0.0
    %1174 = vmatprep.subr.mxu0 0.0
    %1175 = vmatpush1.msra.mxu0 0.0
    %1176 = vmatprep.subr.mxu0 0.0
    %1177 = vmatpush1.msra.mxu0 0.0
    %1178 = vmatprep.subr.mxu0 0.0
    %1179 = vmatpush1.msra.mxu0 0.0
    %1180 = vmatprep.subr.mxu0 0.0
    %1181 = vmatpush1.msra.mxu0 0.0
    %1182 = vmatprep.subr.mxu0 0.0
    %1183 = vmatpush1.msra.mxu0 0.0
    %1184 = vmatprep.subr.mxu0 0.0
    %1185 = vmatpush1.msra.mxu0 0.0
    %1186 = vmatprep.subr.mxu0 0.0
    %1187 = vmatpush1.msra.mxu0 0.0
    %1188 = vmatprep.subr.mxu0 0.0
    %1189 = vmatpush1.msra.mxu0 0.0
    %1190 = vmatprep.subr.mxu0 0.0
    %1191 = vmatpush1.msra.mxu0 0.0
    %1192 = vmatprep.subr.mxu0 0.0
    %1193 = vmatpush1.msra.mxu0 0.0
    %1194 = vmatprep.subr.mxu0 0.0
    %1195 = vmatpush1.msra.mxu0 0.0
    %1196 = vmatprep.subr.mxu0 0.0
    %1197 = vmatpush1.msra.mxu0 0.0
    %1198 = vmatprep.subr.mxu0 0.0
    %1199 = vmatpush1.msra.mxu0 0.0
    %1200 = vmatprep.subr.mxu0 0.0
    %1201 = vmatpush1.msra.mxu0 0.0
    %1202 = vmatprep.mubr.f32.mxu0 0.0
    %1203 = vmatmul.mubr.f32.gmra.mrb[0].mxu0 %v79
    %v1204 = vpop.f32.mrb[0].mxu0
    %v1205 = vadd.f32 0.0, %v1204
    %v1206 = vpop.f32.mrb[0].mxu0
    %v1207 = vadd.f32 0.0, %v1206
    %1208 = vmatprep.mubr.f32.mxu0 0.0
    %1209 = vmatmul.mubr.f32.gmra.mrb[0].mxu0 %v82
    %v1210 = vpop.f32.mrb[0].mxu0
    %v1211 = vadd.f32 0.0, %v1210
    %v1212 = vpop.f32.mrb[0].mxu0
    %v1213 = vadd.f32 0.0, %v1212
    %1214 = vmatprep.mubr.f32.mxu0 0.0
    %1215 = vmatmul.mubr.f32.gmra.mrb[0].mxu0 %v85
    %v1216 = vpop.f32.mrb[0].mxu0
    %v1217 = vadd.f32 0.0, %v1216
    %v1218 = vpop.f32.mrb[0].mxu0
    %v1219 = vadd.f32 0.0, %v1218
    %1220 = vmatprep.mubr.f32.mxu0 0.0
    %1221 = vmatmul.mubr.f32.gmra.mrb[0].mxu0 %v88
    %v1222 = vpop.f32.mrb[0].mxu0
    %v1223 = vadd.f32 0.0, %v1222
    %v1224 = vpop.f32.mrb[0].mxu0
    %v1225 = vadd.f32 0.0, %v1224
    %1226 = vmatprep.mubr.f32.mxu0 0.0
    %1227 = vmatmul.mubr.f32.gmra.mrb[0].mxu0 %v91
    %v1228 = vpop.f32.mrb[0].mxu0
    %v1229 = vadd.f32 0.0, %v1228
    %v1230 = vpop.f32.mrb[0].mxu0
    %v1231 = vadd.f32 0.0, %v1230
    %1232 = vmatprep.mubr.f32.mxu0 0.0
    %1233 = vmatmul.mubr.f32.gmra.mrb[0].mxu0 %v94
    %v1234 = vpop.f32.mrb[0].mxu0
    %v1235 = vadd.f32 0.0, %v1234
    %v1236 = vpop.f32.mrb[0].mxu0
    %v1237 = vadd.f32 0.0, %v1236
    %1238 = vdwg.mxu0
    %s1239 = scalar_lea.vmem [#allocation2], 672
    %1240 = vst [vmem:[%s1239] sm:$0xff] %v1205
    %1241 = vst [vmem:[%s1239 + $0x8] sm:$0xff] %v1207
    %1242 = vst [vmem:[%s1239 + $0x10] sm:$0xff] %v1211
    %1243 = vst [vmem:[%s1239 + $0x18] sm:$0xff] %v1213
    %1244 = vst [vmem:[%s1239 + $0x20] sm:$0xff] %v1217
    %1245 = vst [vmem:[%s1239 + $0x28] sm:$0xff] %v1219
    %1246 = vst [vmem:[%s1239 + $0x30] sm:$0xff] %v1223
    %1247 = vst [vmem:[%s1239 + $0x38] sm:$0xff] %v1225
    %1248 = vst [vmem:[%s1239 + $0x40] sm:$0xff] %v1229
    %1249 = vst [vmem:[%s1239 + $0x48] sm:$0xff] %v1231
    %1250 = vst [vmem:[%s1239 + $0x50] sm:$0xff] %v1235
    %1251 = vst [vmem:[%s1239 + $0x58] sm:$0xff] %v1237
    %v1252 = vld [vmem:[#allocation2] sm:$0xff]
    %v1253 = vld [vmem:[#allocation2 + $0x8] sm:$0xff]
    %v1254 = vld [vmem:[#allocation2 + $0x10] sm:$0xff]
    %v1255 = vld [vmem:[#allocation2 + $0x18] sm:$0xff]
    %v1256 = vld [vmem:[#allocation2 + $0x20] sm:$0xff]
    %v1257 = vld [vmem:[#allocation2 + $0x28] sm:$0xff]
    %v1258 = vld [vmem:[#allocation2 + $0x30] sm:$0xff]
    %v1259 = vld [vmem:[#allocation2 + $0x38] sm:$0xff]
    %v1260 = vld [vmem:[#allocation2 + $0x40] sm:$0xff]
    %v1261 = vld [vmem:[#allocation2 + $0x48] sm:$0xff]
    %v1262 = vld [vmem:[#allocation2 + $0x50] sm:$0xff]
    %v1263 = vld [vmem:[#allocation2 + $0x58] sm:$0xff]
    %vm1264 = vcmask 130048
    %v1266 = vsel %vm1264, %v27, 0
    %v1269 = vsel %vm1264, %v28, 0
    %v1272 = vsel %vm1264, %v29, 0
    %v1275 = vsel %vm1264, %v30, 0
    %v1278 = vsel %vm1264, %v31, 0
    %v1281 = vsel %vm1264, %v32, 0
    %1283 = vmatprep.subr.mxu0 0.0
    %1284 = vmatpush1.msra.mxu0 0.0
    %1285 = vmatprep.subr.mxu0 0.0
    %1286 = vmatpush1.msra.mxu0 0.0
    %1287 = vmatprep.subr.mxu0 0.0
    %1288 = vmatpush1.msra.mxu0 0.0
    %1289 = vmatprep.subr.mxu0 0.0
    %1290 = vmatpush1.msra.mxu0 0.0
    %1291 = vmatprep.subr.mxu0 0.0
    %1292 = vmatpush1.msra.mxu0 0.0
    %1293 = vmatprep.subr.mxu0 0.0
    %1294 = vmatpush1.msra.mxu0 0.0
    %1295 = vmatprep.subr.mxu0 0.0
    %1296 = vmatpush1.msra.mxu0 0.0
    %1297 = vmatprep.subr.mxu0 0.0
    %1298 = vmatpush1.msra.mxu0 0.0
    %1299 = vmatprep.subr.mxu0 0.0
    %1300 = vmatpush1.msra.mxu0 0.0
    %1301 = vmatprep.subr.mxu0 0.0
    %1302 = vmatpush1.msra.mxu0 0.0
    %1303 = vmatprep.subr.mxu0 0.0
    %1304 = vmatpush1.msra.mxu0 0.0
    %1305 = vmatprep.subr.mxu0 0.0
    %1306 = vmatpush1.msra.mxu0 0.0
    %1307 = vmatprep.subr.mxu0 0.0
    %1308 = vmatpush1.msra.mxu0 0.0
    %1309 = vmatprep.subr.mxu0 0.0
    %1310 = vmatpush1.msra.mxu0 0.0
    %1311 = vmatprep.subr.mxu0 0.0
    %1312 = vmatpush1.msra.mxu0 0.0
    %1313 = vmatprep.subr.mxu0 0.0
    %1314 = vmatpush1.msra.mxu0 0.0
    %1315 = vmatprep.subr.mxu0 0.0
    %1316 = vmatpush1.msra.mxu0 0.0
    %1317 = vmatprep.subr.mxu0 0.0
    %1318 = vmatpush1.msra.mxu0 0.0
    %1319 = vmatprep.subr.mxu0 0.0
    %1320 = vmatpush1.msra.mxu0 0.0
    %1321 = vmatprep.subr.mxu0 0.0
    %1322 = vmatpush1.msra.mxu0 0.0
    %1323 = vmatprep.subr.mxu0 0.0
    %1324 = vmatpush1.msra.mxu0 0.0
    %1325 = vmatprep.subr.mxu0 0.0
    %1326 = vmatpush1.msra.mxu0 0.0
    %1327 = vmatprep.subr.mxu0 0.0
    %1328 = vmatpush1.msra.mxu0 0.0
    %1329 = vmatprep.subr.mxu0 0.0
    %1330 = vmatpush1.msra.mxu0 0.0
    %1331 = vmatprep.subr.mxu0 0.0
    %1332 = vmatpush1.msra.mxu0 0.0
    %1333 = vmatprep.subr.mxu0 0.0
    %1334 = vmatpush1.msra.mxu0 0.0
    %1335 = vmatprep.subr.mxu0 0.0
    %1336 = vmatpush1.msra.mxu0 0.0
    %1337 = vmatprep.subr.mxu0 0.0
    %1338 = vmatpush1.msra.mxu0 0.0
    %1339 = vmatprep.subr.mxu0 0.0
    %1340 = vmatpush1.msra.mxu0 0.0
    %1341 = vmatprep.subr.mxu0 0.0
    %1342 = vmatpush1.msra.mxu0 0.0
    %1343 = vmatprep.subr.mxu0 0.0
    %1344 = vmatpush1.msra.mxu0 0.0
    %1345 = vmatprep.subr.mxu0 0.0
    %1346 = vmatpush1.msra.mxu0 0.0
    %1347 = vmatprep.mubr.f32.mxu0 0.0
    %1348 = vmatmul.mubr.f32.gmra.mrb[0].mxu0 %v1266
    %v1349 = vpop.f32.mrb[0].mxu0
    %v1350 = vadd.f32 0.0, %v1349
    %v1351 = vpop.f32.mrb[0].mxu0
    %v1352 = vadd.f32 0.0, %v1351
    %1353 = vmatprep.mubr.f32.mxu0 0.0
    %1354 = vmatmul.mubr.f32.gmra.mrb[0].mxu0 %v1269
    %v1355 = vpop.f32.mrb[0].mxu0
    %v1356 = vadd.f32 0.0, %v1355
    %v1357 = vpop.f32.mrb[0].mxu0
    %v1358 = vadd.f32 0.0, %v1357
    %1359 = vmatprep.mubr.f32.mxu0 0.0
    %1360 = vmatmul.mubr.f32.gmra.mrb[0].mxu0 %v1272
    %v1361 = vpop.f32.mrb[0].mxu0
    %v1362 = vadd.f32 0.0, %v1361
    %v1363 = vpop.f32.mrb[0].mxu0
    %v1364 = vadd.f32 0.0, %v1363
    %1365 = vmatprep.mubr.f32.mxu0 0.0
    %1366 = vmatmul.mubr.f32.gmra.mrb[0].mxu0 %v1275
    %v1367 = vpop.f32.mrb[0].mxu0
    %v1368 = vadd.f32 0.0, %v1367
    %v1369 = vpop.f32.mrb[0].mxu0
    %v1370 = vadd.f32 0.0, %v1369
    %1371 = vmatprep.mubr.f32.mxu0 0.0
    %1372 = vmatmul.mubr.f32.gmra.mrb[0].mxu0 %v1278
    %v1373 = vpop.f32.mrb[0].mxu0
    %v1374 = vadd.f32 0.0, %v1373
    %v1375 = vpop.f32.mrb[0].mxu0
    %v1376 = vadd.f32 0.0, %v1375
    %1377 = vmatprep.mubr.f32.mxu0 0.0
    %1378 = vmatmul.mubr.f32.gmra.mrb[0].mxu0 %v1281
    %v1379 = vpop.f32.mrb[0].mxu0
    %v1380 = vadd.f32 0.0, %v1379
    %v1381 = vpop.f32.mrb[0].mxu0
    %v1382 = vadd.f32 0.0, %v1381
    %1383 = vdwg.mxu0
    %v1384 = vadd.f32 %v1252, %v1350
    %v1385 = vadd.f32 %v1253, %v1352
    %v1386 = vadd.f32 %v1254, %v1356
    %v1387 = vadd.f32 %v1255, %v1358
    %v1388 = vadd.f32 %v1256, %v1362
    %v1389 = vadd.f32 %v1257, %v1364
    %v1390 = vadd.f32 %v1258, %v1368
    %v1391 = vadd.f32 %v1259, %v1370
    %v1392 = vmul.f32 %v1384, 0.5
    %v1393 = vmul.f32 %v1385, 0.5
    %v1394 = vmul.f32 %v1386, 0.5
    %v1395 = vmul.f32 %v1387, 0.5
    %v1396 = vmul.f32 %v1388, 0.5
    %v1397 = vmul.f32 %v1389, 0.5
    %v1398 = vmul.f32 %v1390, 0.5
    %v1399 = vmul.f32 %v1391, 0.5
    %v1400 = vtanh.pop %v1392
    %v1401 = vtanh.pop %v1393
    %v1402 = vtanh.pop %v1394
    %v1403 = vtanh.pop %v1395
    %v1404 = vtanh.pop %v1396
    %v1405 = vtanh.pop %v1397
    %v1406 = vtanh.pop %v1398
    %v1407 = vtanh.pop %v1399
    %v1408 = vmul.f32 %v1400, 0.5
    %v1409 = vmul.f32 %v1401, 0.5
    %v1410 = vmul.f32 %v1402, 0.5
    %v1411 = vmul.f32 %v1403, 0.5
    %v1412 = vmul.f32 %v1404, 0.5
    %v1413 = vmul.f32 %v1405, 0.5
    %v1414 = vmul.f32 %v1406, 0.5
    %v1415 = vmul.f32 %v1407, 0.5
    %v1416 = vadd.f32 %v1408, 0.5
    %v1417 = vadd.f32 %v1409, 0.5
    %v1418 = vadd.f32 %v1410, 0.5
    %v1419 = vadd.f32 %v1411, 0.5
    %v1420 = vadd.f32 %v1412, 0.5
    %v1421 = vadd.f32 %v1413, 0.5
    %v1422 = vadd.f32 %v1414, 0.5
    %v1423 = vadd.f32 %v1415, 0.5
    %v1424 = vadd.f32 %v1374, %v39
    %v1425 = vadd.f32 %v1376, %v39
    %v1426 = vadd.f32 %v1380, %v44
    %v1427 = vadd.f32 %v1382, %v44
    %v1428 = vmul.f32 %v1416, %v1424
    %v1429 = vmul.f32 %v1417, %v1425
    %v1430 = vmul.f32 %v1418, %v1426
    %v1431 = vmul.f32 %v1419, %v1427
    %v1432 = vadd.f32 %v1260, %v1428
    %v1433 = vadd.f32 %v1261, %v1429
    %v1434 = vadd.f32 %v1262, %v1430
    %v1435 = vadd.f32 %v1263, %v1431
    %v1436 = vtanh.pop %v1432
    %v1437 = vtanh.pop %v1433
    %v1438 = vtanh.pop %v1434
    %v1439 = vtanh.pop %v1435
    %v1440 = vsub.f32 0.0, %v1436
    %v1441 = vsub.f32 0.0, %v1437
    %v1442 = vsub.f32 0.0, %v1438
    %v1443 = vsub.f32 0.0, %v1439
    %v1444 = vmul.f32 %v1420, %v1440
    %v1445 = vmul.f32 %v1421, %v1441
    %v1446 = vmul.f32 %v1422, %v1442
    %v1447 = vmul.f32 %v1423, %v1443
    %v1448 = vadd.f32 %v1436, %v1444
    %v1449 = vadd.f32 %v1437, %v1445
    %v1450 = vadd.f32 %v1438, %v1446
    %v1451 = vadd.f32 %v1439, %v1447
    %vm1452 = vcmp.gt.s32.totalorder %v33, 0
    %v1453 = vsel %vm1452, 1, 0
    %v1454 = vlaneseq
    %v1455 = vshrl.u32 %v1454, 7
    %v1456 = vsub.s32 0, %v1455
    %v1457 = vrot.slane %v1453, %v1456
    %v1458 = vlaneseq
    %v1459 = vshrl.u32 %v1458, 7
    %v1460 = vsub.s32 1, %v1459
    %v1461 = vrot.slane %v1453, %v1460
    %vm1462 = vcmp.eq.s32.totalorder %v1457, 1
    %vm1463 = vcmp.eq.s32.totalorder %v1461, 1
    %v1464 = vsel %vm1462, %v1448, 0.0
    %v1465 = vsel %vm1463, %v1449, 0.0
    %v1466 = vsel %vm1462, %v1450, 0.0
    %v1467 = vsel %vm1463, %v1451, 0.0
    %v1468 = vld [vmem:[%s351] sm:$0xff]
    %v1469 = vld [vmem:[%s351 + $0x8] sm:$0xff]
    %v1470 = vld [vmem:[%s351 + $0x10] sm:$0xff]
    %v1471 = vld [vmem:[%s351 + $0x18] sm:$0xff]
    %v1472 = vld [vmem:[%s351 + $0x20] sm:$0xff]
    %v1473 = vld [vmem:[%s351 + $0x28] sm:$0xff]
    %v1474 = vld [vmem:[%s351 + $0x30] sm:$0xff]
    %v1475 = vld [vmem:[%s351 + $0x38] sm:$0xff]
    %v1476 = vld [vmem:[%s351 + $0x40] sm:$0xff]
    %v1477 = vld [vmem:[%s351 + $0x48] sm:$0xff]
    %v1478 = vld [vmem:[%s351 + $0x50] sm:$0xff]
    %v1479 = vld [vmem:[%s351 + $0x58] sm:$0xff]
    %1480 = vmatprep.subr.mxu0 %v1465
    %1481 = vmatpush1.msra.mxu0 %v1464
    %1482 = vmatprep.subr.mxu0 %v1467
    %1483 = vmatpush1.msra.mxu0 %v1466
    %1484 = vmatprep.subr.mxu0 0.0
    %1485 = vmatpush1.msra.mxu0 0.0
    %1486 = vmatprep.subr.mxu0 0.0
    %1487 = vmatpush1.msra.mxu0 0.0
    %1488 = vmatprep.subr.mxu0 0.0
    %1489 = vmatpush1.msra.mxu0 0.0
    %1490 = vmatprep.subr.mxu0 0.0
    %1491 = vmatpush1.msra.mxu0 0.0
    %1492 = vmatprep.subr.mxu0 0.0
    %1493 = vmatpush1.msra.mxu0 0.0
    %1494 = vmatprep.subr.mxu0 0.0
    %1495 = vmatpush1.msra.mxu0 0.0
    %1496 = vmatprep.subr.mxu0 0.0
    %1497 = vmatpush1.msra.mxu0 0.0
    %1498 = vmatprep.subr.mxu0 0.0
    %1499 = vmatpush1.msra.mxu0 0.0
    %1500 = vmatprep.subr.mxu0 0.0
    %1501 = vmatpush1.msra.mxu0 0.0
    %1502 = vmatprep.subr.mxu0 0.0
    %1503 = vmatpush1.msra.mxu0 0.0
    %1504 = vmatprep.subr.mxu0 0.0
    %1505 = vmatpush1.msra.mxu0 0.0
    %1506 = vmatprep.subr.mxu0 0.0
    %1507 = vmatpush1.msra.mxu0 0.0
    %1508 = vmatprep.subr.mxu0 0.0
    %1509 = vmatpush1.msra.mxu0 0.0
    %1510 = vmatprep.subr.mxu0 0.0
    %1511 = vmatpush1.msra.mxu0 0.0
    %1512 = vmatprep.subr.mxu0 0.0
    %1513 = vmatpush1.msra.mxu0 0.0
    %1514 = vmatprep.subr.mxu0 0.0
    %1515 = vmatpush1.msra.mxu0 0.0
    %1516 = vmatprep.subr.mxu0 0.0
    %1517 = vmatpush1.msra.mxu0 0.0
    %1518 = vmatprep.subr.mxu0 0.0
    %1519 = vmatpush1.msra.mxu0 0.0
    %1520 = vmatprep.subr.mxu0 0.0
    %1521 = vmatpush1.msra.mxu0 0.0
    %1522 = vmatprep.subr.mxu0 0.0
    %1523 = vmatpush1.msra.mxu0 0.0
    %1524 = vmatprep.subr.mxu0 0.0
    %1525 = vmatpush1.msra.mxu0 0.0
    %1526 = vmatprep.subr.mxu0 0.0
    %1527 = vmatpush1.msra.mxu0 0.0
    %1528 = vmatprep.subr.mxu0 0.0
    %1529 = vmatpush1.msra.mxu0 0.0
    %1530 = vmatprep.subr.mxu0 0.0
    %1531 = vmatpush1.msra.mxu0 0.0
    %1532 = vmatprep.subr.mxu0 0.0
    %1533 = vmatpush1.msra.mxu0 0.0
    %1534 = vmatprep.subr.mxu0 0.0
    %1535 = vmatpush1.msra.mxu0 0.0
    %1536 = vmatprep.subr.mxu0 0.0
    %1537 = vmatpush1.msra.mxu0 0.0
    %1538 = vmatprep.subr.mxu0 0.0
    %1539 = vmatpush1.msra.mxu0 0.0
    %1540 = vmatprep.subr.mxu0 0.0
    %1541 = vmatpush1.msra.mxu0 0.0
    %1542 = vmatprep.subr.mxu0 0.0
    %1543 = vmatpush1.msra.mxu0 0.0
    %1544 = vmatprep.mubr.f32.mxu0 0.0
    %1545 = vmatmul.mubr.f32.gmra.mrb[0].mxu0 %v1266
    %v1546 = vpop.f32.mrb[0].mxu0
    %v1547 = vadd.f32 0.0, %v1546
    %v1548 = vpop.f32.mrb[0].mxu0
    %v1549 = vadd.f32 0.0, %v1548
    %1550 = vmatprep.mubr.f32.mxu0 0.0
    %1551 = vmatmul.mubr.f32.gmra.mrb[0].mxu0 %v1269
    %v1552 = vpop.f32.mrb[0].mxu0
    %v1553 = vadd.f32 0.0, %v1552
    %v1554 = vpop.f32.mrb[0].mxu0
    %v1555 = vadd.f32 0.0, %v1554
    %1556 = vmatprep.mubr.f32.mxu0 0.0
    %1557 = vmatmul.mubr.f32.gmra.mrb[0].mxu0 %v1272
    %v1558 = vpop.f32.mrb[0].mxu0
    %v1559 = vadd.f32 0.0, %v1558
    %v1560 = vpop.f32.mrb[0].mxu0
    %v1561 = vadd.f32 0.0, %v1560
    %1562 = vmatprep.mubr.f32.mxu0 0.0
    %1563 = vmatmul.mubr.f32.gmra.mrb[0].mxu0 %v1275
    %v1564 = vpop.f32.mrb[0].mxu0
    %v1565 = vadd.f32 0.0, %v1564
    %v1566 = vpop.f32.mrb[0].mxu0
    %v1567 = vadd.f32 0.0, %v1566
    %1568 = vmatprep.mubr.f32.mxu0 0.0
    %1569 = vmatmul.mubr.f32.gmra.mrb[0].mxu0 %v1278
    %v1570 = vpop.f32.mrb[0].mxu0
    %v1571 = vadd.f32 0.0, %v1570
    %v1572 = vpop.f32.mrb[0].mxu0
    %v1573 = vadd.f32 0.0, %v1572
    %1574 = vmatprep.mubr.f32.mxu0 0.0
    %1575 = vmatmul.mubr.f32.gmra.mrb[0].mxu0 %v1281
    %v1576 = vpop.f32.mrb[0].mxu0
    %v1577 = vadd.f32 0.0, %v1576
    %v1578 = vpop.f32.mrb[0].mxu0
    %v1579 = vadd.f32 0.0, %v1578
    %1580 = vdwg.mxu0
    %v1581 = vadd.f32 %v1468, %v1547
    %v1582 = vadd.f32 %v1469, %v1549
    %v1583 = vadd.f32 %v1470, %v1553
    %v1584 = vadd.f32 %v1471, %v1555
    %v1585 = vadd.f32 %v1472, %v1559
    %v1586 = vadd.f32 %v1473, %v1561
    %v1587 = vadd.f32 %v1474, %v1565
    %v1588 = vadd.f32 %v1475, %v1567
    %v1589 = vmul.f32 %v1581, 0.5
    %v1590 = vmul.f32 %v1582, 0.5
    %v1591 = vmul.f32 %v1583, 0.5
    %v1592 = vmul.f32 %v1584, 0.5
    %v1593 = vmul.f32 %v1585, 0.5
    %v1594 = vmul.f32 %v1586, 0.5
    %v1595 = vmul.f32 %v1587, 0.5
    %v1596 = vmul.f32 %v1588, 0.5
    %v1597 = vtanh.pop %v1589
    %v1598 = vtanh.pop %v1590
    %v1599 = vtanh.pop %v1591
    %v1600 = vtanh.pop %v1592
    %v1601 = vtanh.pop %v1593
    %v1602 = vtanh.pop %v1594
    %v1603 = vtanh.pop %v1595
    %v1604 = vtanh.pop %v1596
    %v1605 = vmul.f32 %v1597, 0.5
    %v1606 = vmul.f32 %v1598, 0.5
    %v1607 = vmul.f32 %v1599, 0.5
    %v1608 = vmul.f32 %v1600, 0.5
    %v1609 = vmul.f32 %v1601, 0.5
    %v1610 = vmul.f32 %v1602, 0.5
    %v1611 = vmul.f32 %v1603, 0.5
    %v1612 = vmul.f32 %v1604, 0.5
    %v1613 = vadd.f32 %v1605, 0.5
    %v1614 = vadd.f32 %v1606, 0.5
    %v1615 = vadd.f32 %v1607, 0.5
    %v1616 = vadd.f32 %v1608, 0.5
    %v1617 = vadd.f32 %v1609, 0.5
    %v1618 = vadd.f32 %v1610, 0.5
    %v1619 = vadd.f32 %v1611, 0.5
    %v1620 = vadd.f32 %v1612, 0.5
    %v1621 = vadd.f32 %v1571, %v39
    %v1622 = vadd.f32 %v1573, %v39
    %v1623 = vadd.f32 %v1577, %v44
    %v1624 = vadd.f32 %v1579, %v44
    %v1625 = vmul.f32 %v1613, %v1621
    %v1626 = vmul.f32 %v1614, %v1622
    %v1627 = vmul.f32 %v1615, %v1623
    %v1628 = vmul.f32 %v1616, %v1624
    %v1629 = vadd.f32 %v1476, %v1625
    %v1630 = vadd.f32 %v1477, %v1626
    %v1631 = vadd.f32 %v1478, %v1627
    %v1632 = vadd.f32 %v1479, %v1628
    %v1633 = vtanh.pop %v1629
    %v1634 = vtanh.pop %v1630
    %v1635 = vtanh.pop %v1631
    %v1636 = vtanh.pop %v1632
    %v1637 = vsub.f32 %v1464, %v1633
    %v1638 = vsub.f32 %v1465, %v1634
    %v1639 = vsub.f32 %v1466, %v1635
    %v1640 = vsub.f32 %v1467, %v1636
    %v1641 = vmul.f32 %v1617, %v1637
    %v1642 = vmul.f32 %v1618, %v1638
    %v1643 = vmul.f32 %v1619, %v1639
    %v1644 = vmul.f32 %v1620, %v1640
    %v1645 = vadd.f32 %v1633, %v1641
    %v1646 = vadd.f32 %v1634, %v1642
    %v1647 = vadd.f32 %v1635, %v1643
    %v1648 = vadd.f32 %v1636, %v1644
    %vm1649 = vcmp.gt.s32.totalorder %v33, 1
    %v1650 = vsel %vm1649, 1, 0
    %v1651 = vlaneseq
    %v1652 = vshrl.u32 %v1651, 7
    %v1653 = vsub.s32 0, %v1652
    %v1654 = vrot.slane %v1650, %v1653
    %v1655 = vlaneseq
    %v1656 = vshrl.u32 %v1655, 7
    %v1657 = vsub.s32 1, %v1656
    %v1658 = vrot.slane %v1650, %v1657
    %vm1659 = vcmp.eq.s32.totalorder %v1654, 1
    %vm1660 = vcmp.eq.s32.totalorder %v1658, 1
    %v1661 = vsel %vm1659, %v1645, %v1464
    %v1662 = vsel %vm1660, %v1646, %v1465
    %v1663 = vsel %vm1659, %v1647, %v1466
    %v1664 = vsel %vm1660, %v1648, %v1467
    %v1665 = vld [vmem:[%s499] sm:$0xff]
    %v1666 = vld [vmem:[%s499 + $0x8] sm:$0xff]
    %v1667 = vld [vmem:[%s499 + $0x10] sm:$0xff]
    %v1668 = vld [vmem:[%s499 + $0x18] sm:$0xff]
    %v1669 = vld [vmem:[%s499 + $0x20] sm:$0xff]
    %v1670 = vld [vmem:[%s499 + $0x28] sm:$0xff]
    %v1671 = vld [vmem:[%s499 + $0x30] sm:$0xff]
    %v1672 = vld [vmem:[%s499 + $0x38] sm:$0xff]
    %v1673 = vld [vmem:[%s499 + $0x40] sm:$0xff]
    %v1674 = vld [vmem:[%s499 + $0x48] sm:$0xff]
    %v1675 = vld [vmem:[%s499 + $0x50] sm:$0xff]
    %v1676 = vld [vmem:[%s499 + $0x58] sm:$0xff]
    %1677 = vmatprep.subr.mxu0 %v1662
    %1678 = vmatpush1.msra.mxu0 %v1661
    %1679 = vmatprep.subr.mxu0 %v1664
    %1680 = vmatpush1.msra.mxu0 %v1663
    %1681 = vmatprep.subr.mxu0 0.0
    %1682 = vmatpush1.msra.mxu0 0.0
    %1683 = vmatprep.subr.mxu0 0.0
    %1684 = vmatpush1.msra.mxu0 0.0
    %1685 = vmatprep.subr.mxu0 0.0
    %1686 = vmatpush1.msra.mxu0 0.0
    %1687 = vmatprep.subr.mxu0 0.0
    %1688 = vmatpush1.msra.mxu0 0.0
    %1689 = vmatprep.subr.mxu0 0.0
    %1690 = vmatpush1.msra.mxu0 0.0
    %1691 = vmatprep.subr.mxu0 0.0
    %1692 = vmatpush1.msra.mxu0 0.0
    %1693 = vmatprep.subr.mxu0 0.0
    %1694 = vmatpush1.msra.mxu0 0.0
    %1695 = vmatprep.subr.mxu0 0.0
    %1696 = vmatpush1.msra.mxu0 0.0
    %1697 = vmatprep.subr.mxu0 0.0
    %1698 = vmatpush1.msra.mxu0 0.0
    %1699 = vmatprep.subr.mxu0 0.0
    %1700 = vmatpush1.msra.mxu0 0.0
    %1701 = vmatprep.subr.mxu0 0.0
    %1702 = vmatpush1.msra.mxu0 0.0
    %1703 = vmatprep.subr.mxu0 0.0
    %1704 = vmatpush1.msra.mxu0 0.0
    %1705 = vmatprep.subr.mxu0 0.0
    %1706 = vmatpush1.msra.mxu0 0.0
    %1707 = vmatprep.subr.mxu0 0.0
    %1708 = vmatpush1.msra.mxu0 0.0
    %1709 = vmatprep.subr.mxu0 0.0
    %1710 = vmatpush1.msra.mxu0 0.0
    %1711 = vmatprep.subr.mxu0 0.0
    %1712 = vmatpush1.msra.mxu0 0.0
    %1713 = vmatprep.subr.mxu0 0.0
    %1714 = vmatpush1.msra.mxu0 0.0
    %1715 = vmatprep.subr.mxu0 0.0
    %1716 = vmatpush1.msra.mxu0 0.0
    %1717 = vmatprep.subr.mxu0 0.0
    %1718 = vmatpush1.msra.mxu0 0.0
    %1719 = vmatprep.subr.mxu0 0.0
    %1720 = vmatpush1.msra.mxu0 0.0
    %1721 = vmatprep.subr.mxu0 0.0
    %1722 = vmatpush1.msra.mxu0 0.0
    %1723 = vmatprep.subr.mxu0 0.0
    %1724 = vmatpush1.msra.mxu0 0.0
    %1725 = vmatprep.subr.mxu0 0.0
    %1726 = vmatpush1.msra.mxu0 0.0
    %1727 = vmatprep.subr.mxu0 0.0
    %1728 = vmatpush1.msra.mxu0 0.0
    %1729 = vmatprep.subr.mxu0 0.0
    %1730 = vmatpush1.msra.mxu0 0.0
    %1731 = vmatprep.subr.mxu0 0.0
    %1732 = vmatpush1.msra.mxu0 0.0
    %1733 = vmatprep.subr.mxu0 0.0
    %1734 = vmatpush1.msra.mxu0 0.0
    %1735 = vmatprep.subr.mxu0 0.0
    %1736 = vmatpush1.msra.mxu0 0.0
    %1737 = vmatprep.subr.mxu0 0.0
    %1738 = vmatpush1.msra.mxu0 0.0
    %1739 = vmatprep.subr.mxu0 0.0
    %1740 = vmatpush1.msra.mxu0 0.0
    %1741 = vmatprep.mubr.f32.mxu0 0.0
    %1742 = vmatmul.mubr.f32.gmra.mrb[0].mxu0 %v1266
    %v1743 = vpop.f32.mrb[0].mxu0
    %v1744 = vadd.f32 0.0, %v1743
    %v1745 = vpop.f32.mrb[0].mxu0
    %v1746 = vadd.f32 0.0, %v1745
    %1747 = vmatprep.mubr.f32.mxu0 0.0
    %1748 = vmatmul.mubr.f32.gmra.mrb[0].mxu0 %v1269
    %v1749 = vpop.f32.mrb[0].mxu0
    %v1750 = vadd.f32 0.0, %v1749
    %v1751 = vpop.f32.mrb[0].mxu0
    %v1752 = vadd.f32 0.0, %v1751
    %1753 = vmatprep.mubr.f32.mxu0 0.0
    %1754 = vmatmul.mubr.f32.gmra.mrb[0].mxu0 %v1272
    %v1755 = vpop.f32.mrb[0].mxu0
    %v1756 = vadd.f32 0.0, %v1755
    %v1757 = vpop.f32.mrb[0].mxu0
    %v1758 = vadd.f32 0.0, %v1757
    %1759 = vmatprep.mubr.f32.mxu0 0.0
    %1760 = vmatmul.mubr.f32.gmra.mrb[0].mxu0 %v1275
    %v1761 = vpop.f32.mrb[0].mxu0
    %v1762 = vadd.f32 0.0, %v1761
    %v1763 = vpop.f32.mrb[0].mxu0
    %v1764 = vadd.f32 0.0, %v1763
    %1765 = vmatprep.mubr.f32.mxu0 0.0
    %1766 = vmatmul.mubr.f32.gmra.mrb[0].mxu0 %v1278
    %v1767 = vpop.f32.mrb[0].mxu0
    %v1768 = vadd.f32 0.0, %v1767
    %v1769 = vpop.f32.mrb[0].mxu0
    %v1770 = vadd.f32 0.0, %v1769
    %1771 = vmatprep.mubr.f32.mxu0 0.0
    %1772 = vmatmul.mubr.f32.gmra.mrb[0].mxu0 %v1281
    %v1773 = vpop.f32.mrb[0].mxu0
    %v1774 = vadd.f32 0.0, %v1773
    %v1775 = vpop.f32.mrb[0].mxu0
    %v1776 = vadd.f32 0.0, %v1775
    %1777 = vdwg.mxu0
    %v1778 = vadd.f32 %v1665, %v1744
    %v1779 = vadd.f32 %v1666, %v1746
    %v1780 = vadd.f32 %v1667, %v1750
    %v1781 = vadd.f32 %v1668, %v1752
    %v1782 = vadd.f32 %v1669, %v1756
    %v1783 = vadd.f32 %v1670, %v1758
    %v1784 = vadd.f32 %v1671, %v1762
    %v1785 = vadd.f32 %v1672, %v1764
    %v1786 = vmul.f32 %v1778, 0.5
    %v1787 = vmul.f32 %v1779, 0.5
    %v1788 = vmul.f32 %v1780, 0.5
    %v1789 = vmul.f32 %v1781, 0.5
    %v1790 = vmul.f32 %v1782, 0.5
    %v1791 = vmul.f32 %v1783, 0.5
    %v1792 = vmul.f32 %v1784, 0.5
    %v1793 = vmul.f32 %v1785, 0.5
    %v1794 = vtanh.pop %v1786
    %v1795 = vtanh.pop %v1787
    %v1796 = vtanh.pop %v1788
    %v1797 = vtanh.pop %v1789
    %v1798 = vtanh.pop %v1790
    %v1799 = vtanh.pop %v1791
    %v1800 = vtanh.pop %v1792
    %v1801 = vtanh.pop %v1793
    %v1802 = vmul.f32 %v1794, 0.5
    %v1803 = vmul.f32 %v1795, 0.5
    %v1804 = vmul.f32 %v1796, 0.5
    %v1805 = vmul.f32 %v1797, 0.5
    %v1806 = vmul.f32 %v1798, 0.5
    %v1807 = vmul.f32 %v1799, 0.5
    %v1808 = vmul.f32 %v1800, 0.5
    %v1809 = vmul.f32 %v1801, 0.5
    %v1810 = vadd.f32 %v1802, 0.5
    %v1811 = vadd.f32 %v1803, 0.5
    %v1812 = vadd.f32 %v1804, 0.5
    %v1813 = vadd.f32 %v1805, 0.5
    %v1814 = vadd.f32 %v1806, 0.5
    %v1815 = vadd.f32 %v1807, 0.5
    %v1816 = vadd.f32 %v1808, 0.5
    %v1817 = vadd.f32 %v1809, 0.5
    %v1818 = vadd.f32 %v1768, %v39
    %v1819 = vadd.f32 %v1770, %v39
    %v1820 = vadd.f32 %v1774, %v44
    %v1821 = vadd.f32 %v1776, %v44
    %v1822 = vmul.f32 %v1810, %v1818
    %v1823 = vmul.f32 %v1811, %v1819
    %v1824 = vmul.f32 %v1812, %v1820
    %v1825 = vmul.f32 %v1813, %v1821
    %v1826 = vadd.f32 %v1673, %v1822
    %v1827 = vadd.f32 %v1674, %v1823
    %v1828 = vadd.f32 %v1675, %v1824
    %v1829 = vadd.f32 %v1676, %v1825
    %v1830 = vtanh.pop %v1826
    %v1831 = vtanh.pop %v1827
    %v1832 = vtanh.pop %v1828
    %v1833 = vtanh.pop %v1829
    %v1834 = vsub.f32 %v1661, %v1830
    %v1835 = vsub.f32 %v1662, %v1831
    %v1836 = vsub.f32 %v1663, %v1832
    %v1837 = vsub.f32 %v1664, %v1833
    %v1838 = vmul.f32 %v1814, %v1834
    %v1839 = vmul.f32 %v1815, %v1835
    %v1840 = vmul.f32 %v1816, %v1836
    %v1841 = vmul.f32 %v1817, %v1837
    %v1842 = vadd.f32 %v1830, %v1838
    %v1843 = vadd.f32 %v1831, %v1839
    %v1844 = vadd.f32 %v1832, %v1840
    %v1845 = vadd.f32 %v1833, %v1841
    %vm1846 = vcmp.gt.s32.totalorder %v33, 2
    %v1847 = vsel %vm1846, 1, 0
    %v1848 = vlaneseq
    %v1849 = vshrl.u32 %v1848, 7
    %v1850 = vsub.s32 0, %v1849
    %v1851 = vrot.slane %v1847, %v1850
    %v1852 = vlaneseq
    %v1853 = vshrl.u32 %v1852, 7
    %v1854 = vsub.s32 1, %v1853
    %v1855 = vrot.slane %v1847, %v1854
    %vm1856 = vcmp.eq.s32.totalorder %v1851, 1
    %vm1857 = vcmp.eq.s32.totalorder %v1855, 1
    %v1858 = vsel %vm1856, %v1842, %v1661
    %v1859 = vsel %vm1857, %v1843, %v1662
    %v1860 = vsel %vm1856, %v1844, %v1663
    %v1861 = vsel %vm1857, %v1845, %v1664
    %v1862 = vld [vmem:[%s647] sm:$0xff]
    %v1863 = vld [vmem:[%s647 + $0x8] sm:$0xff]
    %v1864 = vld [vmem:[%s647 + $0x10] sm:$0xff]
    %v1865 = vld [vmem:[%s647 + $0x18] sm:$0xff]
    %v1866 = vld [vmem:[%s647 + $0x20] sm:$0xff]
    %v1867 = vld [vmem:[%s647 + $0x28] sm:$0xff]
    %v1868 = vld [vmem:[%s647 + $0x30] sm:$0xff]
    %v1869 = vld [vmem:[%s647 + $0x38] sm:$0xff]
    %v1870 = vld [vmem:[%s647 + $0x40] sm:$0xff]
    %v1871 = vld [vmem:[%s647 + $0x48] sm:$0xff]
    %v1872 = vld [vmem:[%s647 + $0x50] sm:$0xff]
    %v1873 = vld [vmem:[%s647 + $0x58] sm:$0xff]
    %1874 = vmatprep.subr.mxu0 %v1859
    %1875 = vmatpush1.msra.mxu0 %v1858
    %1876 = vmatprep.subr.mxu0 %v1861
    %1877 = vmatpush1.msra.mxu0 %v1860
    %1878 = vmatprep.subr.mxu0 0.0
    %1879 = vmatpush1.msra.mxu0 0.0
    %1880 = vmatprep.subr.mxu0 0.0
    %1881 = vmatpush1.msra.mxu0 0.0
    %1882 = vmatprep.subr.mxu0 0.0
    %1883 = vmatpush1.msra.mxu0 0.0
    %1884 = vmatprep.subr.mxu0 0.0
    %1885 = vmatpush1.msra.mxu0 0.0
    %1886 = vmatprep.subr.mxu0 0.0
    %1887 = vmatpush1.msra.mxu0 0.0
    %1888 = vmatprep.subr.mxu0 0.0
    %1889 = vmatpush1.msra.mxu0 0.0
    %1890 = vmatprep.subr.mxu0 0.0
    %1891 = vmatpush1.msra.mxu0 0.0
    %1892 = vmatprep.subr.mxu0 0.0
    %1893 = vmatpush1.msra.mxu0 0.0
    %1894 = vmatprep.subr.mxu0 0.0
    %1895 = vmatpush1.msra.mxu0 0.0
    %1896 = vmatprep.subr.mxu0 0.0
    %1897 = vmatpush1.msra.mxu0 0.0
    %1898 = vmatprep.subr.mxu0 0.0
    %1899 = vmatpush1.msra.mxu0 0.0
    %1900 = vmatprep.subr.mxu0 0.0
    %1901 = vmatpush1.msra.mxu0 0.0
    %1902 = vmatprep.subr.mxu0 0.0
    %1903 = vmatpush1.msra.mxu0 0.0
    %1904 = vmatprep.subr.mxu0 0.0
    %1905 = vmatpush1.msra.mxu0 0.0
    %1906 = vmatprep.subr.mxu0 0.0
    %1907 = vmatpush1.msra.mxu0 0.0
    %1908 = vmatprep.subr.mxu0 0.0
    %1909 = vmatpush1.msra.mxu0 0.0
    %1910 = vmatprep.subr.mxu0 0.0
    %1911 = vmatpush1.msra.mxu0 0.0
    %1912 = vmatprep.subr.mxu0 0.0
    %1913 = vmatpush1.msra.mxu0 0.0
    %1914 = vmatprep.subr.mxu0 0.0
    %1915 = vmatpush1.msra.mxu0 0.0
    %1916 = vmatprep.subr.mxu0 0.0
    %1917 = vmatpush1.msra.mxu0 0.0
    %1918 = vmatprep.subr.mxu0 0.0
    %1919 = vmatpush1.msra.mxu0 0.0
    %1920 = vmatprep.subr.mxu0 0.0
    %1921 = vmatpush1.msra.mxu0 0.0
    %1922 = vmatprep.subr.mxu0 0.0
    %1923 = vmatpush1.msra.mxu0 0.0
    %1924 = vmatprep.subr.mxu0 0.0
    %1925 = vmatpush1.msra.mxu0 0.0
    %1926 = vmatprep.subr.mxu0 0.0
    %1927 = vmatpush1.msra.mxu0 0.0
    %1928 = vmatprep.subr.mxu0 0.0
    %1929 = vmatpush1.msra.mxu0 0.0
    %1930 = vmatprep.subr.mxu0 0.0
    %1931 = vmatpush1.msra.mxu0 0.0
    %1932 = vmatprep.subr.mxu0 0.0
    %1933 = vmatpush1.msra.mxu0 0.0
    %1934 = vmatprep.subr.mxu0 0.0
    %1935 = vmatpush1.msra.mxu0 0.0
    %1936 = vmatprep.subr.mxu0 0.0
    %1937 = vmatpush1.msra.mxu0 0.0
    %1938 = vmatprep.mubr.f32.mxu0 0.0
    %1939 = vmatmul.mubr.f32.gmra.mrb[0].mxu0 %v1266
    %v1940 = vpop.f32.mrb[0].mxu0
    %v1941 = vadd.f32 0.0, %v1940
    %v1942 = vpop.f32.mrb[0].mxu0
    %v1943 = vadd.f32 0.0, %v1942
    %1944 = vmatprep.mubr.f32.mxu0 0.0
    %1945 = vmatmul.mubr.f32.gmra.mrb[0].mxu0 %v1269
    %v1946 = vpop.f32.mrb[0].mxu0
    %v1947 = vadd.f32 0.0, %v1946
    %v1948 = vpop.f32.mrb[0].mxu0
    %v1949 = vadd.f32 0.0, %v1948
    %1950 = vmatprep.mubr.f32.mxu0 0.0
    %1951 = vmatmul.mubr.f32.gmra.mrb[0].mxu0 %v1272
    %v1952 = vpop.f32.mrb[0].mxu0
    %v1953 = vadd.f32 0.0, %v1952
    %v1954 = vpop.f32.mrb[0].mxu0
    %v1955 = vadd.f32 0.0, %v1954
    %1956 = vmatprep.mubr.f32.mxu0 0.0
    %1957 = vmatmul.mubr.f32.gmra.mrb[0].mxu0 %v1275
    %v1958 = vpop.f32.mrb[0].mxu0
    %v1959 = vadd.f32 0.0, %v1958
    %v1960 = vpop.f32.mrb[0].mxu0
    %v1961 = vadd.f32 0.0, %v1960
    %1962 = vmatprep.mubr.f32.mxu0 0.0
    %1963 = vmatmul.mubr.f32.gmra.mrb[0].mxu0 %v1278
    %v1964 = vpop.f32.mrb[0].mxu0
    %v1965 = vadd.f32 0.0, %v1964
    %v1966 = vpop.f32.mrb[0].mxu0
    %v1967 = vadd.f32 0.0, %v1966
    %1968 = vmatprep.mubr.f32.mxu0 0.0
    %1969 = vmatmul.mubr.f32.gmra.mrb[0].mxu0 %v1281
    %v1970 = vpop.f32.mrb[0].mxu0
    %v1971 = vadd.f32 0.0, %v1970
    %v1972 = vpop.f32.mrb[0].mxu0
    %v1973 = vadd.f32 0.0, %v1972
    %1974 = vdwg.mxu0
    %v1975 = vadd.f32 %v1862, %v1941
    %v1976 = vadd.f32 %v1863, %v1943
    %v1977 = vadd.f32 %v1864, %v1947
    %v1978 = vadd.f32 %v1865, %v1949
    %v1979 = vadd.f32 %v1866, %v1953
    %v1980 = vadd.f32 %v1867, %v1955
    %v1981 = vadd.f32 %v1868, %v1959
    %v1982 = vadd.f32 %v1869, %v1961
    %v1983 = vmul.f32 %v1975, 0.5
    %v1984 = vmul.f32 %v1976, 0.5
    %v1985 = vmul.f32 %v1977, 0.5
    %v1986 = vmul.f32 %v1978, 0.5
    %v1987 = vmul.f32 %v1979, 0.5
    %v1988 = vmul.f32 %v1980, 0.5
    %v1989 = vmul.f32 %v1981, 0.5
    %v1990 = vmul.f32 %v1982, 0.5
    %v1991 = vtanh.pop %v1983
    %v1992 = vtanh.pop %v1984
    %v1993 = vtanh.pop %v1985
    %v1994 = vtanh.pop %v1986
    %v1995 = vtanh.pop %v1987
    %v1996 = vtanh.pop %v1988
    %v1997 = vtanh.pop %v1989
    %v1998 = vtanh.pop %v1990
    %v1999 = vmul.f32 %v1991, 0.5
    %v2000 = vmul.f32 %v1992, 0.5
    %v2001 = vmul.f32 %v1993, 0.5
    %v2002 = vmul.f32 %v1994, 0.5
    %v2003 = vmul.f32 %v1995, 0.5
    %v2004 = vmul.f32 %v1996, 0.5
    %v2005 = vmul.f32 %v1997, 0.5
    %v2006 = vmul.f32 %v1998, 0.5
    %v2007 = vadd.f32 %v1999, 0.5
    %v2008 = vadd.f32 %v2000, 0.5
    %v2009 = vadd.f32 %v2001, 0.5
    %v2010 = vadd.f32 %v2002, 0.5
    %v2011 = vadd.f32 %v2003, 0.5
    %v2012 = vadd.f32 %v2004, 0.5
    %v2013 = vadd.f32 %v2005, 0.5
    %v2014 = vadd.f32 %v2006, 0.5
    %v2015 = vadd.f32 %v1965, %v39
    %v2016 = vadd.f32 %v1967, %v39
    %v2017 = vadd.f32 %v1971, %v44
    %v2018 = vadd.f32 %v1973, %v44
    %v2019 = vmul.f32 %v2007, %v2015
    %v2020 = vmul.f32 %v2008, %v2016
    %v2021 = vmul.f32 %v2009, %v2017
    %v2022 = vmul.f32 %v2010, %v2018
    %v2023 = vadd.f32 %v1870, %v2019
    %v2024 = vadd.f32 %v1871, %v2020
    %v2025 = vadd.f32 %v1872, %v2021
    %v2026 = vadd.f32 %v1873, %v2022
    %v2027 = vtanh.pop %v2023
    %v2028 = vtanh.pop %v2024
    %v2029 = vtanh.pop %v2025
    %v2030 = vtanh.pop %v2026
    %v2031 = vsub.f32 %v1858, %v2027
    %v2032 = vsub.f32 %v1859, %v2028
    %v2033 = vsub.f32 %v1860, %v2029
    %v2034 = vsub.f32 %v1861, %v2030
    %v2035 = vmul.f32 %v2011, %v2031
    %v2036 = vmul.f32 %v2012, %v2032
    %v2037 = vmul.f32 %v2013, %v2033
    %v2038 = vmul.f32 %v2014, %v2034
    %v2039 = vadd.f32 %v2027, %v2035
    %v2040 = vadd.f32 %v2028, %v2036
    %v2041 = vadd.f32 %v2029, %v2037
    %v2042 = vadd.f32 %v2030, %v2038
    %vm2043 = vcmp.gt.s32.totalorder %v33, 3
    %v2044 = vsel %vm2043, 1, 0
    %v2045 = vlaneseq
    %v2046 = vshrl.u32 %v2045, 7
    %v2047 = vsub.s32 0, %v2046
    %v2048 = vrot.slane %v2044, %v2047
    %v2049 = vlaneseq
    %v2050 = vshrl.u32 %v2049, 7
    %v2051 = vsub.s32 1, %v2050
    %v2052 = vrot.slane %v2044, %v2051
    %vm2053 = vcmp.eq.s32.totalorder %v2048, 1
    %vm2054 = vcmp.eq.s32.totalorder %v2052, 1
    %v2055 = vsel %vm2053, %v2039, %v1858
    %v2056 = vsel %vm2054, %v2040, %v1859
    %v2057 = vsel %vm2053, %v2041, %v1860
    %v2058 = vsel %vm2054, %v2042, %v1861
    %v2059 = vld [vmem:[%s795] sm:$0xff]
    %v2060 = vld [vmem:[%s795 + $0x8] sm:$0xff]
    %v2061 = vld [vmem:[%s795 + $0x10] sm:$0xff]
    %v2062 = vld [vmem:[%s795 + $0x18] sm:$0xff]
    %v2063 = vld [vmem:[%s795 + $0x20] sm:$0xff]
    %v2064 = vld [vmem:[%s795 + $0x28] sm:$0xff]
    %v2065 = vld [vmem:[%s795 + $0x30] sm:$0xff]
    %v2066 = vld [vmem:[%s795 + $0x38] sm:$0xff]
    %v2067 = vld [vmem:[%s795 + $0x40] sm:$0xff]
    %v2068 = vld [vmem:[%s795 + $0x48] sm:$0xff]
    %v2069 = vld [vmem:[%s795 + $0x50] sm:$0xff]
    %v2070 = vld [vmem:[%s795 + $0x58] sm:$0xff]
    %2071 = vmatprep.subr.mxu0 %v2056
    %2072 = vmatpush1.msra.mxu0 %v2055
    %2073 = vmatprep.subr.mxu0 %v2058
    %2074 = vmatpush1.msra.mxu0 %v2057
    %2075 = vmatprep.subr.mxu0 0.0
    %2076 = vmatpush1.msra.mxu0 0.0
    %2077 = vmatprep.subr.mxu0 0.0
    %2078 = vmatpush1.msra.mxu0 0.0
    %2079 = vmatprep.subr.mxu0 0.0
    %2080 = vmatpush1.msra.mxu0 0.0
    %2081 = vmatprep.subr.mxu0 0.0
    %2082 = vmatpush1.msra.mxu0 0.0
    %2083 = vmatprep.subr.mxu0 0.0
    %2084 = vmatpush1.msra.mxu0 0.0
    %2085 = vmatprep.subr.mxu0 0.0
    %2086 = vmatpush1.msra.mxu0 0.0
    %2087 = vmatprep.subr.mxu0 0.0
    %2088 = vmatpush1.msra.mxu0 0.0
    %2089 = vmatprep.subr.mxu0 0.0
    %2090 = vmatpush1.msra.mxu0 0.0
    %2091 = vmatprep.subr.mxu0 0.0
    %2092 = vmatpush1.msra.mxu0 0.0
    %2093 = vmatprep.subr.mxu0 0.0
    %2094 = vmatpush1.msra.mxu0 0.0
    %2095 = vmatprep.subr.mxu0 0.0
    %2096 = vmatpush1.msra.mxu0 0.0
    %2097 = vmatprep.subr.mxu0 0.0
    %2098 = vmatpush1.msra.mxu0 0.0
    %2099 = vmatprep.subr.mxu0 0.0
    %2100 = vmatpush1.msra.mxu0 0.0
    %2101 = vmatprep.subr.mxu0 0.0
    %2102 = vmatpush1.msra.mxu0 0.0
    %2103 = vmatprep.subr.mxu0 0.0
    %2104 = vmatpush1.msra.mxu0 0.0
    %2105 = vmatprep.subr.mxu0 0.0
    %2106 = vmatpush1.msra.mxu0 0.0
    %2107 = vmatprep.subr.mxu0 0.0
    %2108 = vmatpush1.msra.mxu0 0.0
    %2109 = vmatprep.subr.mxu0 0.0
    %2110 = vmatpush1.msra.mxu0 0.0
    %2111 = vmatprep.subr.mxu0 0.0
    %2112 = vmatpush1.msra.mxu0 0.0
    %2113 = vmatprep.subr.mxu0 0.0
    %2114 = vmatpush1.msra.mxu0 0.0
    %2115 = vmatprep.subr.mxu0 0.0
    %2116 = vmatpush1.msra.mxu0 0.0
    %2117 = vmatprep.subr.mxu0 0.0
    %2118 = vmatpush1.msra.mxu0 0.0
    %2119 = vmatprep.subr.mxu0 0.0
    %2120 = vmatpush1.msra.mxu0 0.0
    %2121 = vmatprep.subr.mxu0 0.0
    %2122 = vmatpush1.msra.mxu0 0.0
    %2123 = vmatprep.subr.mxu0 0.0
    %2124 = vmatpush1.msra.mxu0 0.0
    %2125 = vmatprep.subr.mxu0 0.0
    %2126 = vmatpush1.msra.mxu0 0.0
    %2127 = vmatprep.subr.mxu0 0.0
    %2128 = vmatpush1.msra.mxu0 0.0
    %2129 = vmatprep.subr.mxu0 0.0
    %2130 = vmatpush1.msra.mxu0 0.0
    %2131 = vmatprep.subr.mxu0 0.0
    %2132 = vmatpush1.msra.mxu0 0.0
    %2133 = vmatprep.subr.mxu0 0.0
    %2134 = vmatpush1.msra.mxu0 0.0
    %2135 = vmatprep.mubr.f32.mxu0 0.0
    %2136 = vmatmul.mubr.f32.gmra.mrb[0].mxu0 %v1266
    %v2137 = vpop.f32.mrb[0].mxu0
    %v2138 = vadd.f32 0.0, %v2137
    %v2139 = vpop.f32.mrb[0].mxu0
    %v2140 = vadd.f32 0.0, %v2139
    %2141 = vmatprep.mubr.f32.mxu0 0.0
    %2142 = vmatmul.mubr.f32.gmra.mrb[0].mxu0 %v1269
    %v2143 = vpop.f32.mrb[0].mxu0
    %v2144 = vadd.f32 0.0, %v2143
    %v2145 = vpop.f32.mrb[0].mxu0
    %v2146 = vadd.f32 0.0, %v2145
    %2147 = vmatprep.mubr.f32.mxu0 0.0
    %2148 = vmatmul.mubr.f32.gmra.mrb[0].mxu0 %v1272
    %v2149 = vpop.f32.mrb[0].mxu0
    %v2150 = vadd.f32 0.0, %v2149
    %v2151 = vpop.f32.mrb[0].mxu0
    %v2152 = vadd.f32 0.0, %v2151
    %2153 = vmatprep.mubr.f32.mxu0 0.0
    %2154 = vmatmul.mubr.f32.gmra.mrb[0].mxu0 %v1275
    %v2155 = vpop.f32.mrb[0].mxu0
    %v2156 = vadd.f32 0.0, %v2155
    %v2157 = vpop.f32.mrb[0].mxu0
    %v2158 = vadd.f32 0.0, %v2157
    %2159 = vmatprep.mubr.f32.mxu0 0.0
    %2160 = vmatmul.mubr.f32.gmra.mrb[0].mxu0 %v1278
    %v2161 = vpop.f32.mrb[0].mxu0
    %v2162 = vadd.f32 0.0, %v2161
    %v2163 = vpop.f32.mrb[0].mxu0
    %v2164 = vadd.f32 0.0, %v2163
    %2165 = vmatprep.mubr.f32.mxu0 0.0
    %2166 = vmatmul.mubr.f32.gmra.mrb[0].mxu0 %v1281
    %v2167 = vpop.f32.mrb[0].mxu0
    %v2168 = vadd.f32 0.0, %v2167
    %v2169 = vpop.f32.mrb[0].mxu0
    %v2170 = vadd.f32 0.0, %v2169
    %2171 = vdwg.mxu0
    %v2172 = vadd.f32 %v2059, %v2138
    %v2173 = vadd.f32 %v2060, %v2140
    %v2174 = vadd.f32 %v2061, %v2144
    %v2175 = vadd.f32 %v2062, %v2146
    %v2176 = vadd.f32 %v2063, %v2150
    %v2177 = vadd.f32 %v2064, %v2152
    %v2178 = vadd.f32 %v2065, %v2156
    %v2179 = vadd.f32 %v2066, %v2158
    %v2180 = vmul.f32 %v2172, 0.5
    %v2181 = vmul.f32 %v2173, 0.5
    %v2182 = vmul.f32 %v2174, 0.5
    %v2183 = vmul.f32 %v2175, 0.5
    %v2184 = vmul.f32 %v2176, 0.5
    %v2185 = vmul.f32 %v2177, 0.5
    %v2186 = vmul.f32 %v2178, 0.5
    %v2187 = vmul.f32 %v2179, 0.5
    %v2188 = vtanh.pop %v2180
    %v2189 = vtanh.pop %v2181
    %v2190 = vtanh.pop %v2182
    %v2191 = vtanh.pop %v2183
    %v2192 = vtanh.pop %v2184
    %v2193 = vtanh.pop %v2185
    %v2194 = vtanh.pop %v2186
    %v2195 = vtanh.pop %v2187
    %v2196 = vmul.f32 %v2188, 0.5
    %v2197 = vmul.f32 %v2189, 0.5
    %v2198 = vmul.f32 %v2190, 0.5
    %v2199 = vmul.f32 %v2191, 0.5
    %v2200 = vmul.f32 %v2192, 0.5
    %v2201 = vmul.f32 %v2193, 0.5
    %v2202 = vmul.f32 %v2194, 0.5
    %v2203 = vmul.f32 %v2195, 0.5
    %v2204 = vadd.f32 %v2196, 0.5
    %v2205 = vadd.f32 %v2197, 0.5
    %v2206 = vadd.f32 %v2198, 0.5
    %v2207 = vadd.f32 %v2199, 0.5
    %v2208 = vadd.f32 %v2200, 0.5
    %v2209 = vadd.f32 %v2201, 0.5
    %v2210 = vadd.f32 %v2202, 0.5
    %v2211 = vadd.f32 %v2203, 0.5
    %v2212 = vadd.f32 %v2162, %v39
    %v2213 = vadd.f32 %v2164, %v39
    %v2214 = vadd.f32 %v2168, %v44
    %v2215 = vadd.f32 %v2170, %v44
    %v2216 = vmul.f32 %v2204, %v2212
    %v2217 = vmul.f32 %v2205, %v2213
    %v2218 = vmul.f32 %v2206, %v2214
    %v2219 = vmul.f32 %v2207, %v2215
    %v2220 = vadd.f32 %v2067, %v2216
    %v2221 = vadd.f32 %v2068, %v2217
    %v2222 = vadd.f32 %v2069, %v2218
    %v2223 = vadd.f32 %v2070, %v2219
    %v2224 = vtanh.pop %v2220
    %v2225 = vtanh.pop %v2221
    %v2226 = vtanh.pop %v2222
    %v2227 = vtanh.pop %v2223
    %v2228 = vsub.f32 %v2055, %v2224
    %v2229 = vsub.f32 %v2056, %v2225
    %v2230 = vsub.f32 %v2057, %v2226
    %v2231 = vsub.f32 %v2058, %v2227
    %v2232 = vmul.f32 %v2208, %v2228
    %v2233 = vmul.f32 %v2209, %v2229
    %v2234 = vmul.f32 %v2210, %v2230
    %v2235 = vmul.f32 %v2211, %v2231
    %v2236 = vadd.f32 %v2224, %v2232
    %v2237 = vadd.f32 %v2225, %v2233
    %v2238 = vadd.f32 %v2226, %v2234
    %v2239 = vadd.f32 %v2227, %v2235
    %vm2240 = vcmp.gt.s32.totalorder %v33, 4
    %v2241 = vsel %vm2240, 1, 0
    %v2242 = vlaneseq
    %v2243 = vshrl.u32 %v2242, 7
    %v2244 = vsub.s32 0, %v2243
    %v2245 = vrot.slane %v2241, %v2244
    %v2246 = vlaneseq
    %v2247 = vshrl.u32 %v2246, 7
    %v2248 = vsub.s32 1, %v2247
    %v2249 = vrot.slane %v2241, %v2248
    %vm2250 = vcmp.eq.s32.totalorder %v2245, 1
    %vm2251 = vcmp.eq.s32.totalorder %v2249, 1
    %v2252 = vsel %vm2250, %v2236, %v2055
    %v2253 = vsel %vm2251, %v2237, %v2056
    %v2254 = vsel %vm2250, %v2238, %v2057
    %v2255 = vsel %vm2251, %v2239, %v2058
    %v2256 = vld [vmem:[%s943] sm:$0xff]
    %v2257 = vld [vmem:[%s943 + $0x8] sm:$0xff]
    %v2258 = vld [vmem:[%s943 + $0x10] sm:$0xff]
    %v2259 = vld [vmem:[%s943 + $0x18] sm:$0xff]
    %v2260 = vld [vmem:[%s943 + $0x20] sm:$0xff]
    %v2261 = vld [vmem:[%s943 + $0x28] sm:$0xff]
    %v2262 = vld [vmem:[%s943 + $0x30] sm:$0xff]
    %v2263 = vld [vmem:[%s943 + $0x38] sm:$0xff]
    %v2264 = vld [vmem:[%s943 + $0x40] sm:$0xff]
    %v2265 = vld [vmem:[%s943 + $0x48] sm:$0xff]
    %v2266 = vld [vmem:[%s943 + $0x50] sm:$0xff]
    %v2267 = vld [vmem:[%s943 + $0x58] sm:$0xff]
    %2268 = vmatprep.subr.mxu0 %v2253
    %2269 = vmatpush1.msra.mxu0 %v2252
    %2270 = vmatprep.subr.mxu0 %v2255
    %2271 = vmatpush1.msra.mxu0 %v2254
    %2272 = vmatprep.subr.mxu0 0.0
    %2273 = vmatpush1.msra.mxu0 0.0
    %2274 = vmatprep.subr.mxu0 0.0
    %2275 = vmatpush1.msra.mxu0 0.0
    %2276 = vmatprep.subr.mxu0 0.0
    %2277 = vmatpush1.msra.mxu0 0.0
    %2278 = vmatprep.subr.mxu0 0.0
    %2279 = vmatpush1.msra.mxu0 0.0
    %2280 = vmatprep.subr.mxu0 0.0
    %2281 = vmatpush1.msra.mxu0 0.0
    %2282 = vmatprep.subr.mxu0 0.0
    %2283 = vmatpush1.msra.mxu0 0.0
    %2284 = vmatprep.subr.mxu0 0.0
    %2285 = vmatpush1.msra.mxu0 0.0
    %2286 = vmatprep.subr.mxu0 0.0
    %2287 = vmatpush1.msra.mxu0 0.0
    %2288 = vmatprep.subr.mxu0 0.0
    %2289 = vmatpush1.msra.mxu0 0.0
    %2290 = vmatprep.subr.mxu0 0.0
    %2291 = vmatpush1.msra.mxu0 0.0
    %2292 = vmatprep.subr.mxu0 0.0
    %2293 = vmatpush1.msra.mxu0 0.0
    %2294 = vmatprep.subr.mxu0 0.0
    %2295 = vmatpush1.msra.mxu0 0.0
    %2296 = vmatprep.subr.mxu0 0.0
    %2297 = vmatpush1.msra.mxu0 0.0
    %2298 = vmatprep.subr.mxu0 0.0
    %2299 = vmatpush1.msra.mxu0 0.0
    %2300 = vmatprep.subr.mxu0 0.0
    %2301 = vmatpush1.msra.mxu0 0.0
    %2302 = vmatprep.subr.mxu0 0.0
    %2303 = vmatpush1.msra.mxu0 0.0
    %2304 = vmatprep.subr.mxu0 0.0
    %2305 = vmatpush1.msra.mxu0 0.0
    %2306 = vmatprep.subr.mxu0 0.0
    %2307 = vmatpush1.msra.mxu0 0.0
    %2308 = vmatprep.subr.mxu0 0.0
    %2309 = vmatpush1.msra.mxu0 0.0
    %2310 = vmatprep.subr.mxu0 0.0
    %2311 = vmatpush1.msra.mxu0 0.0
    %2312 = vmatprep.subr.mxu0 0.0
    %2313 = vmatpush1.msra.mxu0 0.0
    %2314 = vmatprep.subr.mxu0 0.0
    %2315 = vmatpush1.msra.mxu0 0.0
    %2316 = vmatprep.subr.mxu0 0.0
    %2317 = vmatpush1.msra.mxu0 0.0
    %2318 = vmatprep.subr.mxu0 0.0
    %2319 = vmatpush1.msra.mxu0 0.0
    %2320 = vmatprep.subr.mxu0 0.0
    %2321 = vmatpush1.msra.mxu0 0.0
    %2322 = vmatprep.subr.mxu0 0.0
    %2323 = vmatpush1.msra.mxu0 0.0
    %2324 = vmatprep.subr.mxu0 0.0
    %2325 = vmatpush1.msra.mxu0 0.0
    %2326 = vmatprep.subr.mxu0 0.0
    %2327 = vmatpush1.msra.mxu0 0.0
    %2328 = vmatprep.subr.mxu0 0.0
    %2329 = vmatpush1.msra.mxu0 0.0
    %2330 = vmatprep.subr.mxu0 0.0
    %2331 = vmatpush1.msra.mxu0 0.0
    %2332 = vmatprep.mubr.f32.mxu0 0.0
    %2333 = vmatmul.mubr.f32.gmra.mrb[0].mxu0 %v1266
    %v2334 = vpop.f32.mrb[0].mxu0
    %v2335 = vadd.f32 0.0, %v2334
    %v2336 = vpop.f32.mrb[0].mxu0
    %v2337 = vadd.f32 0.0, %v2336
    %2338 = vmatprep.mubr.f32.mxu0 0.0
    %2339 = vmatmul.mubr.f32.gmra.mrb[0].mxu0 %v1269
    %v2340 = vpop.f32.mrb[0].mxu0
    %v2341 = vadd.f32 0.0, %v2340
    %v2342 = vpop.f32.mrb[0].mxu0
    %v2343 = vadd.f32 0.0, %v2342
    %2344 = vmatprep.mubr.f32.mxu0 0.0
    %2345 = vmatmul.mubr.f32.gmra.mrb[0].mxu0 %v1272
    %v2346 = vpop.f32.mrb[0].mxu0
    %v2347 = vadd.f32 0.0, %v2346
    %v2348 = vpop.f32.mrb[0].mxu0
    %v2349 = vadd.f32 0.0, %v2348
    %2350 = vmatprep.mubr.f32.mxu0 0.0
    %2351 = vmatmul.mubr.f32.gmra.mrb[0].mxu0 %v1275
    %v2352 = vpop.f32.mrb[0].mxu0
    %v2353 = vadd.f32 0.0, %v2352
    %v2354 = vpop.f32.mrb[0].mxu0
    %v2355 = vadd.f32 0.0, %v2354
    %2356 = vmatprep.mubr.f32.mxu0 0.0
    %2357 = vmatmul.mubr.f32.gmra.mrb[0].mxu0 %v1278
    %v2358 = vpop.f32.mrb[0].mxu0
    %v2359 = vadd.f32 0.0, %v2358
    %v2360 = vpop.f32.mrb[0].mxu0
    %v2361 = vadd.f32 0.0, %v2360
    %2362 = vmatprep.mubr.f32.mxu0 0.0
    %2363 = vmatmul.mubr.f32.gmra.mrb[0].mxu0 %v1281
    %v2364 = vpop.f32.mrb[0].mxu0
    %v2365 = vadd.f32 0.0, %v2364
    %v2366 = vpop.f32.mrb[0].mxu0
    %v2367 = vadd.f32 0.0, %v2366
    %2368 = vdwg.mxu0
    %v2369 = vadd.f32 %v2256, %v2335
    %v2370 = vadd.f32 %v2257, %v2337
    %v2371 = vadd.f32 %v2258, %v2341
    %v2372 = vadd.f32 %v2259, %v2343
    %v2373 = vadd.f32 %v2260, %v2347
    %v2374 = vadd.f32 %v2261, %v2349
    %v2375 = vadd.f32 %v2262, %v2353
    %v2376 = vadd.f32 %v2263, %v2355
    %v2377 = vmul.f32 %v2369, 0.5
    %v2378 = vmul.f32 %v2370, 0.5
    %v2379 = vmul.f32 %v2371, 0.5
    %v2380 = vmul.f32 %v2372, 0.5
    %v2381 = vmul.f32 %v2373, 0.5
    %v2382 = vmul.f32 %v2374, 0.5
    %v2383 = vmul.f32 %v2375, 0.5
    %v2384 = vmul.f32 %v2376, 0.5
    %v2385 = vtanh.pop %v2377
    %v2386 = vtanh.pop %v2378
    %v2387 = vtanh.pop %v2379
    %v2388 = vtanh.pop %v2380
    %v2389 = vtanh.pop %v2381
    %v2390 = vtanh.pop %v2382
    %v2391 = vtanh.pop %v2383
    %v2392 = vtanh.pop %v2384
    %v2393 = vmul.f32 %v2385, 0.5
    %v2394 = vmul.f32 %v2386, 0.5
    %v2395 = vmul.f32 %v2387, 0.5
    %v2396 = vmul.f32 %v2388, 0.5
    %v2397 = vmul.f32 %v2389, 0.5
    %v2398 = vmul.f32 %v2390, 0.5
    %v2399 = vmul.f32 %v2391, 0.5
    %v2400 = vmul.f32 %v2392, 0.5
    %v2401 = vadd.f32 %v2393, 0.5
    %v2402 = vadd.f32 %v2394, 0.5
    %v2403 = vadd.f32 %v2395, 0.5
    %v2404 = vadd.f32 %v2396, 0.5
    %v2405 = vadd.f32 %v2397, 0.5
    %v2406 = vadd.f32 %v2398, 0.5
    %v2407 = vadd.f32 %v2399, 0.5
    %v2408 = vadd.f32 %v2400, 0.5
    %v2409 = vadd.f32 %v2359, %v39
    %v2410 = vadd.f32 %v2361, %v39
    %v2411 = vadd.f32 %v2365, %v44
    %v2412 = vadd.f32 %v2367, %v44
    %v2413 = vmul.f32 %v2401, %v2409
    %v2414 = vmul.f32 %v2402, %v2410
    %v2415 = vmul.f32 %v2403, %v2411
    %v2416 = vmul.f32 %v2404, %v2412
    %v2417 = vadd.f32 %v2264, %v2413
    %v2418 = vadd.f32 %v2265, %v2414
    %v2419 = vadd.f32 %v2266, %v2415
    %v2420 = vadd.f32 %v2267, %v2416
    %v2421 = vtanh.pop %v2417
    %v2422 = vtanh.pop %v2418
    %v2423 = vtanh.pop %v2419
    %v2424 = vtanh.pop %v2420
    %v2425 = vsub.f32 %v2252, %v2421
    %v2426 = vsub.f32 %v2253, %v2422
    %v2427 = vsub.f32 %v2254, %v2423
    %v2428 = vsub.f32 %v2255, %v2424
    %v2429 = vmul.f32 %v2405, %v2425
    %v2430 = vmul.f32 %v2406, %v2426
    %v2431 = vmul.f32 %v2407, %v2427
    %v2432 = vmul.f32 %v2408, %v2428
    %v2433 = vadd.f32 %v2421, %v2429
    %v2434 = vadd.f32 %v2422, %v2430
    %v2435 = vadd.f32 %v2423, %v2431
    %v2436 = vadd.f32 %v2424, %v2432
    %vm2437 = vcmp.gt.s32.totalorder %v33, 5
    %v2438 = vsel %vm2437, 1, 0
    %v2439 = vlaneseq
    %v2440 = vshrl.u32 %v2439, 7
    %v2441 = vsub.s32 0, %v2440
    %v2442 = vrot.slane %v2438, %v2441
    %v2443 = vlaneseq
    %v2444 = vshrl.u32 %v2443, 7
    %v2445 = vsub.s32 1, %v2444
    %v2446 = vrot.slane %v2438, %v2445
    %vm2447 = vcmp.eq.s32.totalorder %v2442, 1
    %vm2448 = vcmp.eq.s32.totalorder %v2446, 1
    %v2449 = vsel %vm2447, %v2433, %v2252
    %v2450 = vsel %vm2448, %v2434, %v2253
    %v2451 = vsel %vm2447, %v2435, %v2254
    %v2452 = vsel %vm2448, %v2436, %v2255
    %v2453 = vld [vmem:[%s1091] sm:$0xff]
    %v2454 = vld [vmem:[%s1091 + $0x8] sm:$0xff]
    %v2455 = vld [vmem:[%s1091 + $0x10] sm:$0xff]
    %v2456 = vld [vmem:[%s1091 + $0x18] sm:$0xff]
    %v2457 = vld [vmem:[%s1091 + $0x20] sm:$0xff]
    %v2458 = vld [vmem:[%s1091 + $0x28] sm:$0xff]
    %v2459 = vld [vmem:[%s1091 + $0x30] sm:$0xff]
    %v2460 = vld [vmem:[%s1091 + $0x38] sm:$0xff]
    %v2461 = vld [vmem:[%s1091 + $0x40] sm:$0xff]
    %v2462 = vld [vmem:[%s1091 + $0x48] sm:$0xff]
    %v2463 = vld [vmem:[%s1091 + $0x50] sm:$0xff]
    %v2464 = vld [vmem:[%s1091 + $0x58] sm:$0xff]
    %2465 = vmatprep.subr.mxu0 %v2450
    %2466 = vmatpush1.msra.mxu0 %v2449
    %2467 = vmatprep.subr.mxu0 %v2452
    %2468 = vmatpush1.msra.mxu0 %v2451
    %2469 = vmatprep.subr.mxu0 0.0
    %2470 = vmatpush1.msra.mxu0 0.0
    %2471 = vmatprep.subr.mxu0 0.0
    %2472 = vmatpush1.msra.mxu0 0.0
    %2473 = vmatprep.subr.mxu0 0.0
    %2474 = vmatpush1.msra.mxu0 0.0
    %2475 = vmatprep.subr.mxu0 0.0
    %2476 = vmatpush1.msra.mxu0 0.0
    %2477 = vmatprep.subr.mxu0 0.0
    %2478 = vmatpush1.msra.mxu0 0.0
    %2479 = vmatprep.subr.mxu0 0.0
    %2480 = vmatpush1.msra.mxu0 0.0
    %2481 = vmatprep.subr.mxu0 0.0
    %2482 = vmatpush1.msra.mxu0 0.0
    %2483 = vmatprep.subr.mxu0 0.0
    %2484 = vmatpush1.msra.mxu0 0.0
    %2485 = vmatprep.subr.mxu0 0.0
    %2486 = vmatpush1.msra.mxu0 0.0
    %2487 = vmatprep.subr.mxu0 0.0
    %2488 = vmatpush1.msra.mxu0 0.0
    %2489 = vmatprep.subr.mxu0 0.0
    %2490 = vmatpush1.msra.mxu0 0.0
    %2491 = vmatprep.subr.mxu0 0.0
    %2492 = vmatpush1.msra.mxu0 0.0
    %2493 = vmatprep.subr.mxu0 0.0
    %2494 = vmatpush1.msra.mxu0 0.0
    %2495 = vmatprep.subr.mxu0 0.0
    %2496 = vmatpush1.msra.mxu0 0.0
    %2497 = vmatprep.subr.mxu0 0.0
    %2498 = vmatpush1.msra.mxu0 0.0
    %2499 = vmatprep.subr.mxu0 0.0
    %2500 = vmatpush1.msra.mxu0 0.0
    %2501 = vmatprep.subr.mxu0 0.0
    %2502 = vmatpush1.msra.mxu0 0.0
    %2503 = vmatprep.subr.mxu0 0.0
    %2504 = vmatpush1.msra.mxu0 0.0
    %2505 = vmatprep.subr.mxu0 0.0
    %2506 = vmatpush1.msra.mxu0 0.0
    %2507 = vmatprep.subr.mxu0 0.0
    %2508 = vmatpush1.msra.mxu0 0.0
    %2509 = vmatprep.subr.mxu0 0.0
    %2510 = vmatpush1.msra.mxu0 0.0
    %2511 = vmatprep.subr.mxu0 0.0
    %2512 = vmatpush1.msra.mxu0 0.0
    %2513 = vmatprep.subr.mxu0 0.0
    %2514 = vmatpush1.msra.mxu0 0.0
    %2515 = vmatprep.subr.mxu0 0.0
    %2516 = vmatpush1.msra.mxu0 0.0
    %2517 = vmatprep.subr.mxu0 0.0
    %2518 = vmatpush1.msra.mxu0 0.0
    %2519 = vmatprep.subr.mxu0 0.0
    %2520 = vmatpush1.msra.mxu0 0.0
    %2521 = vmatprep.subr.mxu0 0.0
    %2522 = vmatpush1.msra.mxu0 0.0
    %2523 = vmatprep.subr.mxu0 0.0
    %2524 = vmatpush1.msra.mxu0 0.0
    %2525 = vmatprep.subr.mxu0 0.0
    %2526 = vmatpush1.msra.mxu0 0.0
    %2527 = vmatprep.subr.mxu0 0.0
    %2528 = vmatpush1.msra.mxu0 0.0
    %2529 = vmatprep.mubr.f32.mxu0 0.0
    %2530 = vmatmul.mubr.f32.gmra.mrb[0].mxu0 %v1266
    %v2531 = vpop.f32.mrb[0].mxu0
    %v2532 = vadd.f32 0.0, %v2531
    %v2533 = vpop.f32.mrb[0].mxu0
    %v2534 = vadd.f32 0.0, %v2533
    %2535 = vmatprep.mubr.f32.mxu0 0.0
    %2536 = vmatmul.mubr.f32.gmra.mrb[0].mxu0 %v1269
    %v2537 = vpop.f32.mrb[0].mxu0
    %v2538 = vadd.f32 0.0, %v2537
    %v2539 = vpop.f32.mrb[0].mxu0
    %v2540 = vadd.f32 0.0, %v2539
    %2541 = vmatprep.mubr.f32.mxu0 0.0
    %2542 = vmatmul.mubr.f32.gmra.mrb[0].mxu0 %v1272
    %v2543 = vpop.f32.mrb[0].mxu0
    %v2544 = vadd.f32 0.0, %v2543
    %v2545 = vpop.f32.mrb[0].mxu0
    %v2546 = vadd.f32 0.0, %v2545
    %2547 = vmatprep.mubr.f32.mxu0 0.0
    %2548 = vmatmul.mubr.f32.gmra.mrb[0].mxu0 %v1275
    %v2549 = vpop.f32.mrb[0].mxu0
    %v2550 = vadd.f32 0.0, %v2549
    %v2551 = vpop.f32.mrb[0].mxu0
    %v2552 = vadd.f32 0.0, %v2551
    %2553 = vmatprep.mubr.f32.mxu0 0.0
    %2554 = vmatmul.mubr.f32.gmra.mrb[0].mxu0 %v1278
    %v2555 = vpop.f32.mrb[0].mxu0
    %v2556 = vadd.f32 0.0, %v2555
    %v2557 = vpop.f32.mrb[0].mxu0
    %v2558 = vadd.f32 0.0, %v2557
    %2559 = vmatprep.mubr.f32.mxu0 0.0
    %2560 = vmatmul.mubr.f32.gmra.mrb[0].mxu0 %v1281
    %v2561 = vpop.f32.mrb[0].mxu0
    %v2562 = vadd.f32 0.0, %v2561
    %v2563 = vpop.f32.mrb[0].mxu0
    %v2564 = vadd.f32 0.0, %v2563
    %2565 = vdwg.mxu0
    %v2566 = vadd.f32 %v2453, %v2532
    %v2567 = vadd.f32 %v2454, %v2534
    %v2568 = vadd.f32 %v2455, %v2538
    %v2569 = vadd.f32 %v2456, %v2540
    %v2570 = vadd.f32 %v2457, %v2544
    %v2571 = vadd.f32 %v2458, %v2546
    %v2572 = vadd.f32 %v2459, %v2550
    %v2573 = vadd.f32 %v2460, %v2552
    %v2574 = vmul.f32 %v2566, 0.5
    %v2575 = vmul.f32 %v2567, 0.5
    %v2576 = vmul.f32 %v2568, 0.5
    %v2577 = vmul.f32 %v2569, 0.5
    %v2578 = vmul.f32 %v2570, 0.5
    %v2579 = vmul.f32 %v2571, 0.5
    %v2580 = vmul.f32 %v2572, 0.5
    %v2581 = vmul.f32 %v2573, 0.5
    %v2582 = vtanh.pop %v2574
    %v2583 = vtanh.pop %v2575
    %v2584 = vtanh.pop %v2576
    %v2585 = vtanh.pop %v2577
    %v2586 = vtanh.pop %v2578
    %v2587 = vtanh.pop %v2579
    %v2588 = vtanh.pop %v2580
    %v2589 = vtanh.pop %v2581
    %v2590 = vmul.f32 %v2582, 0.5
    %v2591 = vmul.f32 %v2583, 0.5
    %v2592 = vmul.f32 %v2584, 0.5
    %v2593 = vmul.f32 %v2585, 0.5
    %v2594 = vmul.f32 %v2586, 0.5
    %v2595 = vmul.f32 %v2587, 0.5
    %v2596 = vmul.f32 %v2588, 0.5
    %v2597 = vmul.f32 %v2589, 0.5
    %v2598 = vadd.f32 %v2590, 0.5
    %v2599 = vadd.f32 %v2591, 0.5
    %v2600 = vadd.f32 %v2592, 0.5
    %v2601 = vadd.f32 %v2593, 0.5
    %v2602 = vadd.f32 %v2594, 0.5
    %v2603 = vadd.f32 %v2595, 0.5
    %v2604 = vadd.f32 %v2596, 0.5
    %v2605 = vadd.f32 %v2597, 0.5
    %v2606 = vadd.f32 %v2556, %v39
    %v2607 = vadd.f32 %v2558, %v39
    %v2608 = vadd.f32 %v2562, %v44
    %v2609 = vadd.f32 %v2564, %v44
    %v2610 = vmul.f32 %v2598, %v2606
    %v2611 = vmul.f32 %v2599, %v2607
    %v2612 = vmul.f32 %v2600, %v2608
    %v2613 = vmul.f32 %v2601, %v2609
    %v2614 = vadd.f32 %v2461, %v2610
    %v2615 = vadd.f32 %v2462, %v2611
    %v2616 = vadd.f32 %v2463, %v2612
    %v2617 = vadd.f32 %v2464, %v2613
    %v2618 = vtanh.pop %v2614
    %v2619 = vtanh.pop %v2615
    %v2620 = vtanh.pop %v2616
    %v2621 = vtanh.pop %v2617
    %v2622 = vsub.f32 %v2449, %v2618
    %v2623 = vsub.f32 %v2450, %v2619
    %v2624 = vsub.f32 %v2451, %v2620
    %v2625 = vsub.f32 %v2452, %v2621
    %v2626 = vmul.f32 %v2602, %v2622
    %v2627 = vmul.f32 %v2603, %v2623
    %v2628 = vmul.f32 %v2604, %v2624
    %v2629 = vmul.f32 %v2605, %v2625
    %v2630 = vadd.f32 %v2618, %v2626
    %v2631 = vadd.f32 %v2619, %v2627
    %v2632 = vadd.f32 %v2620, %v2628
    %v2633 = vadd.f32 %v2621, %v2629
    %vm2634 = vcmp.gt.s32.totalorder %v33, 6
    %v2635 = vsel %vm2634, 1, 0
    %v2636 = vlaneseq
    %v2637 = vshrl.u32 %v2636, 7
    %v2638 = vsub.s32 0, %v2637
    %v2639 = vrot.slane %v2635, %v2638
    %v2640 = vlaneseq
    %v2641 = vshrl.u32 %v2640, 7
    %v2642 = vsub.s32 1, %v2641
    %v2643 = vrot.slane %v2635, %v2642
    %vm2644 = vcmp.eq.s32.totalorder %v2639, 1
    %vm2645 = vcmp.eq.s32.totalorder %v2643, 1
    %v2646 = vsel %vm2644, %v2630, %v2449
    %v2647 = vsel %vm2645, %v2631, %v2450
    %v2648 = vsel %vm2644, %v2632, %v2451
    %v2649 = vsel %vm2645, %v2633, %v2452
    %v2650 = vld [vmem:[%s1239] sm:$0xff]
    %v2651 = vld [vmem:[%s1239 + $0x8] sm:$0xff]
    %v2652 = vld [vmem:[%s1239 + $0x10] sm:$0xff]
    %v2653 = vld [vmem:[%s1239 + $0x18] sm:$0xff]
    %v2654 = vld [vmem:[%s1239 + $0x20] sm:$0xff]
    %v2655 = vld [vmem:[%s1239 + $0x28] sm:$0xff]
    %v2656 = vld [vmem:[%s1239 + $0x30] sm:$0xff]
    %v2657 = vld [vmem:[%s1239 + $0x38] sm:$0xff]
    %v2658 = vld [vmem:[%s1239 + $0x40] sm:$0xff]
    %v2659 = vld [vmem:[%s1239 + $0x48] sm:$0xff]
    %v2660 = vld [vmem:[%s1239 + $0x50] sm:$0xff]
    %v2661 = vld [vmem:[%s1239 + $0x58] sm:$0xff]
    %2662 = vmatprep.subr.mxu0 %v2647
    %2663 = vmatpush1.msra.mxu0 %v2646
    %2664 = vmatprep.subr.mxu0 %v2649
    %2665 = vmatpush1.msra.mxu0 %v2648
    %2666 = vmatprep.subr.mxu0 0.0
    %2667 = vmatpush1.msra.mxu0 0.0
    %2668 = vmatprep.subr.mxu0 0.0
    %2669 = vmatpush1.msra.mxu0 0.0
    %2670 = vmatprep.subr.mxu0 0.0
    %2671 = vmatpush1.msra.mxu0 0.0
    %2672 = vmatprep.subr.mxu0 0.0
    %2673 = vmatpush1.msra.mxu0 0.0
    %2674 = vmatprep.subr.mxu0 0.0
    %2675 = vmatpush1.msra.mxu0 0.0
    %2676 = vmatprep.subr.mxu0 0.0
    %2677 = vmatpush1.msra.mxu0 0.0
    %2678 = vmatprep.subr.mxu0 0.0
    %2679 = vmatpush1.msra.mxu0 0.0
    %2680 = vmatprep.subr.mxu0 0.0
    %2681 = vmatpush1.msra.mxu0 0.0
    %2682 = vmatprep.subr.mxu0 0.0
    %2683 = vmatpush1.msra.mxu0 0.0
    %2684 = vmatprep.subr.mxu0 0.0
    %2685 = vmatpush1.msra.mxu0 0.0
    %2686 = vmatprep.subr.mxu0 0.0
    %2687 = vmatpush1.msra.mxu0 0.0
    %2688 = vmatprep.subr.mxu0 0.0
    %2689 = vmatpush1.msra.mxu0 0.0
    %2690 = vmatprep.subr.mxu0 0.0
    %2691 = vmatpush1.msra.mxu0 0.0
    %2692 = vmatprep.subr.mxu0 0.0
    %2693 = vmatpush1.msra.mxu0 0.0
    %2694 = vmatprep.subr.mxu0 0.0
    %2695 = vmatpush1.msra.mxu0 0.0
    %2696 = vmatprep.subr.mxu0 0.0
    %2697 = vmatpush1.msra.mxu0 0.0
    %2698 = vmatprep.subr.mxu0 0.0
    %2699 = vmatpush1.msra.mxu0 0.0
    %2700 = vmatprep.subr.mxu0 0.0
    %2701 = vmatpush1.msra.mxu0 0.0
    %2702 = vmatprep.subr.mxu0 0.0
    %2703 = vmatpush1.msra.mxu0 0.0
    %2704 = vmatprep.subr.mxu0 0.0
    %2705 = vmatpush1.msra.mxu0 0.0
    %2706 = vmatprep.subr.mxu0 0.0
    %2707 = vmatpush1.msra.mxu0 0.0
    %2708 = vmatprep.subr.mxu0 0.0
    %2709 = vmatpush1.msra.mxu0 0.0
    %2710 = vmatprep.subr.mxu0 0.0
    %2711 = vmatpush1.msra.mxu0 0.0
    %2712 = vmatprep.subr.mxu0 0.0
    %2713 = vmatpush1.msra.mxu0 0.0
    %2714 = vmatprep.subr.mxu0 0.0
    %2715 = vmatpush1.msra.mxu0 0.0
    %2716 = vmatprep.subr.mxu0 0.0
    %2717 = vmatpush1.msra.mxu0 0.0
    %2718 = vmatprep.subr.mxu0 0.0
    %2719 = vmatpush1.msra.mxu0 0.0
    %2720 = vmatprep.subr.mxu0 0.0
    %2721 = vmatpush1.msra.mxu0 0.0
    %2722 = vmatprep.subr.mxu0 0.0
    %2723 = vmatpush1.msra.mxu0 0.0
    %2724 = vmatprep.subr.mxu0 0.0
    %2725 = vmatpush1.msra.mxu0 0.0
    %2726 = vmatprep.mubr.f32.mxu0 0.0
    %2727 = vmatmul.mubr.f32.gmra.mrb[0].mxu0 %v1266
    %v2728 = vpop.f32.mrb[0].mxu0
    %v2729 = vadd.f32 0.0, %v2728
    %v2730 = vpop.f32.mrb[0].mxu0
    %v2731 = vadd.f32 0.0, %v2730
    %2732 = vmatprep.mubr.f32.mxu0 0.0
    %2733 = vmatmul.mubr.f32.gmra.mrb[0].mxu0 %v1269
    %v2734 = vpop.f32.mrb[0].mxu0
    %v2735 = vadd.f32 0.0, %v2734
    %v2736 = vpop.f32.mrb[0].mxu0
    %v2737 = vadd.f32 0.0, %v2736
    %2738 = vmatprep.mubr.f32.mxu0 0.0
    %2739 = vmatmul.mubr.f32.gmra.mrb[0].mxu0 %v1272
    %v2740 = vpop.f32.mrb[0].mxu0
    %v2741 = vadd.f32 0.0, %v2740
    %v2742 = vpop.f32.mrb[0].mxu0
    %v2743 = vadd.f32 0.0, %v2742
    %2744 = vmatprep.mubr.f32.mxu0 0.0
    %2745 = vmatmul.mubr.f32.gmra.mrb[0].mxu0 %v1275
    %v2746 = vpop.f32.mrb[0].mxu0
    %v2747 = vadd.f32 0.0, %v2746
    %v2748 = vpop.f32.mrb[0].mxu0
    %v2749 = vadd.f32 0.0, %v2748
    %2750 = vmatprep.mubr.f32.mxu0 0.0
    %2751 = vmatmul.mubr.f32.gmra.mrb[0].mxu0 %v1278
    %v2752 = vpop.f32.mrb[0].mxu0
    %v2753 = vadd.f32 0.0, %v2752
    %v2754 = vpop.f32.mrb[0].mxu0
    %v2755 = vadd.f32 0.0, %v2754
    %2756 = vmatprep.mubr.f32.mxu0 0.0
    %2757 = vmatmul.mubr.f32.gmra.mrb[0].mxu0 %v1281
    %v2758 = vpop.f32.mrb[0].mxu0
    %v2759 = vadd.f32 0.0, %v2758
    %v2760 = vpop.f32.mrb[0].mxu0
    %v2761 = vadd.f32 0.0, %v2760
    %2762 = vdwg.mxu0
    %v2763 = vadd.f32 %v2650, %v2729
    %v2764 = vadd.f32 %v2651, %v2731
    %v2765 = vadd.f32 %v2652, %v2735
    %v2766 = vadd.f32 %v2653, %v2737
    %v2767 = vadd.f32 %v2654, %v2741
    %v2768 = vadd.f32 %v2655, %v2743
    %v2769 = vadd.f32 %v2656, %v2747
    %v2770 = vadd.f32 %v2657, %v2749
    %v2771 = vmul.f32 %v2763, 0.5
    %v2772 = vmul.f32 %v2764, 0.5
    %v2773 = vmul.f32 %v2765, 0.5
    %v2774 = vmul.f32 %v2766, 0.5
    %v2775 = vmul.f32 %v2767, 0.5
    %v2776 = vmul.f32 %v2768, 0.5
    %v2777 = vmul.f32 %v2769, 0.5
    %v2778 = vmul.f32 %v2770, 0.5
    %v2779 = vtanh.pop %v2771
    %v2780 = vtanh.pop %v2772
    %v2781 = vtanh.pop %v2773
    %v2782 = vtanh.pop %v2774
    %v2783 = vtanh.pop %v2775
    %v2784 = vtanh.pop %v2776
    %v2785 = vtanh.pop %v2777
    %v2786 = vtanh.pop %v2778
    %v2787 = vmul.f32 %v2779, 0.5
    %v2788 = vmul.f32 %v2780, 0.5
    %v2789 = vmul.f32 %v2781, 0.5
    %v2790 = vmul.f32 %v2782, 0.5
    %v2791 = vmul.f32 %v2783, 0.5
    %v2792 = vmul.f32 %v2784, 0.5
    %v2793 = vmul.f32 %v2785, 0.5
    %v2794 = vmul.f32 %v2786, 0.5
    %v2795 = vadd.f32 %v2787, 0.5
    %v2796 = vadd.f32 %v2788, 0.5
    %v2797 = vadd.f32 %v2789, 0.5
    %v2798 = vadd.f32 %v2790, 0.5
    %v2799 = vadd.f32 %v2791, 0.5
    %v2800 = vadd.f32 %v2792, 0.5
    %v2801 = vadd.f32 %v2793, 0.5
    %v2802 = vadd.f32 %v2794, 0.5
    %v2803 = vadd.f32 %v2753, %v39
    %v2804 = vadd.f32 %v2755, %v39
    %v2805 = vadd.f32 %v2759, %v44
    %v2806 = vadd.f32 %v2761, %v44
    %v2807 = vmul.f32 %v2795, %v2803
    %v2808 = vmul.f32 %v2796, %v2804
    %v2809 = vmul.f32 %v2797, %v2805
    %v2810 = vmul.f32 %v2798, %v2806
    %v2811 = vadd.f32 %v2658, %v2807
    %v2812 = vadd.f32 %v2659, %v2808
    %v2813 = vadd.f32 %v2660, %v2809
    %v2814 = vadd.f32 %v2661, %v2810
    %v2815 = vtanh.pop %v2811
    %v2816 = vtanh.pop %v2812
    %v2817 = vtanh.pop %v2813
    %v2818 = vtanh.pop %v2814
    %v2819 = vsub.f32 %v2646, %v2815
    %v2820 = vsub.f32 %v2647, %v2816
    %v2821 = vsub.f32 %v2648, %v2817
    %v2822 = vsub.f32 %v2649, %v2818
    %v2823 = vmul.f32 %v2799, %v2819
    %v2824 = vmul.f32 %v2800, %v2820
    %v2825 = vmul.f32 %v2801, %v2821
    %v2826 = vmul.f32 %v2802, %v2822
    %v2827 = vadd.f32 %v2815, %v2823
    %v2828 = vadd.f32 %v2816, %v2824
    %v2829 = vadd.f32 %v2817, %v2825
    %v2830 = vadd.f32 %v2818, %v2826
    %vm2831 = vcmp.gt.s32.totalorder %v33, 7
    %v2832 = vsel %vm2831, 1, 0
    %v2833 = vlaneseq
    %v2834 = vshrl.u32 %v2833, 7
    %v2835 = vsub.s32 0, %v2834
    %v2836 = vrot.slane %v2832, %v2835
    %v2837 = vlaneseq
    %v2838 = vshrl.u32 %v2837, 7
    %v2839 = vsub.s32 1, %v2838
    %v2840 = vrot.slane %v2832, %v2839
    %vm2841 = vcmp.eq.s32.totalorder %v2836, 1
    %vm2842 = vcmp.eq.s32.totalorder %v2840, 1
    %v2843 = vsel %vm2841, %v2827, %v2646
    %v2844 = vsel %vm2842, %v2828, %v2647
    %v2845 = vsel %vm2841, %v2829, %v2648
    %v2846 = vsel %vm2842, %v2830, %v2649
    %2847 = vst [vmem:[#allocation3] sm:$0xff] %v2843
    %2848 = vst [vmem:[#allocation3 + $0x8] sm:$0xff] %v2844
    %2849 = vst [vmem:[#allocation3 + $0x10] sm:$0xff] %v2845
    %2850 = vst [vmem:[#allocation3 + $0x18] sm:$0xff] %v2846
    // Predicated region
    $region22: #{tpu_custom_call.1} parent=1 // pred_check
      _
    $region23: #{tpu_custom_call.1} parent=1 // pred_check_branch
      %2852 = sbr.rel (0) target = $region25
    $region24: #{tpu_custom_call.1} parent=1 // pred_region
      %s2854 = ssub.s32 512, 512
      %2855 = vsyncadd [#allocation4], %s2854
      %s2856 = sshll.u32 [#allocation3], 4
      %s2857 = int_to_ptr.vmem [resolvable:$true] %s2856
      %2862 = dma.vmem_to_hbm [thread:$0]  %s2857, 512, %s5, [#allocation4], 256, 256, 16
    $region25: #{tpu_custom_call.1} parent=1 // pred_fallthru
      _
    // Predicated region
    $region26: #{tpu_custom_call.1} parent=1 // pred_check
      _
    $region27: #{tpu_custom_call.1} parent=1 // pred_check_branch
      %2864 = sbr.rel (0) target = $region29
    $region28: #{tpu_custom_call.1} parent=1 // pred_region
      %2865 = dma.done [#allocation4], 512
    $region29: #{tpu_custom_call.1} parent=1 // pred_fallthru
      _
    %2866 = vsyncpa [#allocation4], 1

</llo_original>
